<compile_context>
chip_gen: v7x
topology: tpu7x:2x2x1
jax: 0.10.0
libtpu: 0.0.40
codegen_flags: <defaults>
</compile_context>

<pallas_src>
import math
from functools import partial

import jax
import jax.numpy as jnp
from jax import lax
from jax.experimental import pallas as pl
from jax.experimental.pallas import tpu as pltpu


# ----------------------------------------------------------------------------
# Fused Pallas kernel: whole AttentionPropagation forward for one batch element
# ----------------------------------------------------------------------------
def _attn_prop_kernel(m1_ref, m2_ref,
                      wqa_ref, bq_ref, wkv_ref, bkv_ref,
                      wc1b_ref, bc1_ref, wc2_ref, bc2_ref,
                      o_ref, *, head, head_dim):
    f32, bf16 = jnp.float32, jnp.bfloat16
    C = head * head_dim

    x1 = m1_ref[0]                                    # (C, N) f32, kept for residual
    x1b = x1.astype(bf16)
    x2b = m2_ref[0].astype(bf16)                      # (C, M)

    # --- stacked projection against motion1 ----------------------------------
    # rows [0:C]   -> q   (1/sqrt(Dh) already folded into the weight/bias)
    # rows [C:3C]  -> BN-folded Wc1a term of the cat_filter hidden
    qa = jnp.dot(wqa_ref[...], x1b, preferred_element_type=f32)       # (3C, N)
    q = qa[:C] + bq_ref[...]                                          # (C, N)
    hcat = qa[C:]                                                     # (2C, N)

    # --- fused k/v projection against motion2 --------------------------------
    kv = jnp.dot(wkv_ref[...], x2b, preferred_element_type=f32) + bkv_ref[...]  # (2C, M)

    # --- multi-head attention, heads as a dot_general batch dimension --------
    qh = q.astype(bf16).reshape(head, head_dim, -1)                   # (H, Dh, N)
    kvb = kv.astype(bf16)
    kh = kvb[:C].reshape(head, head_dim, -1)                          # (H, Dh, M)
    vh = kvb[C:].reshape(head, head_dim, -1)                          # (H, Dh, M)

    # s[h, n, m] = sum_d qh[h, d, n] * kh[h, d, m]
    s = lax.dot_general(qh, kh, (((1,), (1,)), ((0,), (0,))),
                        preferred_element_type=f32)                   # (H, N, M)
    e = jnp.exp(s - jnp.max(s, axis=-1, keepdims=True))               # (H, N, M)
    # deferred normalization: PV matmul on un-normalized exp, then scale the
    # (H, Dh, N) result by 1/rowsum (Dh*N multiplies/head instead of N*M).
    oh = lax.dot_general(vh, e.astype(bf16), (((2,), (2,)), ((0,), (0,))),
                         preferred_element_type=f32)                  # (H, Dh, N)
    inv_l = pl.reciprocal(jnp.sum(e, axis=-1), approx=True)           # (H, N)
    attn = (oh * inv_l[:, None, :]).reshape(C, -1)                    # (C, N)

    # --- cat_filter (mh_filter + eval BatchNorm folded into Wc1b/bc1) --------
    hcat = hcat + jnp.dot(wc1b_ref[...], attn.astype(bf16),
                          preferred_element_type=f32) + bc1_ref[...]  # (2C, N)
    hcat = jnp.maximum(hcat, 0.0)
    out = jnp.dot(wc2_ref[...], hcat.astype(bf16),
                  preferred_element_type=f32) + bc2_ref[...]          # (C, N)

    # --- residual -------------------------------------------------------------
    o_ref[0] = (x1 + out).astype(o_ref.dtype)


# ----------------------------------------------------------------------------
# Wrapper: one pallas_call, grid over batch; all constant folding happens here
# ----------------------------------------------------------------------------
def attention_propagation(p, motion1, motion2, *, head):
    B, C, N = motion1.shape
    M = motion2.shape[2]
    head_dim = C // head
    bf16 = jnp.bfloat16

    # ---- one-time, exact constant folding (f32), then bf16 cast of weights --
    # 1/sqrt(Dh) -> Wq, bq
    sc = jnp.float32(1.0 / math.sqrt(head_dim))
    wq = p['Wq'] * sc                                                  # (C, C)
    bq = (p['bq'] * sc).reshape(C, 1)                                  # (C, 1)
    # eval-mode BatchNorm -> cat_filter conv1 weights/bias
    bn_s = p['bn1_scale']                                              # (2C, 1)
    bn_b = p['bn1_shift']                                              # (2C, 1)
    wc1a = bn_s * p['Wc1'][:, :C]                                      # (2C, C)
    wc1b_s = bn_s * p['Wc1'][:, C:]                                    # (2C, C)
    # mh_filter folded into the add_value branch of conv1
    wc1b = wc1b_s @ p['Wmh']                                           # (2C, C)
    bc1 = (bn_s * p['bc1'].reshape(2 * C, 1) + bn_b
           + wc1b_s @ p['bmh'].reshape(C, 1))                          # (2C, 1)
    # stack scale-folded Wq with BN-folded Wc1a -> one (3C, C) matmul
    wqa = jnp.concatenate([wq, wc1a], axis=0).astype(bf16)             # (3C, C)
    # fused k/v projection
    wkv = jnp.concatenate([p['Wk'], p['Wv']], axis=0).astype(bf16)     # (2C, C)
    bkv = jnp.concatenate([p['bk'], p['bv']], axis=0).reshape(2 * C, 1)
    wc1b = wc1b.astype(bf16)
    wc2 = p['Wc2'].astype(bf16)
    bc2 = p['bc2'].reshape(C, 1)

    kernel = partial(_attn_prop_kernel, head=head, head_dim=head_dim)
    const = lambda b: (0, 0)   # weights / biases: same whole-array block each step

    return pl.pallas_call(
        kernel,
        out_shape=jax.ShapeDtypeStruct((B, C, N), jnp.float32),
        grid_spec=pltpu.PrefetchScalarGridSpec(
            num_scalar_prefetch=0,
            grid=(B,),
            in_specs=[
                pl.BlockSpec((1, C, N), lambda b: (b, 0, 0)),   # motion1
                pl.BlockSpec((1, C, M), lambda b: (b, 0, 0)),   # motion2
                pl.BlockSpec((3 * C, C), const),                # [Wq*sc ; bn*Wc1a]  bf16
                pl.BlockSpec((C, 1), const),                    # bq*sc              f32
                pl.BlockSpec((2 * C, C), const),                # [Wk ; Wv]          bf16
                pl.BlockSpec((2 * C, 1), const),                # [bk ; bv]          f32
                pl.BlockSpec((2 * C, C), const),                # (bn*Wc1b)@Wmh      bf16
                pl.BlockSpec((2 * C, 1), const),                # folded bc1         f32
                pl.BlockSpec((C, 2 * C), const),                # Wc2                bf16
                pl.BlockSpec((C, 1), const),                    # bc2                f32
            ],
            out_specs=pl.BlockSpec((1, C, N), lambda b: (b, 0, 0)),
        ),
        compiler_params=pltpu.CompilerParams(
            dimension_semantics=("parallel",)),   # B>=2 -> both TCs on v7x
    )(motion1, motion2, wqa, bq, wkv, bkv, wc1b, bc1, wc2, bc2)


# ----------------------------------------------------------------------------
# Deterministic, synthetic parameter initialization (PyTorch-style ranges)
# ----------------------------------------------------------------------------
def conv_params(key, cout, cin):
    k1, k2 = jax.random.split(key)
    bound = 1.0 / math.sqrt(cin)
    w = jax.random.uniform(k1, (cout, cin), jnp.float32, -bound, bound)
    b = jax.random.uniform(k2, (cout,), jnp.float32, -bound, bound)
    return w, b


def bn_params(key, c, eps=1e-5):
    """Eval-mode BatchNorm folded into (scale, shift), each (c, 1)."""
    k1, k2, k3, k4 = jax.random.split(key, 4)
    gamma = jax.random.uniform(k1, (c,), jnp.float32, 0.5, 1.5)
    beta = jax.random.normal(k2, (c,), jnp.float32) * 0.1
    rm = jax.random.normal(k3, (c,), jnp.float32) * 0.1
    rv = jax.random.uniform(k4, (c,), jnp.float32, 0.5, 1.5)
    scale = gamma / jnp.sqrt(rv + eps)
    shift = beta - rm * scale
    return scale.reshape(c, 1), shift.reshape(c, 1)


def init_attn_prop(key, C):
    ks = jax.random.split(key, 7)
    p = {}
    p['Wq'], p['bq'] = conv_params(ks[0], C, C)
    p['Wk'], p['bk'] = conv_params(ks[1], C, C)
    p['Wv'], p['bv'] = conv_params(ks[2], C, C)
    p['Wmh'], p['bmh'] = conv_params(ks[3], C, C)
    p['Wc1'], p['bc1'] = conv_params(ks[4], 2 * C, 2 * C)
    p['bn1_scale'], p['bn1_shift'] = bn_params(ks[5], 2 * C)
    p['Wc2'], p['bc2'] = conv_params(ks[6], C, 2 * C)
    return p


# ----------------------------------------------------------------------------
# Pure-JAX reference (f32 everywhere) for a correctness check
# ----------------------------------------------------------------------------
def attention_propagation_ref(p, motion1, motion2, head):
    B, C, N = motion1.shape
    Dh = C // head
    conv1 = lambda x, w, b: jnp.einsum('oc,bcn->bon', w, x) + b[None, :, None]
    q = conv1(motion1, p['Wq'], p['bq']).reshape(B, head, Dh, N)
    k = conv1(motion2, p['Wk'], p['bk']).reshape(B, head, Dh, -1)
    v = conv1(motion2, p['Wv'], p['bv']).reshape(B, head, Dh, -1)
    score = jax.nn.softmax(
        jnp.einsum('bhdn,bhdm->bhnm', q, k) / math.sqrt(Dh), axis=-1)
    add_value = jnp.einsum('bhnm,bhdm->bhdn', score, v).reshape(B, C, N)
    add_value = conv1(add_value, p['Wmh'], p['bmh'])
    cat = jnp.concatenate([motion1, add_value], axis=1)
    h = conv1(cat, p['Wc1'], p['bc1'])
    h = jax.nn.relu(h * p['bn1_scale'][None] + p['bn1_shift'][None])
    return motion1 + conv1(h, p['Wc2'], p['bc2'])


# ----------------------------------------------------------------------------
if __name__ == "__main__":
    B, C, HEAD, N, M = 2, 32, 4, 128, 256
    key = jax.random.PRNGKey(0)
    kp, k1, k2 = jax.random.split(key, 3)

    params = init_attn_prop(kp, C)
    motion1 = jax.random.normal(k1, (B, C, N), jnp.float32)
    motion2 = jax.random.normal(k2, (B, C, M), jnp.float32)

    fwd = jax.jit(partial(attention_propagation, head=HEAD))
    out = fwd(params, motion1, motion2)
    jax.block_until_ready(out)

    assert out.shape == (B, C, N), out.shape
    assert bool(jnp.all(jnp.isfinite(out)))

    # loose tolerance: kernel uses bf16 MXU operands + folded weights,
    # reference is pure f32
    ref = attention_propagation_ref(params, motion1, motion2, HEAD)
    err = float(jnp.max(jnp.abs(out - ref)))
    assert err < 0.25, f"max abs err vs f32 reference: {err}"

    print("KERNEL_OK")
</pallas_src>

<mosaic_0001>
module attributes {stable_mosaic.version = 11 : i64} {
  func.func @_attn_prop_kernel(%arg0: i32, %arg1: memref<1x32x128xf32, #tpu.memory_space<vmem>>, %arg2: memref<1x32x256xf32, #tpu.memory_space<vmem>>, %arg3: memref<96x32xbf16, #tpu.memory_space<vmem>>, %arg4: memref<32x1xf32, #tpu.memory_space<vmem>>, %arg5: memref<64x32xbf16, #tpu.memory_space<vmem>>, %arg6: memref<64x1xf32, #tpu.memory_space<vmem>>, %arg7: memref<64x32xbf16, #tpu.memory_space<vmem>>, %arg8: memref<64x1xf32, #tpu.memory_space<vmem>>, %arg9: memref<32x64xbf16, #tpu.memory_space<vmem>>, %arg10: memref<32x1xf32, #tpu.memory_space<vmem>>, %arg11: memref<1x32x128xf32, #tpu.memory_space<vmem>>) attributes {dimension_semantics = [#tpu.dimension_semantics<parallel>], iteration_bounds = array<i64: 2>, scalar_prefetch = 0 : i64, scratch_operands = 0 : i64, tpu.core_type = #tpu.core_type<tc>, window_params = [{transform_indices = @transform_0, window_bounds = array<i64: 1, 32, 128>}, {transform_indices = @transform_1, window_bounds = array<i64: 1, 32, 256>}, {pipeline_mode = #tpu.pipeline_mode<synchronous>, transform_indices = @transform_2, window_bounds = array<i64: 96, 32>}, {pipeline_mode = #tpu.pipeline_mode<synchronous>, transform_indices = @transform_3, window_bounds = array<i64: 32, 1>}, {pipeline_mode = #tpu.pipeline_mode<synchronous>, transform_indices = @transform_4, window_bounds = array<i64: 64, 32>}, {pipeline_mode = #tpu.pipeline_mode<synchronous>, transform_indices = @transform_5, window_bounds = array<i64: 64, 1>}, {pipeline_mode = #tpu.pipeline_mode<synchronous>, transform_indices = @transform_6, window_bounds = array<i64: 64, 32>}, {pipeline_mode = #tpu.pipeline_mode<synchronous>, transform_indices = @transform_7, window_bounds = array<i64: 64, 1>}, {pipeline_mode = #tpu.pipeline_mode<synchronous>, transform_indices = @transform_8, window_bounds = array<i64: 32, 64>}, {pipeline_mode = #tpu.pipeline_mode<synchronous>, transform_indices = @transform_9, window_bounds = array<i64: 32, 1>}, {transform_indices = @transform_10, window_bounds = array<i64: 1, 32, 128>}]} {
    %c0 = arith.constant 0 : index
    %c0_0 = arith.constant 0 : index
    %c0_1 = arith.constant 0 : index
    %0 = vector.load %arg1[%c0, %c0_0, %c0_1] : memref<1x32x128xf32, #tpu.memory_space<vmem>>, vector<1x32x128xf32>
    %1 = vector.shape_cast %0 : vector<1x32x128xf32> to vector<32x128xf32>
    %2 = arith.truncf %1 : vector<32x128xf32> to vector<32x128xbf16>
    %c0_2 = arith.constant 0 : index
    %c0_3 = arith.constant 0 : index
    %c0_4 = arith.constant 0 : index
    %3 = vector.load %arg2[%c0_2, %c0_3, %c0_4] : memref<1x32x256xf32, #tpu.memory_space<vmem>>, vector<1x32x256xf32>
    %4 = vector.shape_cast %3 : vector<1x32x256xf32> to vector<32x256xf32>
    %5 = arith.truncf %4 : vector<32x256xf32> to vector<32x256xbf16>
    %c0_5 = arith.constant 0 : index
    %c0_6 = arith.constant 0 : index
    %6 = vector.load %arg3[%c0_5, %c0_6] : memref<96x32xbf16, #tpu.memory_space<vmem>>, vector<96x32xbf16>
    %cst = arith.constant dense<0.000000e+00> : vector<96x128xf32>
    %7 = tpu.matmul %6, %2, %cst {dimension_numbers = #tpu.dot_dimension_numbers<[1], [0], [0], [1], [0, 0, 1, 1], [], []>} : vector<96x32xbf16>, vector<32x128xbf16>, vector<96x128xf32> -> vector<96x128xf32>
    %8 = vector.extract_strided_slice %7 {offsets = [0, 0], sizes = [32, 128], strides = [1, 1]} : vector<96x128xf32> to vector<32x128xf32>
    %c0_7 = arith.constant 0 : index
    %c0_8 = arith.constant 0 : index
    %9 = vector.load %arg4[%c0_7, %c0_8] : memref<32x1xf32, #tpu.memory_space<vmem>>, vector<32x1xf32>
    %10 = vector.broadcast %9 : vector<32x1xf32> to vector<32x128xf32>
    %11 = arith.addf %8, %10 : vector<32x128xf32>
    %12 = vector.extract_strided_slice %7 {offsets = [32, 0], sizes = [64, 128], strides = [1, 1]} : vector<96x128xf32> to vector<64x128xf32>
    %c0_9 = arith.constant 0 : index
    %c0_10 = arith.constant 0 : index
    %13 = vector.load %arg5[%c0_9, %c0_10] : memref<64x32xbf16, #tpu.memory_space<vmem>>, vector<64x32xbf16>
    %cst_11 = arith.constant dense<0.000000e+00> : vector<64x256xf32>
    %14 = tpu.matmul %13, %5, %cst_11 {dimension_numbers = #tpu.dot_dimension_numbers<[1], [0], [0], [1], [0, 0, 1, 1], [], []>} : vector<64x32xbf16>, vector<32x256xbf16>, vector<64x256xf32> -> vector<64x256xf32>
    %c0_12 = arith.constant 0 : index
    %c0_13 = arith.constant 0 : index
    %15 = vector.load %arg6[%c0_12, %c0_13] : memref<64x1xf32, #tpu.memory_space<vmem>>, vector<64x1xf32>
    %16 = vector.broadcast %15 : vector<64x1xf32> to vector<64x256xf32>
    %17 = arith.addf %14, %16 : vector<64x256xf32>
    %18 = arith.truncf %11 : vector<32x128xf32> to vector<32x128xbf16>
    %19 = vector.shape_cast %18 : vector<32x128xbf16> to vector<4x8x128xbf16>
    %20 = arith.truncf %17 : vector<64x256xf32> to vector<64x256xbf16>
    %21 = vector.extract_strided_slice %20 {offsets = [0, 0], sizes = [32, 256], strides = [1, 1]} : vector<64x256xbf16> to vector<32x256xbf16>
    %22 = vector.shape_cast %21 : vector<32x256xbf16> to vector<4x8x256xbf16>
    %23 = vector.extract_strided_slice %20 {offsets = [32, 0], sizes = [32, 256], strides = [1, 1]} : vector<64x256xbf16> to vector<32x256xbf16>
    %24 = vector.shape_cast %23 : vector<32x256xbf16> to vector<4x8x256xbf16>
    %cst_14 = arith.constant dense<0.000000e+00> : vector<4x128x256xf32>
    %25 = tpu.matmul %19, %22, %cst_14 {dimension_numbers = #tpu.dot_dimension_numbers<[1], [1], [2], [2], [0, 0, 0, 2, 1, 2], [0], [0]>} : vector<4x8x128xbf16>, vector<4x8x256xbf16>, vector<4x128x256xf32> -> vector<4x128x256xf32>
    %cst_15 = arith.constant dense<0xFF800000> : vector<4x128xf32>
    %26 = vector.multi_reduction <maximumf>, %25, %cst_15 [2] : vector<4x128x256xf32> to vector<4x128xf32>
    %27 = vector.shape_cast %26 : vector<4x128xf32> to vector<4x128x1xf32>
    %28 = vector.broadcast %27 : vector<4x128x1xf32> to vector<4x128x256xf32>
    %29 = arith.subf %25, %28 : vector<4x128x256xf32>
    %30 = math.exp %29 : vector<4x128x256xf32>
    %31 = arith.truncf %30 : vector<4x128x256xf32> to vector<4x128x256xbf16>
    %cst_16 = arith.constant dense<0.000000e+00> : vector<4x8x128xf32>
    %32 = tpu.matmul %24, %31, %cst_16 {dimension_numbers = #tpu.dot_dimension_numbers<[2], [2], [1], [1], [0, 0, 0, 1, 1, 1], [0], [0]>} : vector<4x8x256xbf16>, vector<4x128x256xbf16>, vector<4x8x128xf32> -> vector<4x8x128xf32>
    %cst_17 = arith.constant dense<0.000000e+00> : vector<4x128xf32>
    %33 = vector.multi_reduction <add>, %30, %cst_17 [2] : vector<4x128x256xf32> to vector<4x128xf32>
    %34 = tpu.reciprocal %33 {approx = true} : vector<4x128xf32> -> vector<4x128xf32>
    %35 = vector.shape_cast %34 : vector<4x128xf32> to vector<4x1x128xf32>
    %36 = vector.broadcast %35 : vector<4x1x128xf32> to vector<4x8x128xf32>
    %37 = arith.mulf %32, %36 : vector<4x8x128xf32>
    %38 = vector.shape_cast %37 : vector<4x8x128xf32> to vector<32x128xf32>
    %c0_18 = arith.constant 0 : index
    %c0_19 = arith.constant 0 : index
    %39 = vector.load %arg7[%c0_18, %c0_19] : memref<64x32xbf16, #tpu.memory_space<vmem>>, vector<64x32xbf16>
    %40 = arith.truncf %38 : vector<32x128xf32> to vector<32x128xbf16>
    %cst_20 = arith.constant dense<0.000000e+00> : vector<64x128xf32>
    %41 = tpu.matmul %39, %40, %cst_20 {dimension_numbers = #tpu.dot_dimension_numbers<[1], [0], [0], [1], [0, 0, 1, 1], [], []>} : vector<64x32xbf16>, vector<32x128xbf16>, vector<64x128xf32> -> vector<64x128xf32>
    %42 = arith.addf %12, %41 : vector<64x128xf32>
    %c0_21 = arith.constant 0 : index
    %c0_22 = arith.constant 0 : index
    %43 = vector.load %arg8[%c0_21, %c0_22] : memref<64x1xf32, #tpu.memory_space<vmem>>, vector<64x1xf32>
    %44 = vector.broadcast %43 : vector<64x1xf32> to vector<64x128xf32>
    %45 = arith.addf %42, %44 : vector<64x128xf32>
    %cst_23 = arith.constant 0.000000e+00 : f32
    %46 = vector.broadcast %cst_23 : f32 to vector<64x128xf32>
    %47 = arith.maximumf %45, %46 : vector<64x128xf32>
    %c0_24 = arith.constant 0 : index
    %c0_25 = arith.constant 0 : index
    %48 = vector.load %arg9[%c0_24, %c0_25] : memref<32x64xbf16, #tpu.memory_space<vmem>>, vector<32x64xbf16>
    %49 = arith.truncf %47 : vector<64x128xf32> to vector<64x128xbf16>
    %cst_26 = arith.constant dense<0.000000e+00> : vector<32x128xf32>
    %50 = tpu.matmul %48, %49, %cst_26 {dimension_numbers = #tpu.dot_dimension_numbers<[1], [0], [0], [1], [0, 0, 1, 1], [], []>} : vector<32x64xbf16>, vector<64x128xbf16>, vector<32x128xf32> -> vector<32x128xf32>
    %c0_27 = arith.constant 0 : index
    %c0_28 = arith.constant 0 : index
    %51 = vector.load %arg10[%c0_27, %c0_28] : memref<32x1xf32, #tpu.memory_space<vmem>>, vector<32x1xf32>
    %52 = vector.broadcast %51 : vector<32x1xf32> to vector<32x128xf32>
    %53 = arith.addf %50, %52 : vector<32x128xf32>
    %54 = arith.addf %1, %53 : vector<32x128xf32>
    %c0_29 = arith.constant 0 : index
    %c0_30 = arith.constant 0 : index
    %c0_31 = arith.constant 0 : index
    %55 = vector.load %arg11[%c0_29, %c0_30, %c0_31] : memref<1x32x128xf32, #tpu.memory_space<vmem>>, vector<1x32x128xf32>
    %56 = vector.shape_cast %55 : vector<1x32x128xf32> to vector<32x128xf32>
    %57 = vector.shape_cast %54 : vector<32x128xf32> to vector<1x32x128xf32>
    tpu.vector_store %arg11[%c0_29, %c0_30, %c0_31], %57 {strides = array<i32>} : memref<1x32x128xf32, #tpu.memory_space<vmem>>, vector<1x32x128xf32>,
    return
  }
  func.func @transform_0(%arg0: i32) -> (i32, i32, i32) {
    %c0_i32 = arith.constant 0 : i32
    %c0_i32_0 = arith.constant 0 : i32
    %c0_i32_1 = arith.constant 0 : i32
    return %arg0, %c0_i32, %c0_i32_0 : i32, i32, i32
  }
  func.func @transform_1(%arg0: i32) -> (i32, i32, i32) {
    %c0_i32 = arith.constant 0 : i32
    %c0_i32_0 = arith.constant 0 : i32
    %c0_i32_1 = arith.constant 0 : i32
    return %arg0, %c0_i32, %c0_i32_0 : i32, i32, i32
  }
  func.func @transform_2(%arg0: i32) -> (i32, i32) {
    %c0_i32 = arith.constant 0 : i32
    %c0_i32_0 = arith.constant 0 : i32
    %c0_i32_1 = arith.constant 0 : i32
    return %c0_i32, %c0_i32_0 : i32, i32
  }
  func.func @transform_3(%arg0: i32) -> (i32, i32) {
    %c0_i32 = arith.constant 0 : i32
    %c0_i32_0 = arith.constant 0 : i32
    %c0_i32_1 = arith.constant 0 : i32
    return %c0_i32, %c0_i32_0 : i32, i32
  }
  func.func @transform_4(%arg0: i32) -> (i32, i32) {
    %c0_i32 = arith.constant 0 : i32
    %c0_i32_0 = arith.constant 0 : i32
    %c0_i32_1 = arith.constant 0 : i32
    return %c0_i32, %c0_i32_0 : i32, i32
  }
  func.func @transform_5(%arg0: i32) -> (i32, i32) {
    %c0_i32 = arith.constant 0 : i32
    %c0_i32_0 = arith.constant 0 : i32
    %c0_i32_1 = arith.constant 0 : i32
    return %c0_i32, %c0_i32_0 : i32, i32
  }
  func.func @transform_6(%arg0: i32) -> (i32, i32) {
    %c0_i32 = arith.constant 0 : i32
    %c0_i32_0 = arith.constant 0 : i32
    %c0_i32_1 = arith.constant 0 : i32
    return %c0_i32, %c0_i32_0 : i32, i32
  }
  func.func @transform_7(%arg0: i32) -> (i32, i32) {
    %c0_i32 = arith.constant 0 : i32
    %c0_i32_0 = arith.constant 0 : i32
    %c0_i32_1 = arith.constant 0 : i32
    return %c0_i32, %c0_i32_0 : i32, i32
  }
  func.func @transform_8(%arg0: i32) -> (i32, i32) {
    %c0_i32 = arith.constant 0 : i32
    %c0_i32_0 = arith.constant 0 : i32
    %c0_i32_1 = arith.constant 0 : i32
    return %c0_i32, %c0_i32_0 : i32, i32
  }
  func.func @transform_9(%arg0: i32) -> (i32, i32) {
    %c0_i32 = arith.constant 0 : i32
    %c0_i32_0 = arith.constant 0 : i32
    %c0_i32_1 = arith.constant 0 : i32
    return %c0_i32, %c0_i32_0 : i32, i32
  }
  func.func @transform_10(%arg0: i32) -> (i32, i32, i32) {
    %c0_i32 = arith.constant 0 : i32
    %c0_i32_0 = arith.constant 0 : i32
    %c0_i32_1 = arith.constant 0 : i32
    return %arg0, %c0_i32, %c0_i32_0 : i32, i32, i32
  }
}

</mosaic_0001>

<llo_original>
// kernel: attention_propagation.1
$region0: #{attention_propagation.1}
  #allocation0 [shape = 'u32[]', space=smem, size = 0x4, offset = 0x4, fixed_abs, tag = 'smem constant byte address 0x4 - core index']
  #allocation1 [shape = 'u32[144,128]{1,0:T(1,128)}', space=vmem, size = 0x12000, scoped, tag = 'internal scratch']
  %s0 = inlined_call_operand.vmem [shape: f32[2,32,128], index: 0, kind: input, shape index: {}]
  %s1 = inlined_call_operand.vmem [shape: f32[2,32,256], index: 1, kind: input, shape index: {}]
  %s2 = inlined_call_operand.vmem [shape: bf16[96,32], index: 2, kind: input, shape index: {}]
  %s3 = inlined_call_operand.vmem [shape: f32[32,1], index: 3, kind: input, shape index: {}]
  %s4 = inlined_call_operand.vmem [shape: bf16[64,32], index: 4, kind: input, shape index: {}]
  %s5 = inlined_call_operand.vmem [shape: f32[64,1], index: 5, kind: input, shape index: {}]
  %s6 = inlined_call_operand.vmem [shape: bf16[64,32], index: 6, kind: input, shape index: {}]
  %s7 = inlined_call_operand.vmem [shape: f32[64,1], index: 7, kind: input, shape index: {}]
  %s8 = inlined_call_operand.vmem [shape: bf16[32,64], index: 8, kind: input, shape index: {}]
  %s9 = inlined_call_operand.vmem [shape: f32[32,1], index: 9, kind: input, shape index: {}]
  %s10 = inlined_call_operand.hbm [shape: f32[2,32,128], index: 10, kind: output, shape index: {}]
  %s11 = sld [smem:[#allocation0]]
  $region73: #{attention_propagation.1} parent=0
    _
  %s13 = ssub.s32 1, %s11
  %s14 = scalar_select 0, %s13, %s11
  $region1: #{attention_propagation.1} parent=0
    #allocation2 [shape = 'u8[32768]{0}', space=vmem, size = 0x8000, scoped, tag = 'output window, operand 0']
    #allocation3 [shape = 's32[2]{0}', space=sflag, size = 0x8, scoped, tag = 'scoped memory for attention_propagation.1']
    %15 = vsyncpa [#allocation3], 0
    %s16 = scalar_lea.sflag [#allocation3], 1
    %17 = vsyncpa %s16, 0
    loop: start=0, step=1, limit=4
    $region2: #{attention_propagation.1} parent=1 // loop_pre_header
      _
    $region3: #{attention_propagation.1} parent=1 // loop_header
      %s19 = sphi 0, %s23
      %p20 = scmp.ge.s32.totalorder %s19, 4
      %s29 = sphi 0, %s31
      %s32 = sphi 0, %s29
      %s33 = sphi 0, %s32
      %s49 = sphi 0, %s33
      %s55 = sphi 0, %s57
      %s58 = sphi 0, %s55
      %s59 = sphi 0, %s58
      %s75 = sphi 0, %s59
      %s79 = sphi 0, %s79
      %s81 = sphi 0, %s79
      %s82 = sphi 0, %s81
      %s96 = sphi 0, %s82
      %s100 = sphi 0, %s100
      %s102 = sphi 0, %s100
      %s103 = sphi 0, %s102
      %s117 = sphi 0, %s103
      %s121 = sphi 0, %s121
      %s123 = sphi 0, %s121
      %s124 = sphi 0, %s123
      %s138 = sphi 0, %s124
      %s142 = sphi 0, %s142
      %s144 = sphi 0, %s142
      %s145 = sphi 0, %s144
      %s159 = sphi 0, %s145
      %s163 = sphi 0, %s163
      %s165 = sphi 0, %s163
      %s166 = sphi 0, %s165
      %s180 = sphi 0, %s166
      %s184 = sphi 0, %s184
      %s186 = sphi 0, %s184
      %s187 = sphi 0, %s186
      %s201 = sphi 0, %s187
      %s205 = sphi 0, %s205
      %s207 = sphi 0, %s205
      %s208 = sphi 0, %s207
      %s222 = sphi 0, %s208
      %s226 = sphi 0, %s226
      %s228 = sphi 0, %s226
      %s229 = sphi 0, %s228
      %s243 = sphi 0, %s229
      %s249 = sphi 0, %s251
      %s252 = sphi 0, %s249
      %s253 = sphi 0, %s252
      %s269 = sphi 0, %s253
    $region4: #{attention_propagation.1} parent=1 // loop_header_branch
      %22 = sbr.rel (%p20) target = $region8
    $region5: #{attention_propagation.1} parent=1 // loop_body
      %s24 = ssub.s32 %s19, 1
      %s25 = ssub.s32 %s19, 2
      %s26 = sadd.s32 %s19, 1
      %s27 = ssub.s32 %s19, %s26
      %p28 = scmp.eq.s32.totalorder %s27, 0
      %s30 = sadd.s32 %s29, 1
      %s31 = scalar_select %p28, %s29, %s30
      %p34 = pneg %p28
      %p35 = scmp.eq.s32.totalorder %s19, 1
      %p36 = por %p34, %p35
      %p37 = scmp.ne.s32.totalorder %s29, %s32
      %p38 = scmp.eq.s32.totalorder %s19, 0
      %p39 = por %p37, %p38
      %p40 = scmp.ne.s32.totalorder %s29, %s32
      %p41 = scmp.eq.s32.totalorder %s24, 1
      %p42 = por %p40, %p41
      %p43 = scmp.ne.s32.totalorder %s32, %s33
      %p44 = scmp.eq.s32.totalorder %s24, 0
      %p45 = por %p43, %p44
      %p46 = scmp.ne.s32.totalorder %s32, %s33
      %p47 = scmp.eq.s32.totalorder %s25, 1
      %p48 = por %p46, %p47
      %p50 = scmp.ne.s32.totalorder %s33, %s49
      %p51 = scmp.eq.s32.totalorder %s25, 0
      %p52 = por %p50, %p51
      %s53 = ssub.s32 %s19, %s26
      %p54 = scmp.eq.s32.totalorder %s53, 0
      %s56 = sadd.s32 %s55, 1
      %s57 = scalar_select %p54, %s55, %s56
      %p60 = pneg %p54
      %p61 = scmp.eq.s32.totalorder %s19, 1
      %p62 = por %p60, %p61
      %p63 = scmp.ne.s32.totalorder %s55, %s58
      %p64 = scmp.eq.s32.totalorder %s19, 0
      %p65 = por %p63, %p64
      %p66 = scmp.ne.s32.totalorder %s55, %s58
      %p67 = scmp.eq.s32.totalorder %s24, 1
      %p68 = por %p66, %p67
      %p69 = scmp.ne.s32.totalorder %s58, %s59
      %p70 = scmp.eq.s32.totalorder %s24, 0
      %p71 = por %p69, %p70
      %p72 = scmp.ne.s32.totalorder %s58, %s59
      %p73 = scmp.eq.s32.totalorder %s25, 1
      %p74 = por %p72, %p73
      %p76 = scmp.ne.s32.totalorder %s59, %s75
      %p77 = scmp.eq.s32.totalorder %s25, 0
      %p78 = por %p76, %p77
      %s80 = sadd.s32 %s79, 1
      %p83 = scmp.eq.s32.totalorder %s19, 1
      %p84 = scmp.ne.s32.totalorder %s79, %s81
      %p85 = scmp.eq.s32.totalorder %s19, 0
      %p86 = por %p84, %p85
      %p87 = scmp.ne.s32.totalorder %s79, %s81
      %p88 = scmp.eq.s32.totalorder %s24, 1
      %p89 = por %p87, %p88
      %p90 = scmp.ne.s32.totalorder %s81, %s82
      %p91 = scmp.eq.s32.totalorder %s24, 0
      %p92 = por %p90, %p91
      %p93 = scmp.ne.s32.totalorder %s81, %s82
      %p94 = scmp.eq.s32.totalorder %s25, 1
      %p95 = por %p93, %p94
      %p97 = scmp.ne.s32.totalorder %s82, %s96
      %p98 = scmp.eq.s32.totalorder %s25, 0
      %p99 = por %p97, %p98
      %s101 = sadd.s32 %s100, 1
      %p104 = scmp.eq.s32.totalorder %s19, 1
      %p105 = scmp.ne.s32.totalorder %s100, %s102
      %p106 = scmp.eq.s32.totalorder %s19, 0
      %p107 = por %p105, %p106
      %p108 = scmp.ne.s32.totalorder %s100, %s102
      %p109 = scmp.eq.s32.totalorder %s24, 1
      %p110 = por %p108, %p109
      %p111 = scmp.ne.s32.totalorder %s102, %s103
      %p112 = scmp.eq.s32.totalorder %s24, 0
      %p113 = por %p111, %p112
      %p114 = scmp.ne.s32.totalorder %s102, %s103
      %p115 = scmp.eq.s32.totalorder %s25, 1
      %p116 = por %p114, %p115
      %p118 = scmp.ne.s32.totalorder %s103, %s117
      %p119 = scmp.eq.s32.totalorder %s25, 0
      %p120 = por %p118, %p119
      %s122 = sadd.s32 %s121, 1
      %p125 = scmp.eq.s32.totalorder %s19, 1
      %p126 = scmp.ne.s32.totalorder %s121, %s123
      %p127 = scmp.eq.s32.totalorder %s19, 0
      %p128 = por %p126, %p127
      %p129 = scmp.ne.s32.totalorder %s121, %s123
      %p130 = scmp.eq.s32.totalorder %s24, 1
      %p131 = por %p129, %p130
      %p132 = scmp.ne.s32.totalorder %s123, %s124
      %p133 = scmp.eq.s32.totalorder %s24, 0
      %p134 = por %p132, %p133
      %p135 = scmp.ne.s32.totalorder %s123, %s124
      %p136 = scmp.eq.s32.totalorder %s25, 1
      %p137 = por %p135, %p136
      %p139 = scmp.ne.s32.totalorder %s124, %s138
      %p140 = scmp.eq.s32.totalorder %s25, 0
      %p141 = por %p139, %p140
      %s143 = sadd.s32 %s142, 1
      %p146 = scmp.eq.s32.totalorder %s19, 1
      %p147 = scmp.ne.s32.totalorder %s142, %s144
      %p148 = scmp.eq.s32.totalorder %s19, 0
      %p149 = por %p147, %p148
      %p150 = scmp.ne.s32.totalorder %s142, %s144
      %p151 = scmp.eq.s32.totalorder %s24, 1
      %p152 = por %p150, %p151
      %p153 = scmp.ne.s32.totalorder %s144, %s145
      %p154 = scmp.eq.s32.totalorder %s24, 0
      %p155 = por %p153, %p154
      %p156 = scmp.ne.s32.totalorder %s144, %s145
      %p157 = scmp.eq.s32.totalorder %s25, 1
      %p158 = por %p156, %p157
      %p160 = scmp.ne.s32.totalorder %s145, %s159
      %p161 = scmp.eq.s32.totalorder %s25, 0
      %p162 = por %p160, %p161
      %s164 = sadd.s32 %s163, 1
      %p167 = scmp.eq.s32.totalorder %s19, 1
      %p168 = scmp.ne.s32.totalorder %s163, %s165
      %p169 = scmp.eq.s32.totalorder %s19, 0
      %p170 = por %p168, %p169
      %p171 = scmp.ne.s32.totalorder %s163, %s165
      %p172 = scmp.eq.s32.totalorder %s24, 1
      %p173 = por %p171, %p172
      %p174 = scmp.ne.s32.totalorder %s165, %s166
      %p175 = scmp.eq.s32.totalorder %s24, 0
      %p176 = por %p174, %p175
      %p177 = scmp.ne.s32.totalorder %s165, %s166
      %p178 = scmp.eq.s32.totalorder %s25, 1
      %p179 = por %p177, %p178
      %p181 = scmp.ne.s32.totalorder %s166, %s180
      %p182 = scmp.eq.s32.totalorder %s25, 0
      %p183 = por %p181, %p182
      %s185 = sadd.s32 %s184, 1
      %p188 = scmp.eq.s32.totalorder %s19, 1
      %p189 = scmp.ne.s32.totalorder %s184, %s186
      %p190 = scmp.eq.s32.totalorder %s19, 0
      %p191 = por %p189, %p190
      %p192 = scmp.ne.s32.totalorder %s184, %s186
      %p193 = scmp.eq.s32.totalorder %s24, 1
      %p194 = por %p192, %p193
      %p195 = scmp.ne.s32.totalorder %s186, %s187
      %p196 = scmp.eq.s32.totalorder %s24, 0
      %p197 = por %p195, %p196
      %p198 = scmp.ne.s32.totalorder %s186, %s187
      %p199 = scmp.eq.s32.totalorder %s25, 1
      %p200 = por %p198, %p199
      %p202 = scmp.ne.s32.totalorder %s187, %s201
      %p203 = scmp.eq.s32.totalorder %s25, 0
      %p204 = por %p202, %p203
      %s206 = sadd.s32 %s205, 1
      %p209 = scmp.eq.s32.totalorder %s19, 1
      %p210 = scmp.ne.s32.totalorder %s205, %s207
      %p211 = scmp.eq.s32.totalorder %s19, 0
      %p212 = por %p210, %p211
      %p213 = scmp.ne.s32.totalorder %s205, %s207
      %p214 = scmp.eq.s32.totalorder %s24, 1
      %p215 = por %p213, %p214
      %p216 = scmp.ne.s32.totalorder %s207, %s208
      %p217 = scmp.eq.s32.totalorder %s24, 0
      %p218 = por %p216, %p217
      %p219 = scmp.ne.s32.totalorder %s207, %s208
      %p220 = scmp.eq.s32.totalorder %s25, 1
      %p221 = por %p219, %p220
      %p223 = scmp.ne.s32.totalorder %s208, %s222
      %p224 = scmp.eq.s32.totalorder %s25, 0
      %p225 = por %p223, %p224
      %s227 = sadd.s32 %s226, 1
      %p230 = scmp.eq.s32.totalorder %s19, 1
      %p231 = scmp.ne.s32.totalorder %s226, %s228
      %p232 = scmp.eq.s32.totalorder %s19, 0
      %p233 = por %p231, %p232
      %p234 = scmp.ne.s32.totalorder %s226, %s228
      %p235 = scmp.eq.s32.totalorder %s24, 1
      %p236 = por %p234, %p235
      %p237 = scmp.ne.s32.totalorder %s228, %s229
      %p238 = scmp.eq.s32.totalorder %s24, 0
      %p239 = por %p237, %p238
      %p240 = scmp.ne.s32.totalorder %s228, %s229
      %p241 = scmp.eq.s32.totalorder %s25, 1
      %p242 = por %p240, %p241
      %p244 = scmp.ne.s32.totalorder %s229, %s243
      %p245 = scmp.eq.s32.totalorder %s25, 0
      %p246 = por %p244, %p245
      %s247 = ssub.s32 %s19, %s26
      %p248 = scmp.eq.s32.totalorder %s247, 0
      %s250 = sadd.s32 %s249, 1
      %s251 = scalar_select %p248, %s249, %s250
      %p254 = pneg %p248
      %p255 = scmp.eq.s32.totalorder %s19, 1
      %p256 = por %p254, %p255
      %p257 = scmp.ne.s32.totalorder %s249, %s252
      %p258 = scmp.eq.s32.totalorder %s19, 0
      %p259 = por %p257, %p258
      %p260 = scmp.ne.s32.totalorder %s249, %s252
      %p261 = scmp.eq.s32.totalorder %s24, 1
      %p262 = por %p260, %p261
      %p263 = scmp.ne.s32.totalorder %s252, %s253
      %p264 = scmp.eq.s32.totalorder %s24, 0
      %p265 = por %p263, %p264
      %p266 = scmp.ne.s32.totalorder %s252, %s253
      %p267 = scmp.eq.s32.totalorder %s25, 1
      %p268 = por %p266, %p267
      %p270 = scmp.ne.s32.totalorder %s253, %s269
      %p271 = scmp.eq.s32.totalorder %s25, 0
      %p272 = por %p270, %p271
      %p273 = scmp.le.s32.totalorder 1, %s19
      %p274 = scmp.lt.s32.totalorder %s19, 3
      %p275 = pnand %p273, %p274
      %p276 = pneg %p275
      // Predicated region
      $region9: #{attention_propagation.1} parent=5 // pred_check
        _
      $region10: #{attention_propagation.1} parent=5 // pred_check_branch
        %278 = sbr.rel (%p275) target = $region12
      $region11: #{attention_propagation.1} parent=5 // pred_region
        %s279 = ssub.s32 %s19, 1
        // Predicated region
        $region13: #{attention_propagation.1} parent=11 // pred_check
          %p280 = pneg %p92
        $region14: #{attention_propagation.1} parent=11 // pred_check_branch
          %282 = sbr.rel (%p280) target = $region16
        $region15: #{attention_propagation.1} parent=11 // pred_region
          _
        $region16: #{attention_propagation.1} parent=11 // pred_fallthru
          _
        // Predicated region
        $region17: #{attention_propagation.1} parent=11 // pred_check
          %p283 = pneg %p113
        $region18: #{attention_propagation.1} parent=11 // pred_check_branch
          %285 = sbr.rel (%p283) target = $region20
        $region19: #{attention_propagation.1} parent=11 // pred_region
          _
        $region20: #{attention_propagation.1} parent=11 // pred_fallthru
          _
        // Predicated region
        $region21: #{attention_propagation.1} parent=11 // pred_check
          %p286 = pneg %p134
        $region22: #{attention_propagation.1} parent=11 // pred_check_branch
          %288 = sbr.rel (%p286) target = $region24
        $region23: #{attention_propagation.1} parent=11 // pred_region
          _
        $region24: #{attention_propagation.1} parent=11 // pred_fallthru
          _
        // Predicated region
        $region25: #{attention_propagation.1} parent=11 // pred_check
          %p289 = pneg %p155
        $region26: #{attention_propagation.1} parent=11 // pred_check_branch
          %291 = sbr.rel (%p289) target = $region28
        $region27: #{attention_propagation.1} parent=11 // pred_region
          _
        $region28: #{attention_propagation.1} parent=11 // pred_fallthru
          _
        // Predicated region
        $region29: #{attention_propagation.1} parent=11 // pred_check
          %p292 = pneg %p176
        $region30: #{attention_propagation.1} parent=11 // pred_check_branch
          %294 = sbr.rel (%p292) target = $region32
        $region31: #{attention_propagation.1} parent=11 // pred_region
          _
        $region32: #{attention_propagation.1} parent=11 // pred_fallthru
          _
        // Predicated region
        $region33: #{attention_propagation.1} parent=11 // pred_check
          %p295 = pneg %p197
        $region34: #{attention_propagation.1} parent=11 // pred_check_branch
          %297 = sbr.rel (%p295) target = $region36
        $region35: #{attention_propagation.1} parent=11 // pred_region
          _
        $region36: #{attention_propagation.1} parent=11 // pred_fallthru
          _
        // Predicated region
        $region37: #{attention_propagation.1} parent=11 // pred_check
          %p298 = pneg %p218
        $region38: #{attention_propagation.1} parent=11 // pred_check_branch
          %300 = sbr.rel (%p298) target = $region40
        $region39: #{attention_propagation.1} parent=11 // pred_region
          _
        $region40: #{attention_propagation.1} parent=11 // pred_fallthru
          _
        // Predicated region
        $region41: #{attention_propagation.1} parent=11 // pred_check
          %p301 = pneg %p239
        $region42: #{attention_propagation.1} parent=11 // pred_check_branch
          %303 = sbr.rel (%p301) target = $region44
        $region43: #{attention_propagation.1} parent=11 // pred_region
          _
        $region44: #{attention_propagation.1} parent=11 // pred_fallthru
          _
      $region12: #{attention_propagation.1} parent=5 // pred_fallthru
        _
      %p304 = scmp.lt.s32.totalorder %s19, 2
      // Predicated region
      $region45: #{attention_propagation.1} parent=5 // pred_check
        %p305 = pneg %p304
      $region46: #{attention_propagation.1} parent=5 // pred_check_branch
        %307 = sbr.rel (%p305) target = $region48
      $region47: #{attention_propagation.1} parent=5 // pred_region
        // Predicated region
        $region49: #{attention_propagation.1} parent=47 // pred_check
          %p308 = pneg %p39
        $region50: #{attention_propagation.1} parent=47 // pred_check_branch
          %310 = sbr.rel (%p308) target = $region52
        $region51: #{attention_propagation.1} parent=47 // pred_region
          %p311 = scmp.lt.s32.totalorder %s19, 1
          %s312 = scalar_select %p311, %s19, 1
          %s313 = smul.addr %s312, 4
          %s314 = smul.addr %s313, 8
          %s315 = scalar_lea.vmem %s0, %s314
        $region52: #{attention_propagation.1} parent=47 // pred_fallthru
          _
        // Predicated region
        $region53: #{attention_propagation.1} parent=47 // pred_check
          %p316 = pneg %p65
        $region54: #{attention_propagation.1} parent=47 // pred_check_branch
          %318 = sbr.rel (%p316) target = $region56
        $region55: #{attention_propagation.1} parent=47 // pred_region
          %p319 = scmp.lt.s32.totalorder %s19, 1
          %s320 = scalar_select %p319, %s19, 1
          %s321 = smul.addr %s320, 8
          %s322 = smul.addr %s321, 8
          %s323 = scalar_lea.vmem %s1, %s322
        $region56: #{attention_propagation.1} parent=47 // pred_fallthru
          _
      $region48: #{attention_propagation.1} parent=5 // pred_fallthru
        _
      %p324 = scmp.le.s32.totalorder 1, %s19
      %p325 = scmp.lt.s32.totalorder %s19, 3
      %p326 = pnand %p324, %p325
      %p327 = pneg %p326
      // Predicated region
      $region57: #{attention_propagation.1} parent=5 // pred_check
        _
      $region58: #{attention_propagation.1} parent=5 // pred_check_branch
        %329 = sbr.rel (%p326) target = $region60
      $region59: #{attention_propagation.1} parent=5 // pred_region
        %s330 = ssub.s32 %s19, 1
        %p331 = scmp.lt.s32.totalorder %s24, 1
        %s332 = scalar_select %p331, %s24, 1
        %s333 = smul.addr %s332, 4
        %s334 = smul.addr %s333, 8
        %s335 = scalar_lea.vmem %s0, %s334
        %p336 = pneg %p45
        %p337 = pneg %p42
        %p338 = scmp.lt.s32.totalorder %s24, 1
        %s339 = scalar_select %p338, %s24, 1
        %s340 = smul.addr %s339, 8
        %s341 = smul.addr %s340, 8
        %s342 = scalar_lea.vmem %s1, %s341
        %p343 = pneg %p71
        %p344 = pneg %p68
        %p345 = pneg %p92
        %p346 = pneg %p89
        %p347 = pneg %p113
        %p348 = pneg %p110
        %p349 = pneg %p134
        %p350 = pneg %p131
        %p351 = pneg %p155
        %p352 = pneg %p152
        %p353 = pneg %p176
        %p354 = pneg %p173
        %p355 = pneg %p197
        %p356 = pneg %p194
        %p357 = pneg %p218
        %p358 = pneg %p215
        %p359 = pneg %p239
        %p360 = pneg %p236
        %p361 = pneg %p265
        %p362 = pneg %p262
        %s363 = sand.u32 %s252, 1
        %s364 = scalar_lea.sflag [#allocation3], %s363
        %s365 = sand.u32 %s252, 1
        %s366 = smul.addr %s365, 32
        %s367 = scalar_lea.vmem [#allocation2], %s366
        %p368 = scmp.lt.s32.totalorder %s24, 1
        %s369 = scalar_select %p368, %s24, 1
        %s370 = smul.addr %s369, 4
        %s371 = smul.addr %s370, 8
        %s372 = scalar_lea.vmem %s0, %s371
        %p373 = scmp.lt.s32.totalorder %s24, 1
        %s374 = scalar_select %p373, %s24, 1
        %s375 = smul.addr %s374, 8
        %s376 = smul.addr %s375, 8
        %s377 = scalar_lea.vmem %s1, %s376
        %v379 = vld [vmem:[%s372] sm:$0xff]
        %v380 = vld [vmem:[%s372 + $0x8] sm:$0xff]
        %v381 = vld [vmem:[%s372 + $0x10] sm:$0xff]
        %v382 = vld [vmem:[%s372 + $0x18] sm:$0xff]
        %v383 = vpack.c.bf16 %v380, %v379
        %v384 = vpack.c.bf16 %v382, %v381
        %v385 = vld [vmem:[%s377] sm:$0xff]
        %v386 = vld [vmem:[%s377 + $0x8] sm:$0xff]
        %v387 = vld [vmem:[%s377 + $0x10] sm:$0xff]
        %v388 = vld [vmem:[%s377 + $0x18] sm:$0xff]
        %v389 = vld [vmem:[%s377 + $0x20] sm:$0xff]
        %v390 = vld [vmem:[%s377 + $0x28] sm:$0xff]
        %v391 = vld [vmem:[%s377 + $0x30] sm:$0xff]
        %v392 = vld [vmem:[%s377 + $0x38] sm:$0xff]
        %v393 = vpack.c.bf16 %v387, %v385
        %v394 = vpack.c.bf16 %v388, %v386
        %v395 = vpack.c.bf16 %v391, %v389
        %v396 = vpack.c.bf16 %v392, %v390
        %v397 = vld [vmem:[%s2] sm:$0xf]
        %v398 = vld [vmem:[%s2 + $0x4] sm:$0xf]
        %v399 = vld [vmem:[%s2 + $0x8] sm:$0xf]
        %v400 = vld [vmem:[%s2 + $0xc] sm:$0xf]
        %v401 = vld [vmem:[%s2 + $0x10] sm:$0xf]
        %v402 = vld [vmem:[%s2 + $0x14] sm:$0xf]
        %v403 = vld [vmem:[%s2 + $0x18] sm:$0xf]
        %v404 = vld [vmem:[%s2 + $0x1c] sm:$0xf]
        %v405 = vld [vmem:[%s2 + $0x20] sm:$0xf]
        %v406 = vld [vmem:[%s2 + $0x24] sm:$0xf]
        %v407 = vld [vmem:[%s2 + $0x28] sm:$0xf]
        %v408 = vld [vmem:[%s2 + $0x2c] sm:$0xf]
        %v421 = vunpack.c.l.b16 %v397
        %v422 = vunpack.c.l.b16 %v398
        %v423 = vunpack.c.l.b16 %v399
        %v424 = vunpack.c.l.b16 %v400
        %v425 = vunpack.c.l.b16 %v401
        %v426 = vunpack.c.l.b16 %v402
        %v427 = vunpack.c.l.b16 %v403
        %v428 = vunpack.c.l.b16 %v404
        %v429 = vunpack.c.l.b16 %v405
        %v430 = vunpack.c.l.b16 %v406
        %v431 = vunpack.c.l.b16 %v407
        %v432 = vunpack.c.l.b16 %v408
        %v433 = vpack.c.b16 %v422, %v421
        %v434 = vpack.c.b16 %v424, %v423
        %v435 = vpack.c.b16 %v426, %v425
        %v436 = vpack.c.b16 %v428, %v427
        %v437 = vpack.c.b16 %v430, %v429
        %v438 = vpack.c.b16 %v432, %v431
        %vm439 = vcmask 261120
        %v441 = vsel %vm439, %v433, 0
        %v444 = vsel %vm439, %v434, 0
        %v447 = vsel %vm439, %v435, 0
        %v450 = vsel %vm439, %v436, 0
        %v453 = vsel %vm439, %v437, 0
        %v456 = vsel %vm439, %v438, 0
        %458 = vmatprep.subr.bf16.mxu0 0
        %459 = vmatpush1.bf16.msra.mxu0 %v383
        %460 = vmatprep.subr.bf16.mxu0 0
        %461 = vmatpush1.bf16.msra.mxu0 %v384
        %462 = vmatprep.subr.bf16.mxu0 0
        %463 = vmatpush1.bf16.msra.mxu0 0
        %464 = vmatprep.subr.bf16.mxu0 0
        %465 = vmatpush1.bf16.msra.mxu0 0
        %466 = vmatprep.subr.bf16.mxu0 0
        %467 = vmatpush1.bf16.msra.mxu0 0
        %468 = vmatprep.subr.bf16.mxu0 0
        %469 = vmatpush1.bf16.msra.mxu0 0
        %470 = vmatprep.subr.bf16.mxu0 0
        %471 = vmatpush1.bf16.msra.mxu0 0
        %472 = vmatprep.subr.bf16.mxu0 0
        %473 = vmatpush1.bf16.msra.mxu0 0
        %474 = vmatprep.subr.bf16.mxu0 0
        %475 = vmatpush1.bf16.msra.mxu0 0
        %476 = vmatprep.subr.bf16.mxu0 0
        %477 = vmatpush1.bf16.msra.mxu0 0
        %478 = vmatprep.subr.bf16.mxu0 0
        %479 = vmatpush1.bf16.msra.mxu0 0
        %480 = vmatprep.subr.bf16.mxu0 0
        %481 = vmatpush1.bf16.msra.mxu0 0
        %482 = vmatprep.subr.bf16.mxu0 0
        %483 = vmatpush1.bf16.msra.mxu0 0
        %484 = vmatprep.subr.bf16.mxu0 0
        %485 = vmatpush1.bf16.msra.mxu0 0
        %486 = vmatprep.subr.bf16.mxu0 0
        %487 = vmatpush1.bf16.msra.mxu0 0
        %488 = vmatprep.subr.bf16.mxu0 0
        %489 = vmatpush1.bf16.msra.mxu0 0
        %490 = vmatprep.mubr.bf16.mxu0 0
        %491 = vmatmul.mubr.bf16.gmra.mrb[0].mxu0 %v441
        %v492 = vpop.f32.mrb[0].mxu0
        %v493 = vadd.f32 0.0, %v492
        %v494 = vpop.f32.mrb[0].mxu0
        %v495 = vpop.f32.mrb[0].mxu0
        %v496 = vadd.f32 0.0, %v495
        %v497 = vpop.f32.mrb[0].mxu0
        %498 = vmatprep.mubr.bf16.mxu0 0
        %499 = vmatmul.mubr.bf16.gmra.mrb[0].mxu0 %v444
        %v500 = vpop.f32.mrb[0].mxu0
        %v501 = vadd.f32 0.0, %v500
        %v502 = vpop.f32.mrb[0].mxu0
        %v503 = vpop.f32.mrb[0].mxu0
        %v504 = vadd.f32 0.0, %v503
        %v505 = vpop.f32.mrb[0].mxu0
        %506 = vmatprep.mubr.bf16.mxu0 0
        %507 = vmatmul.mubr.bf16.gmra.mrb[0].mxu0 %v447
        %v508 = vpop.f32.mrb[0].mxu0
        %v509 = vadd.f32 0.0, %v508
        %v510 = vpop.f32.mrb[0].mxu0
        %v511 = vpop.f32.mrb[0].mxu0
        %v512 = vadd.f32 0.0, %v511
        %v513 = vpop.f32.mrb[0].mxu0
        %514 = vmatprep.mubr.bf16.mxu0 0
        %515 = vmatmul.mubr.bf16.gmra.mrb[0].mxu0 %v450
        %v516 = vpop.f32.mrb[0].mxu0
        %v517 = vadd.f32 0.0, %v516
        %v518 = vpop.f32.mrb[0].mxu0
        %v519 = vpop.f32.mrb[0].mxu0
        %v520 = vadd.f32 0.0, %v519
        %v521 = vpop.f32.mrb[0].mxu0
        %522 = vmatprep.mubr.bf16.mxu0 0
        %523 = vmatmul.mubr.bf16.gmra.mrb[0].mxu0 %v453
        %v524 = vpop.f32.mrb[0].mxu0
        %v525 = vadd.f32 0.0, %v524
        %v526 = vpop.f32.mrb[0].mxu0
        %v527 = vpop.f32.mrb[0].mxu0
        %v528 = vadd.f32 0.0, %v527
        %v529 = vpop.f32.mrb[0].mxu0
        %530 = vmatprep.mubr.bf16.mxu0 0
        %531 = vmatmul.mubr.bf16.gmra.mrb[0].mxu0 %v456
        %v532 = vpop.f32.mrb[0].mxu0
        %v533 = vadd.f32 0.0, %v532
        %v534 = vpop.f32.mrb[0].mxu0
        %v535 = vpop.f32.mrb[0].mxu0
        %v536 = vadd.f32 0.0, %v535
        %v537 = vpop.f32.mrb[0].mxu0
        %538 = vdwg.mxu0
        %v539 = vld [vmem:[%s3] sm:$0xff]
        %v540 = vld [vmem:[%s3 + $0x8] sm:$0xff]
        %v541 = vld [vmem:[%s3 + $0x10] sm:$0xff]
        %v542 = vld [vmem:[%s3 + $0x18] sm:$0xff]
        %544 = vset.pattern.permute.xlu0 0
        %545 = vperm.xlu0 %544, %v539
        %v546 = vpop.permute.xlu0 %545
        %549 = vset.pattern.permute.xlu0 0
        %550 = vperm.xlu0 %549, %v540
        %v551 = vpop.permute.xlu0 %550
        %554 = vset.pattern.permute.xlu0 0
        %555 = vperm.xlu0 %554, %v541
        %v556 = vpop.permute.xlu0 %555
        %559 = vset.pattern.permute.xlu0 0
        %560 = vperm.xlu0 %559, %v542
        %v561 = vpop.permute.xlu0 %560
        %v563 = vadd.f32 %v493, %v546
        %v564 = vadd.f32 %v496, %v551
        %v565 = vadd.f32 %v501, %v556
        %v566 = vadd.f32 %v504, %v561
        %v567 = vld [vmem:[%s4] sm:$0xf]
        %v568 = vld [vmem:[%s4 + $0x4] sm:$0xf]
        %v569 = vld [vmem:[%s4 + $0x8] sm:$0xf]
        %v570 = vld [vmem:[%s4 + $0xc] sm:$0xf]
        %v571 = vld [vmem:[%s4 + $0x10] sm:$0xf]
        %v572 = vld [vmem:[%s4 + $0x14] sm:$0xf]
        %v573 = vld [vmem:[%s4 + $0x18] sm:$0xf]
        %v574 = vld [vmem:[%s4 + $0x1c] sm:$0xf]
        %v575 = vld [vmem:[%s5] sm:$0xff]
        %v576 = vld [vmem:[%s5 + $0x8] sm:$0xff]
        %v577 = vld [vmem:[%s5 + $0x10] sm:$0xff]
        %v578 = vld [vmem:[%s5 + $0x18] sm:$0xff]
        %v579 = vld [vmem:[%s5 + $0x20] sm:$0xff]
        %v580 = vld [vmem:[%s5 + $0x28] sm:$0xff]
        %v581 = vld [vmem:[%s5 + $0x30] sm:$0xff]
        %v582 = vld [vmem:[%s5 + $0x38] sm:$0xff]
        %584 = vset.pattern.permute.xlu0 0
        %585 = vperm.xlu0 %584, %v575
        %v586 = vpop.permute.xlu0 %585
        %589 = vset.pattern.permute.xlu0 0
        %590 = vperm.xlu0 %589, %v576
        %v591 = vpop.permute.xlu0 %590
        %594 = vset.pattern.permute.xlu0 0
        %595 = vperm.xlu0 %594, %v577
        %v596 = vpop.permute.xlu0 %595
        %599 = vset.pattern.permute.xlu0 0
        %600 = vperm.xlu0 %599, %v578
        %v601 = vpop.permute.xlu0 %600
        %604 = vset.pattern.permute.xlu0 0
        %605 = vperm.xlu0 %604, %v579
        %v606 = vpop.permute.xlu0 %605
        %609 = vset.pattern.permute.xlu0 0
        %610 = vperm.xlu0 %609, %v580
        %v611 = vpop.permute.xlu0 %610
        %614 = vset.pattern.permute.xlu0 0
        %615 = vperm.xlu0 %614, %v581
        %v616 = vpop.permute.xlu0 %615
        %619 = vset.pattern.permute.xlu0 0
        %620 = vperm.xlu0 %619, %v582
        %v621 = vpop.permute.xlu0 %620
        %v631 = vunpack.c.l.b16 %v567
        %v632 = vunpack.c.l.b16 %v568
        %v633 = vunpack.c.l.b16 %v569
        %v634 = vunpack.c.l.b16 %v570
        %v635 = vunpack.c.l.b16 %v571
        %v636 = vunpack.c.l.b16 %v572
        %v637 = vunpack.c.l.b16 %v573
        %v638 = vunpack.c.l.b16 %v574
        %v639 = vpack.c.b16 %v632, %v631
        %v640 = vpack.c.b16 %v634, %v633
        %v641 = vpack.c.b16 %v636, %v635
        %v642 = vpack.c.b16 %v638, %v637
        %v644 = vsel %vm439, %v639, 0
        %v647 = vsel %vm439, %v640, 0
        %v650 = vsel %vm439, %v641, 0
        %v653 = vsel %vm439, %v642, 0
        %655 = vmatprep.subr.bf16.mxu0 %v394
        %656 = vmatpush1.bf16.msra.mxu0 %v393
        %657 = vmatprep.subr.bf16.mxu0 %v396
        %658 = vmatpush1.bf16.msra.mxu0 %v395
        %659 = vmatprep.subr.bf16.mxu0 0
        %660 = vmatpush1.bf16.msra.mxu0 0
        %661 = vmatprep.subr.bf16.mxu0 0
        %662 = vmatpush1.bf16.msra.mxu0 0
        %663 = vmatprep.subr.bf16.mxu0 0
        %664 = vmatpush1.bf16.msra.mxu0 0
        %665 = vmatprep.subr.bf16.mxu0 0
        %666 = vmatpush1.bf16.msra.mxu0 0
        %667 = vmatprep.subr.bf16.mxu0 0
        %668 = vmatpush1.bf16.msra.mxu0 0
        %669 = vmatprep.subr.bf16.mxu0 0
        %670 = vmatpush1.bf16.msra.mxu0 0
        %671 = vmatprep.subr.bf16.mxu0 0
        %672 = vmatpush1.bf16.msra.mxu0 0
        %673 = vmatprep.subr.bf16.mxu0 0
        %674 = vmatpush1.bf16.msra.mxu0 0
        %675 = vmatprep.subr.bf16.mxu0 0
        %676 = vmatpush1.bf16.msra.mxu0 0
        %677 = vmatprep.subr.bf16.mxu0 0
        %678 = vmatpush1.bf16.msra.mxu0 0
        %679 = vmatprep.subr.bf16.mxu0 0
        %680 = vmatpush1.bf16.msra.mxu0 0
        %681 = vmatprep.subr.bf16.mxu0 0
        %682 = vmatpush1.bf16.msra.mxu0 0
        %683 = vmatprep.subr.bf16.mxu0 0
        %684 = vmatpush1.bf16.msra.mxu0 0
        %685 = vmatprep.subr.bf16.mxu0 0
        %686 = vmatpush1.bf16.msra.mxu0 0
        %687 = vmatprep.mubr.bf16.mxu0 0
        %688 = vmatmul.mubr.bf16.gmra.mrb[0].mxu0 %v644
        %v689 = vpop.f32.mrb[0].mxu0
        %v690 = vadd.f32 %v586, %v689
        %v691 = vpop.f32.mrb[0].mxu0
        %v692 = vadd.f32 %v586, %v691
        %v693 = vpop.f32.mrb[0].mxu0
        %v694 = vadd.f32 %v591, %v693
        %v695 = vpop.f32.mrb[0].mxu0
        %v696 = vadd.f32 %v591, %v695
        %697 = vmatprep.mubr.bf16.mxu0 0
        %698 = vmatmul.mubr.bf16.gmra.mrb[0].mxu0 %v647
        %v699 = vpop.f32.mrb[0].mxu0
        %v700 = vadd.f32 %v596, %v699
        %v701 = vpop.f32.mrb[0].mxu0
        %v702 = vadd.f32 %v596, %v701
        %v703 = vpop.f32.mrb[0].mxu0
        %v704 = vadd.f32 %v601, %v703
        %v705 = vpop.f32.mrb[0].mxu0
        %v706 = vadd.f32 %v601, %v705
        %707 = vmatprep.mubr.bf16.mxu0 0
        %708 = vmatmul.mubr.bf16.gmra.mrb[0].mxu0 %v650
        %v709 = vpop.f32.mrb[0].mxu0
        %v710 = vadd.f32 %v606, %v709
        %v711 = vpop.f32.mrb[0].mxu0
        %v712 = vadd.f32 %v606, %v711
        %v713 = vpop.f32.mrb[0].mxu0
        %v714 = vadd.f32 %v611, %v713
        %v715 = vpop.f32.mrb[0].mxu0
        %v716 = vadd.f32 %v611, %v715
        %717 = vmatprep.mubr.bf16.mxu0 0
        %718 = vmatmul.mubr.bf16.gmra.mrb[0].mxu0 %v653
        %v719 = vpop.f32.mrb[0].mxu0
        %v720 = vadd.f32 %v616, %v719
        %v721 = vpop.f32.mrb[0].mxu0
        %v722 = vadd.f32 %v616, %v721
        %v723 = vpop.f32.mrb[0].mxu0
        %v724 = vadd.f32 %v621, %v723
        %v725 = vpop.f32.mrb[0].mxu0
        %v726 = vadd.f32 %v621, %v725
        %727 = vdwg.mxu0
        %v728 = vpack.c.bf16 %v564, %v563
        %v729 = vpack.c.bf16 %v566, %v565
        %v732 = vunpack.c.l.b16 %v728
        %v733 = vunpack.c.h.b16 %v728
        %v734 = vunpack.c.l.b16 %v729
        %v735 = vunpack.c.h.b16 %v729
        %v736 = vpack.c.b16 %v732, %v732
        %v737 = vpack.c.b16 %v733, %v733
        %v738 = vpack.c.b16 %v734, %v734
        %v739 = vpack.c.b16 %v735, %v735
        %v744 = vpack.c.bf16 %v694, %v690
        %v745 = vpack.c.bf16 %v696, %v692
        %v746 = vpack.c.bf16 %v704, %v700
        %v747 = vpack.c.bf16 %v706, %v702
        %v748 = vpack.c.bf16 %v714, %v710
        %v749 = vpack.c.bf16 %v716, %v712
        %v750 = vpack.c.bf16 %v724, %v720
        %v751 = vpack.c.bf16 %v726, %v722
        %v756 = vunpack.c.l.b16 %v744
        %v757 = vunpack.c.l.b16 %v745
        %v758 = vunpack.c.h.b16 %v744
        %v759 = vunpack.c.h.b16 %v745
        %v760 = vunpack.c.l.b16 %v746
        %v761 = vunpack.c.l.b16 %v747
        %v762 = vunpack.c.h.b16 %v746
        %v763 = vunpack.c.h.b16 %v747
        %v768 = vunpack.c.l.b16 %v748
        %v769 = vunpack.c.l.b16 %v749
        %v770 = vunpack.c.h.b16 %v748
        %v771 = vunpack.c.h.b16 %v749
        %v772 = vunpack.c.l.b16 %v750
        %v773 = vunpack.c.l.b16 %v751
        %v774 = vunpack.c.h.b16 %v750
        %v775 = vunpack.c.h.b16 %v751
        %776 = vxpose.xlu0.c.b16.start [1/8] %v736, 128
        %777 = vxpose.xlu0.c.b16.cont [2/8] 0, 128
        %778 = vxpose.xlu0.c.b16.cont [3/8] 0, 128
        %779 = vxpose.xlu0.c.b16.cont [4/8] 0, 128
        %780 = vxpose.xlu0.c.b16.cont [5/8] 0, 128
        %781 = vxpose.xlu0.c.b16.cont [6/8] 0, 128
        %782 = vxpose.xlu0.c.b16.cont [7/8] 0, 128
        %783 = vxpose.xlu0.c.b16.end [8/8] 0, 128
        %v784 = vpop.trf.xlu0
        %v785 = vpop.trf.xlu0
        %v786 = vpop.trf.xlu0
        %v787 = vpop.trf.xlu0
        %v788 = vpop.trf.xlu0
        %v789 = vpop.trf.xlu0
        %v790 = vpop.trf.xlu0
        %v791 = vpop.trf.xlu0
        %v792 = vpack.c.b16 %v756, %v756
        %v793 = vpack.c.b16 %v757, %v757
        %vm794 = vcmask 64512
        %v796 = vsel %vm794, %v784, 0
        %v799 = vsel %vm794, %v785, 0
        %v802 = vsel %vm794, %v786, 0
        %v805 = vsel %vm794, %v787, 0
        %v808 = vsel %vm794, %v788, 0
        %v811 = vsel %vm794, %v789, 0
        %v814 = vsel %vm794, %v790, 0
        %v817 = vsel %vm794, %v791, 0
        %vm819 = vcmask 1043456
        %v821 = vsel %vm819, %v792, 0
        %v824 = vsel %vm819, %v793, 0
        %826 = vmatprep.subr.bf16.mxu0 %v824
        %827 = vmatpush1.bf16.msra.mxu0 %v821
        %828 = vmatprep.subr.bf16.mxu0 0
        %829 = vmatpush1.bf16.msra.mxu0 0
        %830 = vmatprep.subr.bf16.mxu0 0
        %831 = vmatpush1.bf16.msra.mxu0 0
        %832 = vmatprep.subr.bf16.mxu0 0
        %833 = vmatpush1.bf16.msra.mxu0 0
        %834 = vmatprep.subr.bf16.mxu0 0
        %835 = vmatpush1.bf16.msra.mxu0 0
        %836 = vmatprep.subr.bf16.mxu0 0
        %837 = vmatpush1.bf16.msra.mxu0 0
        %838 = vmatprep.subr.bf16.mxu0 0
        %839 = vmatpush1.bf16.msra.mxu0 0
        %840 = vmatprep.subr.bf16.mxu0 0
        %841 = vmatpush1.bf16.msra.mxu0 0
        %842 = vmatprep.subr.bf16.mxu0 0
        %843 = vmatpush1.bf16.msra.mxu0 0
        %844 = vmatprep.subr.bf16.mxu0 0
        %845 = vmatpush1.bf16.msra.mxu0 0
        %846 = vmatprep.subr.bf16.mxu0 0
        %847 = vmatpush1.bf16.msra.mxu0 0
        %848 = vmatprep.subr.bf16.mxu0 0
        %849 = vmatpush1.bf16.msra.mxu0 0
        %850 = vmatprep.subr.bf16.mxu0 0
        %851 = vmatpush1.bf16.msra.mxu0 0
        %852 = vmatprep.subr.bf16.mxu0 0
        %853 = vmatpush1.bf16.msra.mxu0 0
        %854 = vmatprep.subr.bf16.mxu0 0
        %855 = vmatpush1.bf16.msra.mxu0 0
        %856 = vmatprep.subr.bf16.mxu0 0
        %857 = vmatpush1.bf16.msra.mxu0 0
        %858 = vmatprep.mubr.bf16.mxu0 0
        %859 = vmatmul.mubr.bf16.gmra.mrb[0].mxu0 %v796
        %v860 = vpop.f32.mrb[0].mxu0
        %v861 = vadd.f32 0.0, %v860
        %v862 = vpop.f32.mrb[0].mxu0
        %v863 = vadd.f32 0.0, %v862
        %v864 = vpop.f32.mrb[0].mxu0
        %v865 = vadd.f32 0.0, %v864
        %v866 = vpop.f32.mrb[0].mxu0
        %v867 = vadd.f32 0.0, %v866
        %868 = vmatprep.mubr.bf16.mxu0 0
        %869 = vmatmul.mubr.bf16.gmra.mrb[0].mxu0 %v799
        %v870 = vpop.f32.mrb[0].mxu0
        %v871 = vadd.f32 0.0, %v870
        %v872 = vpop.f32.mrb[0].mxu0
        %v873 = vadd.f32 0.0, %v872
        %v874 = vpop.f32.mrb[0].mxu0
        %v875 = vadd.f32 0.0, %v874
        %v876 = vpop.f32.mrb[0].mxu0
        %v877 = vadd.f32 0.0, %v876
        %878 = vmatprep.mubr.bf16.mxu0 0
        %879 = vmatmul.mubr.bf16.gmra.mrb[0].mxu0 %v802
        %v880 = vpop.f32.mrb[0].mxu0
        %v881 = vadd.f32 0.0, %v880
        %v882 = vpop.f32.mrb[0].mxu0
        %v883 = vadd.f32 0.0, %v882
        %v884 = vpop.f32.mrb[0].mxu0
        %v885 = vadd.f32 0.0, %v884
        %v886 = vpop.f32.mrb[0].mxu0
        %v887 = vadd.f32 0.0, %v886
        %888 = vmatprep.mubr.bf16.mxu0 0
        %889 = vmatmul.mubr.bf16.gmra.mrb[0].mxu0 %v805
        %v890 = vpop.f32.mrb[0].mxu0
        %v891 = vadd.f32 0.0, %v890
        %v892 = vpop.f32.mrb[0].mxu0
        %v893 = vadd.f32 0.0, %v892
        %v894 = vpop.f32.mrb[0].mxu0
        %v895 = vadd.f32 0.0, %v894
        %v896 = vpop.f32.mrb[0].mxu0
        %v897 = vadd.f32 0.0, %v896
        %898 = vmatprep.mubr.bf16.mxu0 0
        %899 = vmatmul.mubr.bf16.gmra.mrb[0].mxu0 %v808
        %v900 = vpop.f32.mrb[0].mxu0
        %v901 = vadd.f32 0.0, %v900
        %v902 = vpop.f32.mrb[0].mxu0
        %v903 = vadd.f32 0.0, %v902
        %v904 = vpop.f32.mrb[0].mxu0
        %v905 = vadd.f32 0.0, %v904
        %v906 = vpop.f32.mrb[0].mxu0
        %v907 = vadd.f32 0.0, %v906
        %908 = vmatprep.mubr.bf16.mxu0 0
        %909 = vmatmul.mubr.bf16.gmra.mrb[0].mxu0 %v811
        %v910 = vpop.f32.mrb[0].mxu0
        %v911 = vadd.f32 0.0, %v910
        %v912 = vpop.f32.mrb[0].mxu0
        %v913 = vadd.f32 0.0, %v912
        %v914 = vpop.f32.mrb[0].mxu0
        %v915 = vadd.f32 0.0, %v914
        %v916 = vpop.f32.mrb[0].mxu0
        %v917 = vadd.f32 0.0, %v916
        %918 = vmatprep.mubr.bf16.mxu0 0
        %919 = vmatmul.mubr.bf16.gmra.mrb[0].mxu0 %v814
        %v920 = vpop.f32.mrb[0].mxu0
        %v921 = vadd.f32 0.0, %v920
        %v922 = vpop.f32.mrb[0].mxu0
        %v923 = vadd.f32 0.0, %v922
        %v924 = vpop.f32.mrb[0].mxu0
        %v925 = vadd.f32 0.0, %v924
        %v926 = vpop.f32.mrb[0].mxu0
        %v927 = vadd.f32 0.0, %v926
        %928 = vmatprep.mubr.bf16.mxu0 0
        %929 = vmatmul.mubr.bf16.gmra.mrb[0].mxu0 %v817
        %v930 = vpop.f32.mrb[0].mxu0
        %v931 = vadd.f32 0.0, %v930
        %v932 = vpop.f32.mrb[0].mxu0
        %v933 = vadd.f32 0.0, %v932
        %v934 = vpop.f32.mrb[0].mxu0
        %v935 = vadd.f32 0.0, %v934
        %v936 = vpop.f32.mrb[0].mxu0
        %v937 = vadd.f32 0.0, %v936
        %938 = vdwg.mxu0
        %939 = vxpose.xlu0.c.b16.start [1/8] %v737, 128
        %940 = vxpose.xlu0.c.b16.cont [2/8] 0, 128
        %941 = vxpose.xlu0.c.b16.cont [3/8] 0, 128
        %942 = vxpose.xlu0.c.b16.cont [4/8] 0, 128
        %943 = vxpose.xlu0.c.b16.cont [5/8] 0, 128
        %944 = vxpose.xlu0.c.b16.cont [6/8] 0, 128
        %945 = vxpose.xlu0.c.b16.cont [7/8] 0, 128
        %946 = vxpose.xlu0.c.b16.end [8/8] 0, 128
        %v947 = vpop.trf.xlu0
        %v948 = vpop.trf.xlu0
        %v949 = vpop.trf.xlu0
        %v950 = vpop.trf.xlu0
        %v951 = vpop.trf.xlu0
        %v952 = vpop.trf.xlu0
        %v953 = vpop.trf.xlu0
        %v954 = vpop.trf.xlu0
        %v955 = vpack.c.b16 %v758, %v758
        %v956 = vpack.c.b16 %v759, %v759
        %v958 = vsel %vm794, %v947, 0
        %v961 = vsel %vm794, %v948, 0
        %v964 = vsel %vm794, %v949, 0
        %v967 = vsel %vm794, %v950, 0
        %v970 = vsel %vm794, %v951, 0
        %v973 = vsel %vm794, %v952, 0
        %v976 = vsel %vm794, %v953, 0
        %v979 = vsel %vm794, %v954, 0
        %v982 = vsel %vm819, %v955, 0
        %v985 = vsel %vm819, %v956, 0
        %987 = vmatprep.subr.bf16.mxu0 %v985
        %988 = vmatpush1.bf16.msra.mxu0 %v982
        %989 = vmatprep.subr.bf16.mxu0 0
        %990 = vmatpush1.bf16.msra.mxu0 0
        %991 = vmatprep.subr.bf16.mxu0 0
        %992 = vmatpush1.bf16.msra.mxu0 0
        %993 = vmatprep.subr.bf16.mxu0 0
        %994 = vmatpush1.bf16.msra.mxu0 0
        %995 = vmatprep.subr.bf16.mxu0 0
        %996 = vmatpush1.bf16.msra.mxu0 0
        %997 = vmatprep.subr.bf16.mxu0 0
        %998 = vmatpush1.bf16.msra.mxu0 0
        %999 = vmatprep.subr.bf16.mxu0 0
        %1000 = vmatpush1.bf16.msra.mxu0 0
        %1001 = vmatprep.subr.bf16.mxu0 0
        %1002 = vmatpush1.bf16.msra.mxu0 0
        %1003 = vmatprep.subr.bf16.mxu0 0
        %1004 = vmatpush1.bf16.msra.mxu0 0
        %1005 = vmatprep.subr.bf16.mxu0 0
        %1006 = vmatpush1.bf16.msra.mxu0 0
        %1007 = vmatprep.subr.bf16.mxu0 0
        %1008 = vmatpush1.bf16.msra.mxu0 0
        %1009 = vmatprep.subr.bf16.mxu0 0
        %1010 = vmatpush1.bf16.msra.mxu0 0
        %1011 = vmatprep.subr.bf16.mxu0 0
        %1012 = vmatpush1.bf16.msra.mxu0 0
        %1013 = vmatprep.subr.bf16.mxu0 0
        %1014 = vmatpush1.bf16.msra.mxu0 0
        %1015 = vmatprep.subr.bf16.mxu0 0
        %1016 = vmatpush1.bf16.msra.mxu0 0
        %1017 = vmatprep.subr.bf16.mxu0 0
        %1018 = vmatpush1.bf16.msra.mxu0 0
        %1019 = vmatprep.mubr.bf16.mxu0 0
        %1020 = vmatmul.mubr.bf16.gmra.mrb[0].mxu0 %v958
        %v1021 = vpop.f32.mrb[0].mxu0
        %v1022 = vadd.f32 0.0, %v1021
        %v1023 = vpop.f32.mrb[0].mxu0
        %v1024 = vadd.f32 0.0, %v1023
        %v1025 = vpop.f32.mrb[0].mxu0
        %v1026 = vadd.f32 0.0, %v1025
        %v1027 = vpop.f32.mrb[0].mxu0
        %v1028 = vadd.f32 0.0, %v1027
        %1029 = vmatprep.mubr.bf16.mxu0 0
        %1030 = vmatmul.mubr.bf16.gmra.mrb[0].mxu0 %v961
        %v1031 = vpop.f32.mrb[0].mxu0
        %v1032 = vadd.f32 0.0, %v1031
        %v1033 = vpop.f32.mrb[0].mxu0
        %v1034 = vadd.f32 0.0, %v1033
        %v1035 = vpop.f32.mrb[0].mxu0
        %v1036 = vadd.f32 0.0, %v1035
        %v1037 = vpop.f32.mrb[0].mxu0
        %v1038 = vadd.f32 0.0, %v1037
        %1039 = vmatprep.mubr.bf16.mxu0 0
        %1040 = vmatmul.mubr.bf16.gmra.mrb[0].mxu0 %v964
        %v1041 = vpop.f32.mrb[0].mxu0
        %v1042 = vadd.f32 0.0, %v1041
        %v1043 = vpop.f32.mrb[0].mxu0
        %v1044 = vadd.f32 0.0, %v1043
        %v1045 = vpop.f32.mrb[0].mxu0
        %v1046 = vadd.f32 0.0, %v1045
        %v1047 = vpop.f32.mrb[0].mxu0
        %v1048 = vadd.f32 0.0, %v1047
        %1049 = vmatprep.mubr.bf16.mxu0 0
        %1050 = vmatmul.mubr.bf16.gmra.mrb[0].mxu0 %v967
        %v1051 = vpop.f32.mrb[0].mxu0
        %v1052 = vadd.f32 0.0, %v1051
        %v1053 = vpop.f32.mrb[0].mxu0
        %v1054 = vadd.f32 0.0, %v1053
        %v1055 = vpop.f32.mrb[0].mxu0
        %v1056 = vadd.f32 0.0, %v1055
        %v1057 = vpop.f32.mrb[0].mxu0
        %v1058 = vadd.f32 0.0, %v1057
        %1059 = vmatprep.mubr.bf16.mxu0 0
        %1060 = vmatmul.mubr.bf16.gmra.mrb[0].mxu0 %v970
        %v1061 = vpop.f32.mrb[0].mxu0
        %v1062 = vadd.f32 0.0, %v1061
        %v1063 = vpop.f32.mrb[0].mxu0
        %v1064 = vadd.f32 0.0, %v1063
        %v1065 = vpop.f32.mrb[0].mxu0
        %v1066 = vadd.f32 0.0, %v1065
        %v1067 = vpop.f32.mrb[0].mxu0
        %v1068 = vadd.f32 0.0, %v1067
        %1069 = vmatprep.mubr.bf16.mxu0 0
        %1070 = vmatmul.mubr.bf16.gmra.mrb[0].mxu0 %v973
        %v1071 = vpop.f32.mrb[0].mxu0
        %v1072 = vadd.f32 0.0, %v1071
        %v1073 = vpop.f32.mrb[0].mxu0
        %v1074 = vadd.f32 0.0, %v1073
        %v1075 = vpop.f32.mrb[0].mxu0
        %v1076 = vadd.f32 0.0, %v1075
        %v1077 = vpop.f32.mrb[0].mxu0
        %v1078 = vadd.f32 0.0, %v1077
        %1079 = vmatprep.mubr.bf16.mxu0 0
        %1080 = vmatmul.mubr.bf16.gmra.mrb[0].mxu0 %v976
        %v1081 = vpop.f32.mrb[0].mxu0
        %v1082 = vadd.f32 0.0, %v1081
        %v1083 = vpop.f32.mrb[0].mxu0
        %v1084 = vadd.f32 0.0, %v1083
        %v1085 = vpop.f32.mrb[0].mxu0
        %v1086 = vadd.f32 0.0, %v1085
        %v1087 = vpop.f32.mrb[0].mxu0
        %v1088 = vadd.f32 0.0, %v1087
        %1089 = vmatprep.mubr.bf16.mxu0 0
        %1090 = vmatmul.mubr.bf16.gmra.mrb[0].mxu0 %v979
        %v1091 = vpop.f32.mrb[0].mxu0
        %v1092 = vadd.f32 0.0, %v1091
        %v1093 = vpop.f32.mrb[0].mxu0
        %v1094 = vadd.f32 0.0, %v1093
        %v1095 = vpop.f32.mrb[0].mxu0
        %v1096 = vadd.f32 0.0, %v1095
        %v1097 = vpop.f32.mrb[0].mxu0
        %v1098 = vadd.f32 0.0, %v1097
        %1099 = vdwg.mxu0
        %1100 = vxpose.xlu0.c.b16.start [1/8] %v738, 128
        %1101 = vxpose.xlu0.c.b16.cont [2/8] 0, 128
        %1102 = vxpose.xlu0.c.b16.cont [3/8] 0, 128
        %1103 = vxpose.xlu0.c.b16.cont [4/8] 0, 128
        %1104 = vxpose.xlu0.c.b16.cont [5/8] 0, 128
        %1105 = vxpose.xlu0.c.b16.cont [6/8] 0, 128
        %1106 = vxpose.xlu0.c.b16.cont [7/8] 0, 128
        %1107 = vxpose.xlu0.c.b16.end [8/8] 0, 128
        %v1108 = vpop.trf.xlu0
        %v1109 = vpop.trf.xlu0
        %v1110 = vpop.trf.xlu0
        %v1111 = vpop.trf.xlu0
        %v1112 = vpop.trf.xlu0
        %v1113 = vpop.trf.xlu0
        %v1114 = vpop.trf.xlu0
        %v1115 = vpop.trf.xlu0
        %v1116 = vpack.c.b16 %v760, %v760
        %v1117 = vpack.c.b16 %v761, %v761
        %v1119 = vsel %vm794, %v1108, 0
        %v1122 = vsel %vm794, %v1109, 0
        %v1125 = vsel %vm794, %v1110, 0
        %v1128 = vsel %vm794, %v1111, 0
        %v1131 = vsel %vm794, %v1112, 0
        %v1134 = vsel %vm794, %v1113, 0
        %v1137 = vsel %vm794, %v1114, 0
        %v1140 = vsel %vm794, %v1115, 0
        %v1143 = vsel %vm819, %v1116, 0
        %v1146 = vsel %vm819, %v1117, 0
        %1148 = vmatprep.subr.bf16.mxu0 %v1146
        %1149 = vmatpush1.bf16.msra.mxu0 %v1143
        %1150 = vmatprep.subr.bf16.mxu0 0
        %1151 = vmatpush1.bf16.msra.mxu0 0
        %1152 = vmatprep.subr.bf16.mxu0 0
        %1153 = vmatpush1.bf16.msra.mxu0 0
        %1154 = vmatprep.subr.bf16.mxu0 0
        %1155 = vmatpush1.bf16.msra.mxu0 0
        %1156 = vmatprep.subr.bf16.mxu0 0
        %1157 = vmatpush1.bf16.msra.mxu0 0
        %1158 = vmatprep.subr.bf16.mxu0 0
        %1159 = vmatpush1.bf16.msra.mxu0 0
        %1160 = vmatprep.subr.bf16.mxu0 0
        %1161 = vmatpush1.bf16.msra.mxu0 0
        %1162 = vmatprep.subr.bf16.mxu0 0
        %1163 = vmatpush1.bf16.msra.mxu0 0
        %1164 = vmatprep.subr.bf16.mxu0 0
        %1165 = vmatpush1.bf16.msra.mxu0 0
        %1166 = vmatprep.subr.bf16.mxu0 0
        %1167 = vmatpush1.bf16.msra.mxu0 0
        %1168 = vmatprep.subr.bf16.mxu0 0
        %1169 = vmatpush1.bf16.msra.mxu0 0
        %1170 = vmatprep.subr.bf16.mxu0 0
        %1171 = vmatpush1.bf16.msra.mxu0 0
        %1172 = vmatprep.subr.bf16.mxu0 0
        %1173 = vmatpush1.bf16.msra.mxu0 0
        %1174 = vmatprep.subr.bf16.mxu0 0
        %1175 = vmatpush1.bf16.msra.mxu0 0
        %1176 = vmatprep.subr.bf16.mxu0 0
        %1177 = vmatpush1.bf16.msra.mxu0 0
        %1178 = vmatprep.subr.bf16.mxu0 0
        %1179 = vmatpush1.bf16.msra.mxu0 0
        %1180 = vmatprep.mubr.bf16.mxu0 0
        %1181 = vmatmul.mubr.bf16.gmra.mrb[0].mxu0 %v1119
        %v1182 = vpop.f32.mrb[0].mxu0
        %v1183 = vadd.f32 0.0, %v1182
        %v1184 = vpop.f32.mrb[0].mxu0
        %v1185 = vadd.f32 0.0, %v1184
        %v1186 = vpop.f32.mrb[0].mxu0
        %v1187 = vadd.f32 0.0, %v1186
        %v1188 = vpop.f32.mrb[0].mxu0
        %v1189 = vadd.f32 0.0, %v1188
        %1190 = vmatprep.mubr.bf16.mxu0 0
        %1191 = vmatmul.mubr.bf16.gmra.mrb[0].mxu0 %v1122
        %v1192 = vpop.f32.mrb[0].mxu0
        %v1193 = vadd.f32 0.0, %v1192
        %v1194 = vpop.f32.mrb[0].mxu0
        %v1195 = vadd.f32 0.0, %v1194
        %v1196 = vpop.f32.mrb[0].mxu0
        %v1197 = vadd.f32 0.0, %v1196
        %v1198 = vpop.f32.mrb[0].mxu0
        %v1199 = vadd.f32 0.0, %v1198
        %1200 = vmatprep.mubr.bf16.mxu0 0
        %1201 = vmatmul.mubr.bf16.gmra.mrb[0].mxu0 %v1125
        %v1202 = vpop.f32.mrb[0].mxu0
        %v1203 = vadd.f32 0.0, %v1202
        %v1204 = vpop.f32.mrb[0].mxu0
        %v1205 = vadd.f32 0.0, %v1204
        %v1206 = vpop.f32.mrb[0].mxu0
        %v1207 = vadd.f32 0.0, %v1206
        %v1208 = vpop.f32.mrb[0].mxu0
        %v1209 = vadd.f32 0.0, %v1208
        %1210 = vmatprep.mubr.bf16.mxu0 0
        %1211 = vmatmul.mubr.bf16.gmra.mrb[0].mxu0 %v1128
        %v1212 = vpop.f32.mrb[0].mxu0
        %v1213 = vadd.f32 0.0, %v1212
        %v1214 = vpop.f32.mrb[0].mxu0
        %v1215 = vadd.f32 0.0, %v1214
        %v1216 = vpop.f32.mrb[0].mxu0
        %v1217 = vadd.f32 0.0, %v1216
        %v1218 = vpop.f32.mrb[0].mxu0
        %v1219 = vadd.f32 0.0, %v1218
        %1220 = vmatprep.mubr.bf16.mxu0 0
        %1221 = vmatmul.mubr.bf16.gmra.mrb[0].mxu0 %v1131
        %v1222 = vpop.f32.mrb[0].mxu0
        %v1223 = vadd.f32 0.0, %v1222
        %v1224 = vpop.f32.mrb[0].mxu0
        %v1225 = vadd.f32 0.0, %v1224
        %v1226 = vpop.f32.mrb[0].mxu0
        %v1227 = vadd.f32 0.0, %v1226
        %v1228 = vpop.f32.mrb[0].mxu0
        %v1229 = vadd.f32 0.0, %v1228
        %1230 = vmatprep.mubr.bf16.mxu0 0
        %1231 = vmatmul.mubr.bf16.gmra.mrb[0].mxu0 %v1134
        %v1232 = vpop.f32.mrb[0].mxu0
        %v1233 = vadd.f32 0.0, %v1232
        %v1234 = vpop.f32.mrb[0].mxu0
        %v1235 = vadd.f32 0.0, %v1234
        %v1236 = vpop.f32.mrb[0].mxu0
        %v1237 = vadd.f32 0.0, %v1236
        %v1238 = vpop.f32.mrb[0].mxu0
        %v1239 = vadd.f32 0.0, %v1238
        %1240 = vmatprep.mubr.bf16.mxu0 0
        %1241 = vmatmul.mubr.bf16.gmra.mrb[0].mxu0 %v1137
        %v1242 = vpop.f32.mrb[0].mxu0
        %v1243 = vadd.f32 0.0, %v1242
        %v1244 = vpop.f32.mrb[0].mxu0
        %v1245 = vadd.f32 0.0, %v1244
        %v1246 = vpop.f32.mrb[0].mxu0
        %v1247 = vadd.f32 0.0, %v1246
        %v1248 = vpop.f32.mrb[0].mxu0
        %v1249 = vadd.f32 0.0, %v1248
        %1250 = vmatprep.mubr.bf16.mxu0 0
        %1251 = vmatmul.mubr.bf16.gmra.mrb[0].mxu0 %v1140
        %v1252 = vpop.f32.mrb[0].mxu0
        %v1253 = vadd.f32 0.0, %v1252
        %v1254 = vpop.f32.mrb[0].mxu0
        %v1255 = vadd.f32 0.0, %v1254
        %v1256 = vpop.f32.mrb[0].mxu0
        %v1257 = vadd.f32 0.0, %v1256
        %v1258 = vpop.f32.mrb[0].mxu0
        %v1259 = vadd.f32 0.0, %v1258
        %1260 = vdwg.mxu0
        %1261 = vxpose.xlu0.c.b16.start [1/8] %v739, 128
        %1262 = vxpose.xlu0.c.b16.cont [2/8] 0, 128
        %1263 = vxpose.xlu0.c.b16.cont [3/8] 0, 128
        %1264 = vxpose.xlu0.c.b16.cont [4/8] 0, 128
        %1265 = vxpose.xlu0.c.b16.cont [5/8] 0, 128
        %1266 = vxpose.xlu0.c.b16.cont [6/8] 0, 128
        %1267 = vxpose.xlu0.c.b16.cont [7/8] 0, 128
        %1268 = vxpose.xlu0.c.b16.end [8/8] 0, 128
        %v1269 = vpop.trf.xlu0
        %v1270 = vpop.trf.xlu0
        %v1271 = vpop.trf.xlu0
        %v1272 = vpop.trf.xlu0
        %v1273 = vpop.trf.xlu0
        %v1274 = vpop.trf.xlu0
        %v1275 = vpop.trf.xlu0
        %v1276 = vpop.trf.xlu0
        %v1277 = vpack.c.b16 %v762, %v762
        %v1278 = vpack.c.b16 %v763, %v763
        %v1280 = vsel %vm794, %v1269, 0
        %v1283 = vsel %vm794, %v1270, 0
        %v1286 = vsel %vm794, %v1271, 0
        %v1289 = vsel %vm794, %v1272, 0
        %v1292 = vsel %vm794, %v1273, 0
        %v1295 = vsel %vm794, %v1274, 0
        %v1298 = vsel %vm794, %v1275, 0
        %v1301 = vsel %vm794, %v1276, 0
        %v1304 = vsel %vm819, %v1277, 0
        %v1307 = vsel %vm819, %v1278, 0
        %1309 = vmatprep.subr.bf16.mxu0 %v1307
        %1310 = vmatpush1.bf16.msra.mxu0 %v1304
        %1311 = vmatprep.subr.bf16.mxu0 0
        %1312 = vmatpush1.bf16.msra.mxu0 0
        %1313 = vmatprep.subr.bf16.mxu0 0
        %1314 = vmatpush1.bf16.msra.mxu0 0
        %1315 = vmatprep.subr.bf16.mxu0 0
        %1316 = vmatpush1.bf16.msra.mxu0 0
        %1317 = vmatprep.subr.bf16.mxu0 0
        %1318 = vmatpush1.bf16.msra.mxu0 0
        %1319 = vmatprep.subr.bf16.mxu0 0
        %1320 = vmatpush1.bf16.msra.mxu0 0
        %1321 = vmatprep.subr.bf16.mxu0 0
        %1322 = vmatpush1.bf16.msra.mxu0 0
        %1323 = vmatprep.subr.bf16.mxu0 0
        %1324 = vmatpush1.bf16.msra.mxu0 0
        %1325 = vmatprep.subr.bf16.mxu0 0
        %1326 = vmatpush1.bf16.msra.mxu0 0
        %1327 = vmatprep.subr.bf16.mxu0 0
        %1328 = vmatpush1.bf16.msra.mxu0 0
        %1329 = vmatprep.subr.bf16.mxu0 0
        %1330 = vmatpush1.bf16.msra.mxu0 0
        %1331 = vmatprep.subr.bf16.mxu0 0
        %1332 = vmatpush1.bf16.msra.mxu0 0
        %1333 = vmatprep.subr.bf16.mxu0 0
        %1334 = vmatpush1.bf16.msra.mxu0 0
        %1335 = vmatprep.subr.bf16.mxu0 0
        %1336 = vmatpush1.bf16.msra.mxu0 0
        %1337 = vmatprep.subr.bf16.mxu0 0
        %1338 = vmatpush1.bf16.msra.mxu0 0
        %1339 = vmatprep.subr.bf16.mxu0 0
        %1340 = vmatpush1.bf16.msra.mxu0 0
        %1341 = vmatprep.mubr.bf16.mxu0 0
        %1342 = vmatmul.mubr.bf16.gmra.mrb[0].mxu0 %v1280
        %v1343 = vpop.f32.mrb[0].mxu0
        %v1344 = vadd.f32 0.0, %v1343
        %v1345 = vpop.f32.mrb[0].mxu0
        %v1346 = vadd.f32 0.0, %v1345
        %v1347 = vpop.f32.mrb[0].mxu0
        %v1348 = vadd.f32 0.0, %v1347
        %v1349 = vpop.f32.mrb[0].mxu0
        %v1350 = vadd.f32 0.0, %v1349
        %1351 = vmatprep.mubr.bf16.mxu0 0
        %1352 = vmatmul.mubr.bf16.gmra.mrb[0].mxu0 %v1283
        %v1353 = vpop.f32.mrb[0].mxu0
        %v1354 = vadd.f32 0.0, %v1353
        %v1355 = vpop.f32.mrb[0].mxu0
        %v1356 = vadd.f32 0.0, %v1355
        %v1357 = vpop.f32.mrb[0].mxu0
        %v1358 = vadd.f32 0.0, %v1357
        %v1359 = vpop.f32.mrb[0].mxu0
        %v1360 = vadd.f32 0.0, %v1359
        %1361 = vmatprep.mubr.bf16.mxu0 0
        %1362 = vmatmul.mubr.bf16.gmra.mrb[0].mxu0 %v1286
        %v1363 = vpop.f32.mrb[0].mxu0
        %v1364 = vadd.f32 0.0, %v1363
        %v1365 = vpop.f32.mrb[0].mxu0
        %v1366 = vadd.f32 0.0, %v1365
        %v1367 = vpop.f32.mrb[0].mxu0
        %v1368 = vadd.f32 0.0, %v1367
        %v1369 = vpop.f32.mrb[0].mxu0
        %v1370 = vadd.f32 0.0, %v1369
        %1371 = vmatprep.mubr.bf16.mxu0 0
        %1372 = vmatmul.mubr.bf16.gmra.mrb[0].mxu0 %v1289
        %v1373 = vpop.f32.mrb[0].mxu0
        %v1374 = vadd.f32 0.0, %v1373
        %v1375 = vpop.f32.mrb[0].mxu0
        %v1376 = vadd.f32 0.0, %v1375
        %v1377 = vpop.f32.mrb[0].mxu0
        %v1378 = vadd.f32 0.0, %v1377
        %v1379 = vpop.f32.mrb[0].mxu0
        %v1380 = vadd.f32 0.0, %v1379
        %1381 = vmatprep.mubr.bf16.mxu0 0
        %1382 = vmatmul.mubr.bf16.gmra.mrb[0].mxu0 %v1292
        %v1383 = vpop.f32.mrb[0].mxu0
        %v1384 = vadd.f32 0.0, %v1383
        %v1385 = vpop.f32.mrb[0].mxu0
        %v1386 = vadd.f32 0.0, %v1385
        %v1387 = vpop.f32.mrb[0].mxu0
        %v1388 = vadd.f32 0.0, %v1387
        %v1389 = vpop.f32.mrb[0].mxu0
        %v1390 = vadd.f32 0.0, %v1389
        %1391 = vmatprep.mubr.bf16.mxu0 0
        %1392 = vmatmul.mubr.bf16.gmra.mrb[0].mxu0 %v1295
        %v1393 = vpop.f32.mrb[0].mxu0
        %v1394 = vadd.f32 0.0, %v1393
        %v1395 = vpop.f32.mrb[0].mxu0
        %v1396 = vadd.f32 0.0, %v1395
        %v1397 = vpop.f32.mrb[0].mxu0
        %v1398 = vadd.f32 0.0, %v1397
        %v1399 = vpop.f32.mrb[0].mxu0
        %v1400 = vadd.f32 0.0, %v1399
        %1401 = vmatprep.mubr.bf16.mxu0 0
        %1402 = vmatmul.mubr.bf16.gmra.mrb[0].mxu0 %v1298
        %v1403 = vpop.f32.mrb[0].mxu0
        %v1404 = vadd.f32 0.0, %v1403
        %v1405 = vpop.f32.mrb[0].mxu0
        %v1406 = vadd.f32 0.0, %v1405
        %v1407 = vpop.f32.mrb[0].mxu0
        %v1408 = vadd.f32 0.0, %v1407
        %v1409 = vpop.f32.mrb[0].mxu0
        %v1410 = vadd.f32 0.0, %v1409
        %1411 = vmatprep.mubr.bf16.mxu0 0
        %1412 = vmatmul.mubr.bf16.gmra.mrb[0].mxu0 %v1301
        %v1413 = vpop.f32.mrb[0].mxu0
        %v1414 = vadd.f32 0.0, %v1413
        %v1415 = vpop.f32.mrb[0].mxu0
        %v1416 = vadd.f32 0.0, %v1415
        %v1417 = vpop.f32.mrb[0].mxu0
        %v1418 = vadd.f32 0.0, %v1417
        %v1419 = vpop.f32.mrb[0].mxu0
        %v1420 = vadd.f32 0.0, %v1419
        %1421 = vdwg.mxu0
        %v1422 = vmax.f32 %v861, %v863
        %1423 = vmax.xlane.f32.xlu0 %v1422
        %v1424 = vpop.xlane.xlu0 %1423
        %v1425 = vmax.f32 %v865, %v867
        %1426 = vmax.xlane.f32.xlu0 %v1425
        %v1427 = vpop.xlane.xlu0 %1426
        %v1428 = vmax.f32 %v871, %v873
        %1429 = vmax.xlane.f32.xlu0 %v1428
        %v1430 = vpop.xlane.xlu0 %1429
        %v1431 = vmax.f32 %v875, %v877
        %1432 = vmax.xlane.f32.xlu0 %v1431
        %v1433 = vpop.xlane.xlu0 %1432
        %v1434 = vmax.f32 %v881, %v883
        %1435 = vmax.xlane.f32.xlu0 %v1434
        %v1436 = vpop.xlane.xlu0 %1435
        %v1437 = vmax.f32 %v885, %v887
        %1438 = vmax.xlane.f32.xlu0 %v1437
        %v1439 = vpop.xlane.xlu0 %1438
        %v1440 = vmax.f32 %v891, %v893
        %1441 = vmax.xlane.f32.xlu0 %v1440
        %v1442 = vpop.xlane.xlu0 %1441
        %v1443 = vmax.f32 %v895, %v897
        %1444 = vmax.xlane.f32.xlu0 %v1443
        %v1445 = vpop.xlane.xlu0 %1444
        %v1446 = vmax.f32 %v901, %v903
        %1447 = vmax.xlane.f32.xlu0 %v1446
        %v1448 = vpop.xlane.xlu0 %1447
        %v1449 = vmax.f32 %v905, %v907
        %1450 = vmax.xlane.f32.xlu0 %v1449
        %v1451 = vpop.xlane.xlu0 %1450
        %v1452 = vmax.f32 %v911, %v913
        %1453 = vmax.xlane.f32.xlu0 %v1452
        %v1454 = vpop.xlane.xlu0 %1453
        %v1455 = vmax.f32 %v915, %v917
        %1456 = vmax.xlane.f32.xlu0 %v1455
        %v1457 = vpop.xlane.xlu0 %1456
        %v1458 = vmax.f32 %v921, %v923
        %1459 = vmax.xlane.f32.xlu0 %v1458
        %v1460 = vpop.xlane.xlu0 %1459
        %v1461 = vmax.f32 %v925, %v927
        %1462 = vmax.xlane.f32.xlu0 %v1461
        %v1463 = vpop.xlane.xlu0 %1462
        %v1464 = vmax.f32 %v931, %v933
        %1465 = vmax.xlane.f32.xlu0 %v1464
        %v1466 = vpop.xlane.xlu0 %1465
        %v1467 = vmax.f32 %v935, %v937
        %1468 = vmax.xlane.f32.xlu0 %v1467
        %v1469 = vpop.xlane.xlu0 %1468
        %v1470 = vmax.f32 %v1022, %v1024
        %1471 = vmax.xlane.f32.xlu0 %v1470
        %v1472 = vpop.xlane.xlu0 %1471
        %v1473 = vmax.f32 %v1026, %v1028
        %1474 = vmax.xlane.f32.xlu0 %v1473
        %v1475 = vpop.xlane.xlu0 %1474
        %v1476 = vmax.f32 %v1032, %v1034
        %1477 = vmax.xlane.f32.xlu0 %v1476
        %v1478 = vpop.xlane.xlu0 %1477
        %v1479 = vmax.f32 %v1036, %v1038
        %1480 = vmax.xlane.f32.xlu0 %v1479
        %v1481 = vpop.xlane.xlu0 %1480
        %v1482 = vmax.f32 %v1042, %v1044
        %1483 = vmax.xlane.f32.xlu0 %v1482
        %v1484 = vpop.xlane.xlu0 %1483
        %v1485 = vmax.f32 %v1046, %v1048
        %1486 = vmax.xlane.f32.xlu0 %v1485
        %v1487 = vpop.xlane.xlu0 %1486
        %v1488 = vmax.f32 %v1052, %v1054
        %1489 = vmax.xlane.f32.xlu0 %v1488
        %v1490 = vpop.xlane.xlu0 %1489
        %v1491 = vmax.f32 %v1056, %v1058
        %1492 = vmax.xlane.f32.xlu0 %v1491
        %v1493 = vpop.xlane.xlu0 %1492
        %v1494 = vmax.f32 %v1062, %v1064
        %1495 = vmax.xlane.f32.xlu0 %v1494
        %v1496 = vpop.xlane.xlu0 %1495
        %v1497 = vmax.f32 %v1066, %v1068
        %1498 = vmax.xlane.f32.xlu0 %v1497
        %v1499 = vpop.xlane.xlu0 %1498
        %v1500 = vmax.f32 %v1072, %v1074
        %1501 = vmax.xlane.f32.xlu0 %v1500
        %v1502 = vpop.xlane.xlu0 %1501
        %v1503 = vmax.f32 %v1076, %v1078
        %1504 = vmax.xlane.f32.xlu0 %v1503
        %v1505 = vpop.xlane.xlu0 %1504
        %v1506 = vmax.f32 %v1082, %v1084
        %1507 = vmax.xlane.f32.xlu0 %v1506
        %v1508 = vpop.xlane.xlu0 %1507
        %v1509 = vmax.f32 %v1086, %v1088
        %1510 = vmax.xlane.f32.xlu0 %v1509
        %v1511 = vpop.xlane.xlu0 %1510
        %v1512 = vmax.f32 %v1092, %v1094
        %1513 = vmax.xlane.f32.xlu0 %v1512
        %v1514 = vpop.xlane.xlu0 %1513
        %v1515 = vmax.f32 %v1096, %v1098
        %1516 = vmax.xlane.f32.xlu0 %v1515
        %v1517 = vpop.xlane.xlu0 %1516
        %v1518 = vmax.f32 %v1183, %v1185
        %1519 = vmax.xlane.f32.xlu0 %v1518
        %v1520 = vpop.xlane.xlu0 %1519
        %v1521 = vmax.f32 %v1187, %v1189
        %1522 = vmax.xlane.f32.xlu0 %v1521
        %v1523 = vpop.xlane.xlu0 %1522
        %v1524 = vmax.f32 %v1193, %v1195
        %1525 = vmax.xlane.f32.xlu0 %v1524
        %v1526 = vpop.xlane.xlu0 %1525
        %v1527 = vmax.f32 %v1197, %v1199
        %1528 = vmax.xlane.f32.xlu0 %v1527
        %v1529 = vpop.xlane.xlu0 %1528
        %v1530 = vmax.f32 %v1203, %v1205
        %1531 = vmax.xlane.f32.xlu0 %v1530
        %v1532 = vpop.xlane.xlu0 %1531
        %v1533 = vmax.f32 %v1207, %v1209
        %1534 = vmax.xlane.f32.xlu0 %v1533
        %v1535 = vpop.xlane.xlu0 %1534
        %v1536 = vmax.f32 %v1213, %v1215
        %1537 = vmax.xlane.f32.xlu0 %v1536
        %v1538 = vpop.xlane.xlu0 %1537
        %v1539 = vmax.f32 %v1217, %v1219
        %1540 = vmax.xlane.f32.xlu0 %v1539
        %v1541 = vpop.xlane.xlu0 %1540
        %v1542 = vmax.f32 %v1223, %v1225
        %1543 = vmax.xlane.f32.xlu0 %v1542
        %v1544 = vpop.xlane.xlu0 %1543
        %v1545 = vmax.f32 %v1227, %v1229
        %1546 = vmax.xlane.f32.xlu0 %v1545
        %v1547 = vpop.xlane.xlu0 %1546
        %v1548 = vmax.f32 %v1233, %v1235
        %1549 = vmax.xlane.f32.xlu0 %v1548
        %v1550 = vpop.xlane.xlu0 %1549
        %v1551 = vmax.f32 %v1237, %v1239
        %1552 = vmax.xlane.f32.xlu0 %v1551
        %v1553 = vpop.xlane.xlu0 %1552
        %v1554 = vmax.f32 %v1243, %v1245
        %1555 = vmax.xlane.f32.xlu0 %v1554
        %v1556 = vpop.xlane.xlu0 %1555
        %v1557 = vmax.f32 %v1247, %v1249
        %1558 = vmax.xlane.f32.xlu0 %v1557
        %v1559 = vpop.xlane.xlu0 %1558
        %v1560 = vmax.f32 %v1253, %v1255
        %1561 = vmax.xlane.f32.xlu0 %v1560
        %v1562 = vpop.xlane.xlu0 %1561
        %v1563 = vmax.f32 %v1257, %v1259
        %1564 = vmax.xlane.f32.xlu0 %v1563
        %v1565 = vpop.xlane.xlu0 %1564
        %v1566 = vmax.f32 %v1344, %v1346
        %1567 = vmax.xlane.f32.xlu0 %v1566
        %v1568 = vpop.xlane.xlu0 %1567
        %v1569 = vmax.f32 %v1348, %v1350
        %1570 = vmax.xlane.f32.xlu0 %v1569
        %v1571 = vpop.xlane.xlu0 %1570
        %v1572 = vmax.f32 %v1354, %v1356
        %1573 = vmax.xlane.f32.xlu0 %v1572
        %v1574 = vpop.xlane.xlu0 %1573
        %v1575 = vmax.f32 %v1358, %v1360
        %1576 = vmax.xlane.f32.xlu0 %v1575
        %v1577 = vpop.xlane.xlu0 %1576
        %v1578 = vmax.f32 %v1364, %v1366
        %1579 = vmax.xlane.f32.xlu0 %v1578
        %v1580 = vpop.xlane.xlu0 %1579
        %v1581 = vmax.f32 %v1368, %v1370
        %1582 = vmax.xlane.f32.xlu0 %v1581
        %v1583 = vpop.xlane.xlu0 %1582
        %v1584 = vmax.f32 %v1374, %v1376
        %1585 = vmax.xlane.f32.xlu0 %v1584
        %v1586 = vpop.xlane.xlu0 %1585
        %v1587 = vmax.f32 %v1378, %v1380
        %1588 = vmax.xlane.f32.xlu0 %v1587
        %v1589 = vpop.xlane.xlu0 %1588
        %v1590 = vmax.f32 %v1384, %v1386
        %1591 = vmax.xlane.f32.xlu0 %v1590
        %v1592 = vpop.xlane.xlu0 %1591
        %v1593 = vmax.f32 %v1388, %v1390
        %1594 = vmax.xlane.f32.xlu0 %v1593
        %v1595 = vpop.xlane.xlu0 %1594
        %v1596 = vmax.f32 %v1394, %v1396
        %1597 = vmax.xlane.f32.xlu0 %v1596
        %v1598 = vpop.xlane.xlu0 %1597
        %v1599 = vmax.f32 %v1398, %v1400
        %1600 = vmax.xlane.f32.xlu0 %v1599
        %v1601 = vpop.xlane.xlu0 %1600
        %v1602 = vmax.f32 %v1404, %v1406
        %1603 = vmax.xlane.f32.xlu0 %v1602
        %v1604 = vpop.xlane.xlu0 %1603
        %v1605 = vmax.f32 %v1408, %v1410
        %1606 = vmax.xlane.f32.xlu0 %v1605
        %v1607 = vpop.xlane.xlu0 %1606
        %v1608 = vmax.f32 %v1414, %v1416
        %1609 = vmax.xlane.f32.xlu0 %v1608
        %v1610 = vpop.xlane.xlu0 %1609
        %v1611 = vmax.f32 %v1418, %v1420
        %1612 = vmax.xlane.f32.xlu0 %v1611
        %v1613 = vpop.xlane.xlu0 %1612
        %v1614 = vsub.f32 %v861, %v1424
        %v1615 = vsub.f32 %v863, %v1424
        %v1616 = vsub.f32 %v865, %v1427
        %v1617 = vsub.f32 %v867, %v1427
        %v1618 = vsub.f32 %v871, %v1430
        %v1619 = vsub.f32 %v873, %v1430
        %v1620 = vsub.f32 %v875, %v1433
        %v1621 = vsub.f32 %v877, %v1433
        %v1622 = vsub.f32 %v881, %v1436
        %v1623 = vsub.f32 %v883, %v1436
        %v1624 = vsub.f32 %v885, %v1439
        %v1625 = vsub.f32 %v887, %v1439
        %v1626 = vsub.f32 %v891, %v1442
        %v1627 = vsub.f32 %v893, %v1442
        %v1628 = vsub.f32 %v895, %v1445
        %v1629 = vsub.f32 %v897, %v1445
        %v1630 = vsub.f32 %v901, %v1448
        %v1631 = vsub.f32 %v903, %v1448
        %v1632 = vsub.f32 %v905, %v1451
        %v1633 = vsub.f32 %v907, %v1451
        %v1634 = vsub.f32 %v911, %v1454
        %v1635 = vsub.f32 %v913, %v1454
        %v1636 = vsub.f32 %v915, %v1457
        %v1637 = vsub.f32 %v917, %v1457
        %v1638 = vsub.f32 %v921, %v1460
        %v1639 = vsub.f32 %v923, %v1460
        %v1640 = vsub.f32 %v925, %v1463
        %v1641 = vsub.f32 %v927, %v1463
        %v1642 = vsub.f32 %v931, %v1466
        %v1643 = vsub.f32 %v933, %v1466
        %v1644 = vsub.f32 %v935, %v1469
        %v1645 = vsub.f32 %v937, %v1469
        %v1646 = vsub.f32 %v1022, %v1472
        %v1647 = vsub.f32 %v1024, %v1472
        %v1648 = vsub.f32 %v1026, %v1475
        %v1649 = vsub.f32 %v1028, %v1475
        %v1650 = vsub.f32 %v1032, %v1478
        %v1651 = vsub.f32 %v1034, %v1478
        %v1652 = vsub.f32 %v1036, %v1481
        %v1653 = vsub.f32 %v1038, %v1481
        %v1654 = vsub.f32 %v1042, %v1484
        %v1655 = vsub.f32 %v1044, %v1484
        %v1656 = vsub.f32 %v1046, %v1487
        %v1657 = vsub.f32 %v1048, %v1487
        %v1658 = vsub.f32 %v1052, %v1490
        %v1659 = vsub.f32 %v1054, %v1490
        %v1660 = vsub.f32 %v1056, %v1493
        %v1661 = vsub.f32 %v1058, %v1493
        %v1662 = vsub.f32 %v1062, %v1496
        %v1663 = vsub.f32 %v1064, %v1496
        %v1664 = vsub.f32 %v1066, %v1499
        %v1665 = vsub.f32 %v1068, %v1499
        %v1666 = vsub.f32 %v1072, %v1502
        %v1667 = vsub.f32 %v1074, %v1502
        %v1668 = vsub.f32 %v1076, %v1505
        %v1669 = vsub.f32 %v1078, %v1505
        %v1670 = vsub.f32 %v1082, %v1508
        %v1671 = vsub.f32 %v1084, %v1508
        %v1672 = vsub.f32 %v1086, %v1511
        %v1673 = vsub.f32 %v1088, %v1511
        %v1674 = vsub.f32 %v1092, %v1514
        %v1675 = vsub.f32 %v1094, %v1514
        %v1676 = vsub.f32 %v1096, %v1517
        %v1677 = vsub.f32 %v1098, %v1517
        %v1678 = vsub.f32 %v1183, %v1520
        %v1679 = vsub.f32 %v1185, %v1520
        %v1680 = vsub.f32 %v1187, %v1523
        %v1681 = vsub.f32 %v1189, %v1523
        %v1682 = vsub.f32 %v1193, %v1526
        %v1683 = vsub.f32 %v1195, %v1526
        %v1684 = vsub.f32 %v1197, %v1529
        %v1685 = vsub.f32 %v1199, %v1529
        %v1686 = vsub.f32 %v1203, %v1532
        %v1687 = vsub.f32 %v1205, %v1532
        %v1688 = vsub.f32 %v1207, %v1535
        %v1689 = vsub.f32 %v1209, %v1535
        %v1690 = vsub.f32 %v1213, %v1538
        %v1691 = vsub.f32 %v1215, %v1538
        %v1692 = vsub.f32 %v1217, %v1541
        %v1693 = vsub.f32 %v1219, %v1541
        %v1694 = vsub.f32 %v1223, %v1544
        %v1695 = vsub.f32 %v1225, %v1544
        %v1696 = vsub.f32 %v1227, %v1547
        %v1697 = vsub.f32 %v1229, %v1547
        %v1698 = vsub.f32 %v1233, %v1550
        %v1699 = vsub.f32 %v1235, %v1550
        %v1700 = vsub.f32 %v1237, %v1553
        %v1701 = vsub.f32 %v1239, %v1553
        %v1702 = vsub.f32 %v1243, %v1556
        %v1703 = vsub.f32 %v1245, %v1556
        %v1704 = vsub.f32 %v1247, %v1559
        %v1705 = vsub.f32 %v1249, %v1559
        %v1706 = vsub.f32 %v1253, %v1562
        %v1707 = vsub.f32 %v1255, %v1562
        %v1708 = vsub.f32 %v1257, %v1565
        %v1709 = vsub.f32 %v1259, %v1565
        %v1710 = vsub.f32 %v1344, %v1568
        %v1711 = vsub.f32 %v1346, %v1568
        %v1712 = vsub.f32 %v1348, %v1571
        %v1713 = vsub.f32 %v1350, %v1571
        %v1714 = vsub.f32 %v1354, %v1574
        %v1715 = vsub.f32 %v1356, %v1574
        %v1716 = vsub.f32 %v1358, %v1577
        %v1717 = vsub.f32 %v1360, %v1577
        %v1718 = vsub.f32 %v1364, %v1580
        %v1719 = vsub.f32 %v1366, %v1580
        %v1720 = vsub.f32 %v1368, %v1583
        %v1721 = vsub.f32 %v1370, %v1583
        %v1722 = vsub.f32 %v1374, %v1586
        %v1723 = vsub.f32 %v1376, %v1586
        %v1724 = vsub.f32 %v1378, %v1589
        %v1725 = vsub.f32 %v1380, %v1589
        %v1726 = vsub.f32 %v1384, %v1592
        %v1727 = vsub.f32 %v1386, %v1592
        %v1728 = vsub.f32 %v1388, %v1595
        %v1729 = vsub.f32 %v1390, %v1595
        %v1730 = vsub.f32 %v1394, %v1598
        %v1731 = vsub.f32 %v1396, %v1598
        %v1732 = vsub.f32 %v1398, %v1601
        %v1733 = vsub.f32 %v1400, %v1601
        %v1734 = vsub.f32 %v1404, %v1604
        %v1735 = vsub.f32 %v1406, %v1604
        %v1736 = vsub.f32 %v1408, %v1607
        %v1737 = vsub.f32 %v1410, %v1607
        %v1738 = vsub.f32 %v1414, %v1610
        %v1739 = vsub.f32 %v1416, %v1610
        %v1740 = vsub.f32 %v1418, %v1613
        %v1741 = vsub.f32 %v1420, %v1613
        %v1742 = vmul.f32 %v1614, 1.442695
        %v1743 = vpow.pop %v1742
        %v1744 = vmul.f32 %v1615, 1.442695
        %v1745 = vpow.pop %v1744
        %v1746 = vmul.f32 %v1616, 1.442695
        %v1747 = vpow.pop %v1746
        %v1748 = vmul.f32 %v1617, 1.442695
        %v1749 = vpow.pop %v1748
        %v1750 = vmul.f32 %v1618, 1.442695
        %v1751 = vpow.pop %v1750
        %v1752 = vmul.f32 %v1619, 1.442695
        %v1753 = vpow.pop %v1752
        %v1754 = vmul.f32 %v1620, 1.442695
        %v1755 = vpow.pop %v1754
        %v1756 = vmul.f32 %v1621, 1.442695
        %v1757 = vpow.pop %v1756
        %v1758 = vmul.f32 %v1622, 1.442695
        %v1759 = vpow.pop %v1758
        %v1760 = vmul.f32 %v1623, 1.442695
        %v1761 = vpow.pop %v1760
        %v1762 = vmul.f32 %v1624, 1.442695
        %v1763 = vpow.pop %v1762
        %v1764 = vmul.f32 %v1625, 1.442695
        %v1765 = vpow.pop %v1764
        %v1766 = vmul.f32 %v1626, 1.442695
        %v1767 = vpow.pop %v1766
        %v1768 = vmul.f32 %v1627, 1.442695
        %v1769 = vpow.pop %v1768
        %v1770 = vmul.f32 %v1628, 1.442695
        %v1771 = vpow.pop %v1770
        %v1772 = vmul.f32 %v1629, 1.442695
        %v1773 = vpow.pop %v1772
        %v1774 = vmul.f32 %v1630, 1.442695
        %v1775 = vpow.pop %v1774
        %v1776 = vmul.f32 %v1631, 1.442695
        %v1777 = vpow.pop %v1776
        %v1778 = vmul.f32 %v1632, 1.442695
        %v1779 = vpow.pop %v1778
        %v1780 = vmul.f32 %v1633, 1.442695
        %v1781 = vpow.pop %v1780
        %v1782 = vmul.f32 %v1634, 1.442695
        %v1783 = vpow.pop %v1782
        %v1784 = vmul.f32 %v1635, 1.442695
        %v1785 = vpow.pop %v1784
        %v1786 = vmul.f32 %v1636, 1.442695
        %v1787 = vpow.pop %v1786
        %v1788 = vmul.f32 %v1637, 1.442695
        %v1789 = vpow.pop %v1788
        %v1790 = vmul.f32 %v1638, 1.442695
        %v1791 = vpow.pop %v1790
        %v1792 = vmul.f32 %v1639, 1.442695
        %v1793 = vpow.pop %v1792
        %v1794 = vmul.f32 %v1640, 1.442695
        %v1795 = vpow.pop %v1794
        %v1796 = vmul.f32 %v1641, 1.442695
        %v1797 = vpow.pop %v1796
        %v1798 = vmul.f32 %v1642, 1.442695
        %v1799 = vpow.pop %v1798
        %v1800 = vmul.f32 %v1643, 1.442695
        %v1801 = vpow.pop %v1800
        %v1802 = vmul.f32 %v1644, 1.442695
        %v1803 = vpow.pop %v1802
        %v1804 = vmul.f32 %v1645, 1.442695
        %v1805 = vpow.pop %v1804
        %v1806 = vmul.f32 %v1646, 1.442695
        %v1807 = vpow.pop %v1806
        %v1808 = vmul.f32 %v1647, 1.442695
        %v1809 = vpow.pop %v1808
        %v1810 = vmul.f32 %v1648, 1.442695
        %v1811 = vpow.pop %v1810
        %v1812 = vmul.f32 %v1649, 1.442695
        %v1813 = vpow.pop %v1812
        %v1814 = vmul.f32 %v1650, 1.442695
        %v1815 = vpow.pop %v1814
        %v1816 = vmul.f32 %v1651, 1.442695
        %v1817 = vpow.pop %v1816
        %v1818 = vmul.f32 %v1652, 1.442695
        %v1819 = vpow.pop %v1818
        %v1820 = vmul.f32 %v1653, 1.442695
        %v1821 = vpow.pop %v1820
        %v1822 = vmul.f32 %v1654, 1.442695
        %v1823 = vpow.pop %v1822
        %v1824 = vmul.f32 %v1655, 1.442695
        %v1825 = vpow.pop %v1824
        %v1826 = vmul.f32 %v1656, 1.442695
        %v1827 = vpow.pop %v1826
        %v1828 = vmul.f32 %v1657, 1.442695
        %v1829 = vpow.pop %v1828
        %v1830 = vmul.f32 %v1658, 1.442695
        %v1831 = vpow.pop %v1830
        %v1832 = vmul.f32 %v1659, 1.442695
        %v1833 = vpow.pop %v1832
        %v1834 = vmul.f32 %v1660, 1.442695
        %v1835 = vpow.pop %v1834
        %v1836 = vmul.f32 %v1661, 1.442695
        %v1837 = vpow.pop %v1836
        %v1838 = vmul.f32 %v1662, 1.442695
        %v1839 = vpow.pop %v1838
        %v1840 = vmul.f32 %v1663, 1.442695
        %v1841 = vpow.pop %v1840
        %v1842 = vmul.f32 %v1664, 1.442695
        %v1843 = vpow.pop %v1842
        %v1844 = vmul.f32 %v1665, 1.442695
        %v1845 = vpow.pop %v1844
        %v1846 = vmul.f32 %v1666, 1.442695
        %v1847 = vpow.pop %v1846
        %v1848 = vmul.f32 %v1667, 1.442695
        %v1849 = vpow.pop %v1848
        %v1850 = vmul.f32 %v1668, 1.442695
        %v1851 = vpow.pop %v1850
        %v1852 = vmul.f32 %v1669, 1.442695
        %v1853 = vpow.pop %v1852
        %v1854 = vmul.f32 %v1670, 1.442695
        %v1855 = vpow.pop %v1854
        %v1856 = vmul.f32 %v1671, 1.442695
        %v1857 = vpow.pop %v1856
        %v1858 = vmul.f32 %v1672, 1.442695
        %v1859 = vpow.pop %v1858
        %v1860 = vmul.f32 %v1673, 1.442695
        %v1861 = vpow.pop %v1860
        %v1862 = vmul.f32 %v1674, 1.442695
        %v1863 = vpow.pop %v1862
        %v1864 = vmul.f32 %v1675, 1.442695
        %v1865 = vpow.pop %v1864
        %v1866 = vmul.f32 %v1676, 1.442695
        %v1867 = vpow.pop %v1866
        %v1868 = vmul.f32 %v1677, 1.442695
        %v1869 = vpow.pop %v1868
        %v1870 = vmul.f32 %v1678, 1.442695
        %v1871 = vpow.pop %v1870
        %v1872 = vmul.f32 %v1679, 1.442695
        %v1873 = vpow.pop %v1872
        %v1874 = vmul.f32 %v1680, 1.442695
        %v1875 = vpow.pop %v1874
        %v1876 = vmul.f32 %v1681, 1.442695
        %v1877 = vpow.pop %v1876
        %v1878 = vmul.f32 %v1682, 1.442695
        %v1879 = vpow.pop %v1878
        %v1880 = vmul.f32 %v1683, 1.442695
        %v1881 = vpow.pop %v1880
        %v1882 = vmul.f32 %v1684, 1.442695
        %v1883 = vpow.pop %v1882
        %v1884 = vmul.f32 %v1685, 1.442695
        %v1885 = vpow.pop %v1884
        %v1886 = vmul.f32 %v1686, 1.442695
        %v1887 = vpow.pop %v1886
        %v1888 = vmul.f32 %v1687, 1.442695
        %v1889 = vpow.pop %v1888
        %v1890 = vmul.f32 %v1688, 1.442695
        %v1891 = vpow.pop %v1890
        %v1892 = vmul.f32 %v1689, 1.442695
        %v1893 = vpow.pop %v1892
        %v1894 = vmul.f32 %v1690, 1.442695
        %v1895 = vpow.pop %v1894
        %v1896 = vmul.f32 %v1691, 1.442695
        %v1897 = vpow.pop %v1896
        %v1898 = vmul.f32 %v1692, 1.442695
        %v1899 = vpow.pop %v1898
        %v1900 = vmul.f32 %v1693, 1.442695
        %v1901 = vpow.pop %v1900
        %v1902 = vmul.f32 %v1694, 1.442695
        %v1903 = vpow.pop %v1902
        %v1904 = vmul.f32 %v1695, 1.442695
        %v1905 = vpow.pop %v1904
        %v1906 = vmul.f32 %v1696, 1.442695
        %v1907 = vpow.pop %v1906
        %v1908 = vmul.f32 %v1697, 1.442695
        %v1909 = vpow.pop %v1908
        %v1910 = vmul.f32 %v1698, 1.442695
        %v1911 = vpow.pop %v1910
        %v1912 = vmul.f32 %v1699, 1.442695
        %v1913 = vpow.pop %v1912
        %v1914 = vmul.f32 %v1700, 1.442695
        %v1915 = vpow.pop %v1914
        %v1916 = vmul.f32 %v1701, 1.442695
        %v1917 = vpow.pop %v1916
        %v1918 = vmul.f32 %v1702, 1.442695
        %v1919 = vpow.pop %v1918
        %v1920 = vmul.f32 %v1703, 1.442695
        %v1921 = vpow.pop %v1920
        %v1922 = vmul.f32 %v1704, 1.442695
        %v1923 = vpow.pop %v1922
        %v1924 = vmul.f32 %v1705, 1.442695
        %v1925 = vpow.pop %v1924
        %v1926 = vmul.f32 %v1706, 1.442695
        %v1927 = vpow.pop %v1926
        %v1928 = vmul.f32 %v1707, 1.442695
        %v1929 = vpow.pop %v1928
        %v1930 = vmul.f32 %v1708, 1.442695
        %v1931 = vpow.pop %v1930
        %v1932 = vmul.f32 %v1709, 1.442695
        %v1933 = vpow.pop %v1932
        %v1934 = vmul.f32 %v1710, 1.442695
        %v1935 = vpow.pop %v1934
        %v1936 = vmul.f32 %v1711, 1.442695
        %v1937 = vpow.pop %v1936
        %v1938 = vmul.f32 %v1712, 1.442695
        %v1939 = vpow.pop %v1938
        %v1940 = vmul.f32 %v1713, 1.442695
        %v1941 = vpow.pop %v1940
        %v1942 = vmul.f32 %v1714, 1.442695
        %v1943 = vpow.pop %v1942
        %v1944 = vmul.f32 %v1715, 1.442695
        %v1945 = vpow.pop %v1944
        %v1946 = vmul.f32 %v1716, 1.442695
        %v1947 = vpow.pop %v1946
        %v1948 = vmul.f32 %v1717, 1.442695
        %v1949 = vpow.pop %v1948
        %v1950 = vmul.f32 %v1718, 1.442695
        %v1951 = vpow.pop %v1950
        %v1952 = vmul.f32 %v1719, 1.442695
        %v1953 = vpow.pop %v1952
        %v1954 = vmul.f32 %v1720, 1.442695
        %v1955 = vpow.pop %v1954
        %v1956 = vmul.f32 %v1721, 1.442695
        %v1957 = vpow.pop %v1956
        %v1958 = vmul.f32 %v1722, 1.442695
        %v1959 = vpow.pop %v1958
        %v1960 = vmul.f32 %v1723, 1.442695
        %v1961 = vpow.pop %v1960
        %v1962 = vmul.f32 %v1724, 1.442695
        %v1963 = vpow.pop %v1962
        %v1964 = vmul.f32 %v1725, 1.442695
        %v1965 = vpow.pop %v1964
        %v1966 = vmul.f32 %v1726, 1.442695
        %v1967 = vpow.pop %v1966
        %v1968 = vmul.f32 %v1727, 1.442695
        %v1969 = vpow.pop %v1968
        %v1970 = vmul.f32 %v1728, 1.442695
        %v1971 = vpow.pop %v1970
        %v1972 = vmul.f32 %v1729, 1.442695
        %v1973 = vpow.pop %v1972
        %v1974 = vmul.f32 %v1730, 1.442695
        %v1975 = vpow.pop %v1974
        %v1976 = vmul.f32 %v1731, 1.442695
        %v1977 = vpow.pop %v1976
        %v1978 = vmul.f32 %v1732, 1.442695
        %v1979 = vpow.pop %v1978
        %v1980 = vmul.f32 %v1733, 1.442695
        %v1981 = vpow.pop %v1980
        %v1982 = vmul.f32 %v1734, 1.442695
        %v1983 = vpow.pop %v1982
        %v1984 = vmul.f32 %v1735, 1.442695
        %v1985 = vpow.pop %v1984
        %v1986 = vmul.f32 %v1736, 1.442695
        %v1987 = vpow.pop %v1986
        %v1988 = vmul.f32 %v1737, 1.442695
        %v1989 = vpow.pop %v1988
        %v1990 = vmul.f32 %v1738, 1.442695
        %v1991 = vpow.pop %v1990
        %v1992 = vmul.f32 %v1739, 1.442695
        %v1993 = vpow.pop %v1992
        %v1994 = vmul.f32 %v1740, 1.442695
        %v1995 = vpow.pop %v1994
        %v1996 = vmul.f32 %v1741, 1.442695
        %v1997 = vpow.pop %v1996
        %v1998 = vpack.c.bf16 %v1747, %v1743
        %v1999 = vpack.c.bf16 %v1749, %v1745
        %v2000 = vpack.c.bf16 %v1755, %v1751
        %v2001 = vpack.c.bf16 %v1757, %v1753
        %v2002 = vpack.c.bf16 %v1763, %v1759
        %v2003 = vpack.c.bf16 %v1765, %v1761
        %v2004 = vpack.c.bf16 %v1771, %v1767
        %v2005 = vpack.c.bf16 %v1773, %v1769
        %v2006 = vpack.c.bf16 %v1779, %v1775
        %v2007 = vpack.c.bf16 %v1781, %v1777
        %v2008 = vpack.c.bf16 %v1787, %v1783
        %v2009 = vpack.c.bf16 %v1789, %v1785
        %v2010 = vpack.c.bf16 %v1795, %v1791
        %v2011 = vpack.c.bf16 %v1797, %v1793
        %v2012 = vpack.c.bf16 %v1803, %v1799
        %v2013 = vpack.c.bf16 %v1805, %v1801
        %v2014 = vpack.c.bf16 %v1811, %v1807
        %v2015 = vpack.c.bf16 %v1813, %v1809
        %v2016 = vpack.c.bf16 %v1819, %v1815
        %v2017 = vpack.c.bf16 %v1821, %v1817
        %v2018 = vpack.c.bf16 %v1827, %v1823
        %v2019 = vpack.c.bf16 %v1829, %v1825
        %v2020 = vpack.c.bf16 %v1835, %v1831
        %v2021 = vpack.c.bf16 %v1837, %v1833
        %v2022 = vpack.c.bf16 %v1843, %v1839
        %v2023 = vpack.c.bf16 %v1845, %v1841
        %v2024 = vpack.c.bf16 %v1851, %v1847
        %v2025 = vpack.c.bf16 %v1853, %v1849
        %v2026 = vpack.c.bf16 %v1859, %v1855
        %v2027 = vpack.c.bf16 %v1861, %v1857
        %v2028 = vpack.c.bf16 %v1867, %v1863
        %v2029 = vpack.c.bf16 %v1869, %v1865
        %v2030 = vpack.c.bf16 %v1875, %v1871
        %v2031 = vpack.c.bf16 %v1877, %v1873
        %v2032 = vpack.c.bf16 %v1883, %v1879
        %v2033 = vpack.c.bf16 %v1885, %v1881
        %v2034 = vpack.c.bf16 %v1891, %v1887
        %v2035 = vpack.c.bf16 %v1893, %v1889
        %v2036 = vpack.c.bf16 %v1899, %v1895
        %v2037 = vpack.c.bf16 %v1901, %v1897
        %v2038 = vpack.c.bf16 %v1907, %v1903
        %v2039 = vpack.c.bf16 %v1909, %v1905
        %v2040 = vpack.c.bf16 %v1915, %v1911
        %v2041 = vpack.c.bf16 %v1917, %v1913
        %v2042 = vpack.c.bf16 %v1923, %v1919
        %v2043 = vpack.c.bf16 %v1925, %v1921
        %v2044 = vpack.c.bf16 %v1931, %v1927
        %v2045 = vpack.c.bf16 %v1933, %v1929
        %v2046 = vpack.c.bf16 %v1939, %v1935
        %v2047 = vpack.c.bf16 %v1941, %v1937
        %v2048 = vpack.c.bf16 %v1947, %v1943
        %v2049 = vpack.c.bf16 %v1949, %v1945
        %v2050 = vpack.c.bf16 %v1955, %v1951
        %v2051 = vpack.c.bf16 %v1957, %v1953
        %v2052 = vpack.c.bf16 %v1963, %v1959
        %v2053 = vpack.c.bf16 %v1965, %v1961
        %v2054 = vpack.c.bf16 %v1971, %v1967
        %v2055 = vpack.c.bf16 %v1973, %v1969
        %v2056 = vpack.c.bf16 %v1979, %v1975
        %v2057 = vpack.c.bf16 %v1981, %v1977
        %v2058 = vpack.c.bf16 %v1987, %v1983
        %v2059 = vpack.c.bf16 %v1989, %v1985
        %v2060 = vpack.c.bf16 %v1995, %v1991
        %v2061 = vpack.c.bf16 %v1997, %v1993
        %v2062 = vpack.c.b16 %v768, %v768
        %v2063 = vpack.c.b16 %v769, %v769
        %2066 = vmatprep.subr.bf16.mxu0 %v1999
        %2067 = vmatpush1.bf16.xpose.msra.mxu0 %v1998
        %2068 = vmatprep.subr.bf16.mxu0 %v2001
        %2069 = vmatpush1.bf16.xpose.msra.mxu0 %v2000
        %2070 = vmatprep.subr.bf16.mxu0 %v2003
        %2071 = vmatpush1.bf16.xpose.msra.mxu0 %v2002
        %2072 = vmatprep.subr.bf16.mxu0 %v2005
        %2073 = vmatpush1.bf16.xpose.msra.mxu0 %v2004
        %2074 = vmatprep.subr.bf16.mxu0 %v2007
        %2075 = vmatpush1.bf16.xpose.msra.mxu0 %v2006
        %2076 = vmatprep.subr.bf16.mxu0 %v2009
        %2077 = vmatpush1.bf16.xpose.msra.mxu0 %v2008
        %2078 = vmatprep.subr.bf16.mxu0 %v2011
        %2079 = vmatpush1.bf16.xpose.msra.mxu0 %v2010
        %2080 = vmatprep.subr.bf16.mxu0 %v2013
        %2081 = vmatpush1.bf16.xpose.msra.mxu0 %v2012
        %2082 = vmatprep.subr.bf16.mxu0 0
        %2083 = vmatpush1.bf16.xpose.msra.mxu0 0
        %2084 = vmatprep.subr.bf16.mxu0 0
        %2085 = vmatpush1.bf16.xpose.msra.mxu0 0
        %2086 = vmatprep.subr.bf16.mxu0 0
        %2087 = vmatpush1.bf16.xpose.msra.mxu0 0
        %2088 = vmatprep.subr.bf16.mxu0 0
        %2089 = vmatpush1.bf16.xpose.msra.mxu0 0
        %2090 = vmatprep.subr.bf16.mxu0 0
        %2091 = vmatpush1.bf16.xpose.msra.mxu0 0
        %2092 = vmatprep.subr.bf16.mxu0 0
        %2093 = vmatpush1.bf16.xpose.msra.mxu0 0
        %2094 = vmatprep.subr.bf16.mxu0 0
        %2095 = vmatpush1.bf16.xpose.msra.mxu0 0
        %2096 = vmatprep.subr.bf16.mxu0 0
        %2097 = vmatpush1.bf16.xpose.msra.mxu0 0
        %2098 = vmatprep.mubr.bf16.mxu0 %v2063
        %2099 = vmatmul.mubr.bf16.gmra.mrb[0].mxu0 %v2062
        %v2100 = vpop.f32.mrb[0].mxu0
        %v2101 = vadd.f32 0.0, %v2100
        %v2102 = vpop.f32.mrb[0].mxu0
        %v2103 = vpop.f32.mrb[0].mxu0
        %v2104 = vpop.f32.mrb[0].mxu0
        %2105 = vdwg.mxu0
        %v2106 = vpack.c.b16 %v770, %v770
        %v2107 = vpack.c.b16 %v771, %v771
        %2110 = vmatprep.subr.bf16.mxu0 %v2015
        %2111 = vmatpush1.bf16.xpose.msra.mxu0 %v2014
        %2112 = vmatprep.subr.bf16.mxu0 %v2017
        %2113 = vmatpush1.bf16.xpose.msra.mxu0 %v2016
        %2114 = vmatprep.subr.bf16.mxu0 %v2019
        %2115 = vmatpush1.bf16.xpose.msra.mxu0 %v2018
        %2116 = vmatprep.subr.bf16.mxu0 %v2021
        %2117 = vmatpush1.bf16.xpose.msra.mxu0 %v2020
        %2118 = vmatprep.subr.bf16.mxu0 %v2023
        %2119 = vmatpush1.bf16.xpose.msra.mxu0 %v2022
        %2120 = vmatprep.subr.bf16.mxu0 %v2025
        %2121 = vmatpush1.bf16.xpose.msra.mxu0 %v2024
        %2122 = vmatprep.subr.bf16.mxu0 %v2027
        %2123 = vmatpush1.bf16.xpose.msra.mxu0 %v2026
        %2124 = vmatprep.subr.bf16.mxu0 %v2029
        %2125 = vmatpush1.bf16.xpose.msra.mxu0 %v2028
        %2126 = vmatprep.subr.bf16.mxu0 0
        %2127 = vmatpush1.bf16.xpose.msra.mxu0 0
        %2128 = vmatprep.subr.bf16.mxu0 0
        %2129 = vmatpush1.bf16.xpose.msra.mxu0 0
        %2130 = vmatprep.subr.bf16.mxu0 0
        %2131 = vmatpush1.bf16.xpose.msra.mxu0 0
        %2132 = vmatprep.subr.bf16.mxu0 0
        %2133 = vmatpush1.bf16.xpose.msra.mxu0 0
        %2134 = vmatprep.subr.bf16.mxu0 0
        %2135 = vmatpush1.bf16.xpose.msra.mxu0 0
        %2136 = vmatprep.subr.bf16.mxu0 0
        %2137 = vmatpush1.bf16.xpose.msra.mxu0 0
        %2138 = vmatprep.subr.bf16.mxu0 0
        %2139 = vmatpush1.bf16.xpose.msra.mxu0 0
        %2140 = vmatprep.subr.bf16.mxu0 0
        %2141 = vmatpush1.bf16.xpose.msra.mxu0 0
        %2142 = vmatprep.mubr.bf16.mxu0 %v2107
        %2143 = vmatmul.mubr.bf16.gmra.mrb[0].mxu0 %v2106
        %v2144 = vpop.f32.mrb[0].mxu0
        %v2145 = vadd.f32 0.0, %v2144
        %v2146 = vpop.f32.mrb[0].mxu0
        %v2147 = vpop.f32.mrb[0].mxu0
        %v2148 = vpop.f32.mrb[0].mxu0
        %2149 = vdwg.mxu0
        %v2150 = vpack.c.b16 %v772, %v772
        %v2151 = vpack.c.b16 %v773, %v773
        %2154 = vmatprep.subr.bf16.mxu0 %v2031
        %2155 = vmatpush1.bf16.xpose.msra.mxu0 %v2030
        %2156 = vmatprep.subr.bf16.mxu0 %v2033
        %2157 = vmatpush1.bf16.xpose.msra.mxu0 %v2032
        %2158 = vmatprep.subr.bf16.mxu0 %v2035
        %2159 = vmatpush1.bf16.xpose.msra.mxu0 %v2034
        %2160 = vmatprep.subr.bf16.mxu0 %v2037
        %2161 = vmatpush1.bf16.xpose.msra.mxu0 %v2036
        %2162 = vmatprep.subr.bf16.mxu0 %v2039
        %2163 = vmatpush1.bf16.xpose.msra.mxu0 %v2038
        %2164 = vmatprep.subr.bf16.mxu0 %v2041
        %2165 = vmatpush1.bf16.xpose.msra.mxu0 %v2040
        %2166 = vmatprep.subr.bf16.mxu0 %v2043
        %2167 = vmatpush1.bf16.xpose.msra.mxu0 %v2042
        %2168 = vmatprep.subr.bf16.mxu0 %v2045
        %2169 = vmatpush1.bf16.xpose.msra.mxu0 %v2044
        %2170 = vmatprep.subr.bf16.mxu0 0
        %2171 = vmatpush1.bf16.xpose.msra.mxu0 0
        %2172 = vmatprep.subr.bf16.mxu0 0
        %2173 = vmatpush1.bf16.xpose.msra.mxu0 0
        %2174 = vmatprep.subr.bf16.mxu0 0
        %2175 = vmatpush1.bf16.xpose.msra.mxu0 0
        %2176 = vmatprep.subr.bf16.mxu0 0
        %2177 = vmatpush1.bf16.xpose.msra.mxu0 0
        %2178 = vmatprep.subr.bf16.mxu0 0
        %2179 = vmatpush1.bf16.xpose.msra.mxu0 0
        %2180 = vmatprep.subr.bf16.mxu0 0
        %2181 = vmatpush1.bf16.xpose.msra.mxu0 0
        %2182 = vmatprep.subr.bf16.mxu0 0
        %2183 = vmatpush1.bf16.xpose.msra.mxu0 0
        %2184 = vmatprep.subr.bf16.mxu0 0
        %2185 = vmatpush1.bf16.xpose.msra.mxu0 0
        %2186 = vmatprep.mubr.bf16.mxu0 %v2151
        %2187 = vmatmul.mubr.bf16.gmra.mrb[0].mxu0 %v2150
        %v2188 = vpop.f32.mrb[0].mxu0
        %v2189 = vadd.f32 0.0, %v2188
        %v2190 = vpop.f32.mrb[0].mxu0
        %v2191 = vpop.f32.mrb[0].mxu0
        %v2192 = vpop.f32.mrb[0].mxu0
        %2193 = vdwg.mxu0
        %v2194 = vpack.c.b16 %v774, %v774
        %v2195 = vpack.c.b16 %v775, %v775
        %2198 = vmatprep.subr.bf16.mxu0 %v2047
        %2199 = vmatpush1.bf16.xpose.msra.mxu0 %v2046
        %2200 = vmatprep.subr.bf16.mxu0 %v2049
        %2201 = vmatpush1.bf16.xpose.msra.mxu0 %v2048
        %2202 = vmatprep.subr.bf16.mxu0 %v2051
        %2203 = vmatpush1.bf16.xpose.msra.mxu0 %v2050
        %2204 = vmatprep.subr.bf16.mxu0 %v2053
        %2205 = vmatpush1.bf16.xpose.msra.mxu0 %v2052
        %2206 = vmatprep.subr.bf16.mxu0 %v2055
        %2207 = vmatpush1.bf16.xpose.msra.mxu0 %v2054
        %2208 = vmatprep.subr.bf16.mxu0 %v2057
        %2209 = vmatpush1.bf16.xpose.msra.mxu0 %v2056
        %2210 = vmatprep.subr.bf16.mxu0 %v2059
        %2211 = vmatpush1.bf16.xpose.msra.mxu0 %v2058
        %2212 = vmatprep.subr.bf16.mxu0 %v2061
        %2213 = vmatpush1.bf16.xpose.msra.mxu0 %v2060
        %2214 = vmatprep.subr.bf16.mxu0 0
        %2215 = vmatpush1.bf16.xpose.msra.mxu0 0
        %2216 = vmatprep.subr.bf16.mxu0 0
        %2217 = vmatpush1.bf16.xpose.msra.mxu0 0
        %2218 = vmatprep.subr.bf16.mxu0 0
        %2219 = vmatpush1.bf16.xpose.msra.mxu0 0
        %2220 = vmatprep.subr.bf16.mxu0 0
        %2221 = vmatpush1.bf16.xpose.msra.mxu0 0
        %2222 = vmatprep.subr.bf16.mxu0 0
        %2223 = vmatpush1.bf16.xpose.msra.mxu0 0
        %2224 = vmatprep.subr.bf16.mxu0 0
        %2225 = vmatpush1.bf16.xpose.msra.mxu0 0
        %2226 = vmatprep.subr.bf16.mxu0 0
        %2227 = vmatpush1.bf16.xpose.msra.mxu0 0
        %2228 = vmatprep.subr.bf16.mxu0 0
        %2229 = vmatpush1.bf16.xpose.msra.mxu0 0
        %2230 = vmatprep.mubr.bf16.mxu0 %v2195
        %2231 = vmatmul.mubr.bf16.gmra.mrb[0].mxu0 %v2194
        %v2232 = vpop.f32.mrb[0].mxu0
        %v2233 = vadd.f32 0.0, %v2232
        %v2234 = vpop.f32.mrb[0].mxu0
        %v2235 = vpop.f32.mrb[0].mxu0
        %v2236 = vpop.f32.mrb[0].mxu0
        %2237 = vdwg.mxu0
        %v2238 = vadd.f32 %v1743, %v1745
        %2239 = vadd.xlane.f32.xlu0 %v2238
        %v2240 = vpop.xlane.xlu0 %2239
        %v2241 = vadd.f32 %v1747, %v1749
        %2242 = vadd.xlane.f32.xlu0 %v2241
        %v2243 = vpop.xlane.xlu0 %2242
        %v2244 = vadd.f32 %v1751, %v1753
        %2245 = vadd.xlane.f32.xlu0 %v2244
        %v2246 = vpop.xlane.xlu0 %2245
        %v2247 = vadd.f32 %v1755, %v1757
        %2248 = vadd.xlane.f32.xlu0 %v2247
        %v2249 = vpop.xlane.xlu0 %2248
        %v2250 = vadd.f32 %v1759, %v1761
        %2251 = vadd.xlane.f32.xlu0 %v2250
        %v2252 = vpop.xlane.xlu0 %2251
        %v2253 = vadd.f32 %v1763, %v1765
        %2254 = vadd.xlane.f32.xlu0 %v2253
        %v2255 = vpop.xlane.xlu0 %2254
        %v2256 = vadd.f32 %v1767, %v1769
        %2257 = vadd.xlane.f32.xlu0 %v2256
        %v2258 = vpop.xlane.xlu0 %2257
        %v2259 = vadd.f32 %v1771, %v1773
        %2260 = vadd.xlane.f32.xlu0 %v2259
        %v2261 = vpop.xlane.xlu0 %2260
        %v2262 = vadd.f32 %v1775, %v1777
        %2263 = vadd.xlane.f32.xlu0 %v2262
        %v2264 = vpop.xlane.xlu0 %2263
        %v2265 = vadd.f32 %v1779, %v1781
        %2266 = vadd.xlane.f32.xlu0 %v2265
        %v2267 = vpop.xlane.xlu0 %2266
        %v2268 = vadd.f32 %v1783, %v1785
        %2269 = vadd.xlane.f32.xlu0 %v2268
        %v2270 = vpop.xlane.xlu0 %2269
        %v2271 = vadd.f32 %v1787, %v1789
        %2272 = vadd.xlane.f32.xlu0 %v2271
        %v2273 = vpop.xlane.xlu0 %2272
        %v2274 = vadd.f32 %v1791, %v1793
        %2275 = vadd.xlane.f32.xlu0 %v2274
        %v2276 = vpop.xlane.xlu0 %2275
        %v2277 = vadd.f32 %v1795, %v1797
        %2278 = vadd.xlane.f32.xlu0 %v2277
        %v2279 = vpop.xlane.xlu0 %2278
        %v2280 = vadd.f32 %v1799, %v1801
        %2281 = vadd.xlane.f32.xlu0 %v2280
        %v2282 = vpop.xlane.xlu0 %2281
        %v2283 = vadd.f32 %v1803, %v1805
        %2284 = vadd.xlane.f32.xlu0 %v2283
        %v2285 = vpop.xlane.xlu0 %2284
        %v2286 = vadd.f32 %v1807, %v1809
        %2287 = vadd.xlane.f32.xlu0 %v2286
        %v2288 = vpop.xlane.xlu0 %2287
        %v2289 = vadd.f32 %v1811, %v1813
        %2290 = vadd.xlane.f32.xlu0 %v2289
        %v2291 = vpop.xlane.xlu0 %2290
        %v2292 = vadd.f32 %v1815, %v1817
        %2293 = vadd.xlane.f32.xlu0 %v2292
        %v2294 = vpop.xlane.xlu0 %2293
        %v2295 = vadd.f32 %v1819, %v1821
        %2296 = vadd.xlane.f32.xlu0 %v2295
        %v2297 = vpop.xlane.xlu0 %2296
        %v2298 = vadd.f32 %v1823, %v1825
        %2299 = vadd.xlane.f32.xlu0 %v2298
        %v2300 = vpop.xlane.xlu0 %2299
        %v2301 = vadd.f32 %v1827, %v1829
        %2302 = vadd.xlane.f32.xlu0 %v2301
        %v2303 = vpop.xlane.xlu0 %2302
        %v2304 = vadd.f32 %v1831, %v1833
        %2305 = vadd.xlane.f32.xlu0 %v2304
        %v2306 = vpop.xlane.xlu0 %2305
        %v2307 = vadd.f32 %v1835, %v1837
        %2308 = vadd.xlane.f32.xlu0 %v2307
        %v2309 = vpop.xlane.xlu0 %2308
        %v2310 = vadd.f32 %v1839, %v1841
        %2311 = vadd.xlane.f32.xlu0 %v2310
        %v2312 = vpop.xlane.xlu0 %2311
        %v2313 = vadd.f32 %v1843, %v1845
        %2314 = vadd.xlane.f32.xlu0 %v2313
        %v2315 = vpop.xlane.xlu0 %2314
        %v2316 = vadd.f32 %v1847, %v1849
        %2317 = vadd.xlane.f32.xlu0 %v2316
        %v2318 = vpop.xlane.xlu0 %2317
        %v2319 = vadd.f32 %v1851, %v1853
        %2320 = vadd.xlane.f32.xlu0 %v2319
        %v2321 = vpop.xlane.xlu0 %2320
        %v2322 = vadd.f32 %v1855, %v1857
        %2323 = vadd.xlane.f32.xlu0 %v2322
        %v2324 = vpop.xlane.xlu0 %2323
        %v2325 = vadd.f32 %v1859, %v1861
        %2326 = vadd.xlane.f32.xlu0 %v2325
        %v2327 = vpop.xlane.xlu0 %2326
        %v2328 = vadd.f32 %v1863, %v1865
        %2329 = vadd.xlane.f32.xlu0 %v2328
        %v2330 = vpop.xlane.xlu0 %2329
        %v2331 = vadd.f32 %v1867, %v1869
        %2332 = vadd.xlane.f32.xlu0 %v2331
        %v2333 = vpop.xlane.xlu0 %2332
        %v2334 = vadd.f32 %v1871, %v1873
        %2335 = vadd.xlane.f32.xlu0 %v2334
        %v2336 = vpop.xlane.xlu0 %2335
        %v2337 = vadd.f32 %v1875, %v1877
        %2338 = vadd.xlane.f32.xlu0 %v2337
        %v2339 = vpop.xlane.xlu0 %2338
        %v2340 = vadd.f32 %v1879, %v1881
        %2341 = vadd.xlane.f32.xlu0 %v2340
        %v2342 = vpop.xlane.xlu0 %2341
        %v2343 = vadd.f32 %v1883, %v1885
        %2344 = vadd.xlane.f32.xlu0 %v2343
        %v2345 = vpop.xlane.xlu0 %2344
        %v2346 = vadd.f32 %v1887, %v1889
        %2347 = vadd.xlane.f32.xlu0 %v2346
        %v2348 = vpop.xlane.xlu0 %2347
        %v2349 = vadd.f32 %v1891, %v1893
        %2350 = vadd.xlane.f32.xlu0 %v2349
        %v2351 = vpop.xlane.xlu0 %2350
        %v2352 = vadd.f32 %v1895, %v1897
        %2353 = vadd.xlane.f32.xlu0 %v2352
        %v2354 = vpop.xlane.xlu0 %2353
        %v2355 = vadd.f32 %v1899, %v1901
        %2356 = vadd.xlane.f32.xlu0 %v2355
        %v2357 = vpop.xlane.xlu0 %2356
        %v2358 = vadd.f32 %v1903, %v1905
        %2359 = vadd.xlane.f32.xlu0 %v2358
        %v2360 = vpop.xlane.xlu0 %2359
        %v2361 = vadd.f32 %v1907, %v1909
        %2362 = vadd.xlane.f32.xlu0 %v2361
        %v2363 = vpop.xlane.xlu0 %2362
        %v2364 = vadd.f32 %v1911, %v1913
        %2365 = vadd.xlane.f32.xlu0 %v2364
        %v2366 = vpop.xlane.xlu0 %2365
        %v2367 = vadd.f32 %v1915, %v1917
        %2368 = vadd.xlane.f32.xlu0 %v2367
        %v2369 = vpop.xlane.xlu0 %2368
        %v2370 = vadd.f32 %v1919, %v1921
        %2371 = vadd.xlane.f32.xlu0 %v2370
        %v2372 = vpop.xlane.xlu0 %2371
        %v2373 = vadd.f32 %v1923, %v1925
        %2374 = vadd.xlane.f32.xlu0 %v2373
        %v2375 = vpop.xlane.xlu0 %2374
        %v2376 = vadd.f32 %v1927, %v1929
        %2377 = vadd.xlane.f32.xlu0 %v2376
        %v2378 = vpop.xlane.xlu0 %2377
        %v2379 = vadd.f32 %v1931, %v1933
        %2380 = vadd.xlane.f32.xlu0 %v2379
        %v2381 = vpop.xlane.xlu0 %2380
        %v2382 = vadd.f32 %v1935, %v1937
        %2383 = vadd.xlane.f32.xlu0 %v2382
        %v2384 = vpop.xlane.xlu0 %2383
        %v2385 = vadd.f32 %v1939, %v1941
        %2386 = vadd.xlane.f32.xlu0 %v2385
        %v2387 = vpop.xlane.xlu0 %2386
        %v2388 = vadd.f32 %v1943, %v1945
        %2389 = vadd.xlane.f32.xlu0 %v2388
        %v2390 = vpop.xlane.xlu0 %2389
        %v2391 = vadd.f32 %v1947, %v1949
        %2392 = vadd.xlane.f32.xlu0 %v2391
        %v2393 = vpop.xlane.xlu0 %2392
        %v2394 = vadd.f32 %v1951, %v1953
        %2395 = vadd.xlane.f32.xlu0 %v2394
        %v2396 = vpop.xlane.xlu0 %2395
        %v2397 = vadd.f32 %v1955, %v1957
        %2398 = vadd.xlane.f32.xlu0 %v2397
        %v2399 = vpop.xlane.xlu0 %2398
        %v2400 = vadd.f32 %v1959, %v1961
        %2401 = vadd.xlane.f32.xlu0 %v2400
        %v2402 = vpop.xlane.xlu0 %2401
        %v2403 = vadd.f32 %v1963, %v1965
        %2404 = vadd.xlane.f32.xlu0 %v2403
        %v2405 = vpop.xlane.xlu0 %2404
        %v2406 = vadd.f32 %v1967, %v1969
        %2407 = vadd.xlane.f32.xlu0 %v2406
        %v2408 = vpop.xlane.xlu0 %2407
        %v2409 = vadd.f32 %v1971, %v1973
        %2410 = vadd.xlane.f32.xlu0 %v2409
        %v2411 = vpop.xlane.xlu0 %2410
        %v2412 = vadd.f32 %v1975, %v1977
        %2413 = vadd.xlane.f32.xlu0 %v2412
        %v2414 = vpop.xlane.xlu0 %2413
        %v2415 = vadd.f32 %v1979, %v1981
        %2416 = vadd.xlane.f32.xlu0 %v2415
        %v2417 = vpop.xlane.xlu0 %2416
        %v2418 = vadd.f32 %v1983, %v1985
        %2419 = vadd.xlane.f32.xlu0 %v2418
        %v2420 = vpop.xlane.xlu0 %2419
        %v2421 = vadd.f32 %v1987, %v1989
        %2422 = vadd.xlane.f32.xlu0 %v2421
        %v2423 = vpop.xlane.xlu0 %2422
        %v2424 = vadd.f32 %v1991, %v1993
        %2425 = vadd.xlane.f32.xlu0 %v2424
        %v2426 = vpop.xlane.xlu0 %2425
        %v2427 = vadd.f32 %v1995, %v1997
        %2428 = vadd.xlane.f32.xlu0 %v2427
        %v2429 = vpop.xlane.xlu0 %2428
        %v2430 = vrcp.pop %v2240
        %v2431 = vrcp.pop %v2243
        %v2432 = vrcp.pop %v2246
        %v2433 = vrcp.pop %v2249
        %v2434 = vrcp.pop %v2252
        %v2435 = vrcp.pop %v2255
        %v2436 = vrcp.pop %v2258
        %v2437 = vrcp.pop %v2261
        %v2438 = vrcp.pop %v2264
        %v2439 = vrcp.pop %v2267
        %v2440 = vrcp.pop %v2270
        %v2441 = vrcp.pop %v2273
        %v2442 = vrcp.pop %v2276
        %v2443 = vrcp.pop %v2279
        %v2444 = vrcp.pop %v2282
        %v2445 = vrcp.pop %v2285
        %v2446 = vrcp.pop %v2288
        %v2447 = vrcp.pop %v2291
        %v2448 = vrcp.pop %v2294
        %v2449 = vrcp.pop %v2297
        %v2450 = vrcp.pop %v2300
        %v2451 = vrcp.pop %v2303
        %v2452 = vrcp.pop %v2306
        %v2453 = vrcp.pop %v2309
        %v2454 = vrcp.pop %v2312
        %v2455 = vrcp.pop %v2315
        %v2456 = vrcp.pop %v2318
        %v2457 = vrcp.pop %v2321
        %v2458 = vrcp.pop %v2324
        %v2459 = vrcp.pop %v2327
        %v2460 = vrcp.pop %v2330
        %v2461 = vrcp.pop %v2333
        %v2462 = vrcp.pop %v2336
        %v2463 = vrcp.pop %v2339
        %v2464 = vrcp.pop %v2342
        %v2465 = vrcp.pop %v2345
        %v2466 = vrcp.pop %v2348
        %v2467 = vrcp.pop %v2351
        %v2468 = vrcp.pop %v2354
        %v2469 = vrcp.pop %v2357
        %v2470 = vrcp.pop %v2360
        %v2471 = vrcp.pop %v2363
        %v2472 = vrcp.pop %v2366
        %v2473 = vrcp.pop %v2369
        %v2474 = vrcp.pop %v2372
        %v2475 = vrcp.pop %v2375
        %v2476 = vrcp.pop %v2378
        %v2477 = vrcp.pop %v2381
        %v2478 = vrcp.pop %v2384
        %v2479 = vrcp.pop %v2387
        %v2480 = vrcp.pop %v2390
        %v2481 = vrcp.pop %v2393
        %v2482 = vrcp.pop %v2396
        %v2483 = vrcp.pop %v2399
        %v2484 = vrcp.pop %v2402
        %v2485 = vrcp.pop %v2405
        %v2486 = vrcp.pop %v2408
        %v2487 = vrcp.pop %v2411
        %v2488 = vrcp.pop %v2414
        %v2489 = vrcp.pop %v2417
        %v2490 = vrcp.pop %v2420
        %v2491 = vrcp.pop %v2423
        %v2492 = vrcp.pop %v2426
        %v2493 = vrcp.pop %v2429
        %v2558 = vlaneseq
        %v2559 = vand.u32 %v2558, 127
        %v2560 = vlaneseq
        %v2561 = vshrl.u32 %v2560, 7
        %v2562 = vsub.s32 %v2559, %v2561
        %v2563 = vrot.slane %v2430, %v2562
        %v2564 = vadd.s32 %v2559, 4294967288
        %v2565 = vlaneseq
        %v2566 = vshrl.u32 %v2565, 7
        %v2567 = vsub.s32 %v2564, %v2566
        %v2568 = vrot.slane %v2431, %v2567
        %vm2569 = vcmask 130112
        %v2570 = vsel %vm2569, %v2568, %v2563
        %v2571 = vadd.s32 %v2559, 4294967280
        %v2572 = vlaneseq
        %v2573 = vshrl.u32 %v2572, 7
        %v2574 = vsub.s32 %v2571, %v2573
        %v2575 = vrot.slane %v2432, %v2574
        %vm2576 = vcmask 195712
        %v2577 = vsel %vm2576, %v2575, %v2570
        %v2578 = vadd.s32 %v2559, 4294967272
        %v2579 = vlaneseq
        %v2580 = vshrl.u32 %v2579, 7
        %v2581 = vsub.s32 %v2578, %v2580
        %v2582 = vrot.slane %v2433, %v2581
        %vm2583 = vcmask 261312
        %v2584 = vsel %vm2583, %v2582, %v2577
        %v2585 = vadd.s32 %v2559, 4294967264
        %v2586 = vlaneseq
        %v2587 = vshrl.u32 %v2586, 7
        %v2588 = vsub.s32 %v2585, %v2587
        %v2589 = vrot.slane %v2434, %v2588
        %vm2590 = vcmask 326912
        %v2591 = vsel %vm2590, %v2589, %v2584
        %v2592 = vadd.s32 %v2559, 4294967256
        %v2593 = vlaneseq
        %v2594 = vshrl.u32 %v2593, 7
        %v2595 = vsub.s32 %v2592, %v2594
        %v2596 = vrot.slane %v2435, %v2595
        %vm2597 = vcmask 392512
        %v2598 = vsel %vm2597, %v2596, %v2591
        %v2599 = vadd.s32 %v2559, 4294967248
        %v2600 = vlaneseq
        %v2601 = vshrl.u32 %v2600, 7
        %v2602 = vsub.s32 %v2599, %v2601
        %v2603 = vrot.slane %v2436, %v2602
        %vm2604 = vcmask 458112
        %v2605 = vsel %vm2604, %v2603, %v2598
        %v2606 = vadd.s32 %v2559, 4294967240
        %v2607 = vlaneseq
        %v2608 = vshrl.u32 %v2607, 7
        %v2609 = vsub.s32 %v2606, %v2608
        %v2610 = vrot.slane %v2437, %v2609
        %vm2611 = vcmask 523712
        %v2612 = vsel %vm2611, %v2610, %v2605
        %v2613 = vadd.s32 %v2559, 4294967232
        %v2614 = vlaneseq
        %v2615 = vshrl.u32 %v2614, 7
        %v2616 = vsub.s32 %v2613, %v2615
        %v2617 = vrot.slane %v2438, %v2616
        %vm2618 = vcmask 589312
        %v2619 = vsel %vm2618, %v2617, %v2612
        %v2620 = vadd.s32 %v2559, 4294967224
        %v2621 = vlaneseq
        %v2622 = vshrl.u32 %v2621, 7
        %v2623 = vsub.s32 %v2620, %v2622
        %v2624 = vrot.slane %v2439, %v2623
        %vm2625 = vcmask 654912
        %v2626 = vsel %vm2625, %v2624, %v2619
        %v2627 = vadd.s32 %v2559, 4294967216
        %v2628 = vlaneseq
        %v2629 = vshrl.u32 %v2628, 7
        %v2630 = vsub.s32 %v2627, %v2629
        %v2631 = vrot.slane %v2440, %v2630
        %vm2632 = vcmask 720512
        %v2633 = vsel %vm2632, %v2631, %v2626
        %v2634 = vadd.s32 %v2559, 4294967208
        %v2635 = vlaneseq
        %v2636 = vshrl.u32 %v2635, 7
        %v2637 = vsub.s32 %v2634, %v2636
        %v2638 = vrot.slane %v2441, %v2637
        %vm2639 = vcmask 786112
        %v2640 = vsel %vm2639, %v2638, %v2633
        %v2641 = vadd.s32 %v2559, 4294967200
        %v2642 = vlaneseq
        %v2643 = vshrl.u32 %v2642, 7
        %v2644 = vsub.s32 %v2641, %v2643
        %v2645 = vrot.slane %v2442, %v2644
        %vm2646 = vcmask 851712
        %v2647 = vsel %vm2646, %v2645, %v2640
        %v2648 = vadd.s32 %v2559, 4294967192
        %v2649 = vlaneseq
        %v2650 = vshrl.u32 %v2649, 7
        %v2651 = vsub.s32 %v2648, %v2650
        %v2652 = vrot.slane %v2443, %v2651
        %vm2653 = vcmask 917312
        %v2654 = vsel %vm2653, %v2652, %v2647
        %v2655 = vadd.s32 %v2559, 4294967184
        %v2656 = vlaneseq
        %v2657 = vshrl.u32 %v2656, 7
        %v2658 = vsub.s32 %v2655, %v2657
        %v2659 = vrot.slane %v2444, %v2658
        %vm2660 = vcmask 982912
        %v2661 = vsel %vm2660, %v2659, %v2654
        %v2662 = vadd.s32 %v2559, 4294967176
        %v2663 = vlaneseq
        %v2664 = vshrl.u32 %v2663, 7
        %v2665 = vsub.s32 %v2662, %v2664
        %v2666 = vrot.slane %v2445, %v2665
        %vm2667 = vcmask 1048512
        %v2668 = vsel %vm2667, %v2666, %v2661
        %v2669 = vlaneseq
        %v2670 = vshrl.u32 %v2669, 7
        %v2671 = vsub.s32 %v2559, %v2670
        %v2672 = vrot.slane %v2446, %v2671
        %v2673 = vlaneseq
        %v2674 = vshrl.u32 %v2673, 7
        %v2675 = vsub.s32 %v2564, %v2674
        %v2676 = vrot.slane %v2447, %v2675
        %v2677 = vsel %vm2569, %v2676, %v2672
        %v2678 = vlaneseq
        %v2679 = vshrl.u32 %v2678, 7
        %v2680 = vsub.s32 %v2571, %v2679
        %v2681 = vrot.slane %v2448, %v2680
        %v2682 = vsel %vm2576, %v2681, %v2677
        %v2683 = vlaneseq
        %v2684 = vshrl.u32 %v2683, 7
        %v2685 = vsub.s32 %v2578, %v2684
        %v2686 = vrot.slane %v2449, %v2685
        %v2687 = vsel %vm2583, %v2686, %v2682
        %v2688 = vlaneseq
        %v2689 = vshrl.u32 %v2688, 7
        %v2690 = vsub.s32 %v2585, %v2689
        %v2691 = vrot.slane %v2450, %v2690
        %v2692 = vsel %vm2590, %v2691, %v2687
        %v2693 = vlaneseq
        %v2694 = vshrl.u32 %v2693, 7
        %v2695 = vsub.s32 %v2592, %v2694
        %v2696 = vrot.slane %v2451, %v2695
        %v2697 = vsel %vm2597, %v2696, %v2692
        %v2698 = vlaneseq
        %v2699 = vshrl.u32 %v2698, 7
        %v2700 = vsub.s32 %v2599, %v2699
        %v2701 = vrot.slane %v2452, %v2700
        %v2702 = vsel %vm2604, %v2701, %v2697
        %v2703 = vlaneseq
        %v2704 = vshrl.u32 %v2703, 7
        %v2705 = vsub.s32 %v2606, %v2704
        %v2706 = vrot.slane %v2453, %v2705
        %v2707 = vsel %vm2611, %v2706, %v2702
        %v2708 = vlaneseq
        %v2709 = vshrl.u32 %v2708, 7
        %v2710 = vsub.s32 %v2613, %v2709
        %v2711 = vrot.slane %v2454, %v2710
        %v2712 = vsel %vm2618, %v2711, %v2707
        %v2713 = vlaneseq
        %v2714 = vshrl.u32 %v2713, 7
        %v2715 = vsub.s32 %v2620, %v2714
        %v2716 = vrot.slane %v2455, %v2715
        %v2717 = vsel %vm2625, %v2716, %v2712
        %v2718 = vlaneseq
        %v2719 = vshrl.u32 %v2718, 7
        %v2720 = vsub.s32 %v2627, %v2719
        %v2721 = vrot.slane %v2456, %v2720
        %v2722 = vsel %vm2632, %v2721, %v2717
        %v2723 = vlaneseq
        %v2724 = vshrl.u32 %v2723, 7
        %v2725 = vsub.s32 %v2634, %v2724
        %v2726 = vrot.slane %v2457, %v2725
        %v2727 = vsel %vm2639, %v2726, %v2722
        %v2728 = vlaneseq
        %v2729 = vshrl.u32 %v2728, 7
        %v2730 = vsub.s32 %v2641, %v2729
        %v2731 = vrot.slane %v2458, %v2730
        %v2732 = vsel %vm2646, %v2731, %v2727
        %v2733 = vlaneseq
        %v2734 = vshrl.u32 %v2733, 7
        %v2735 = vsub.s32 %v2648, %v2734
        %v2736 = vrot.slane %v2459, %v2735
        %v2737 = vsel %vm2653, %v2736, %v2732
        %v2738 = vlaneseq
        %v2739 = vshrl.u32 %v2738, 7
        %v2740 = vsub.s32 %v2655, %v2739
        %v2741 = vrot.slane %v2460, %v2740
        %v2742 = vsel %vm2660, %v2741, %v2737
        %v2743 = vlaneseq
        %v2744 = vshrl.u32 %v2743, 7
        %v2745 = vsub.s32 %v2662, %v2744
        %v2746 = vrot.slane %v2461, %v2745
        %v2747 = vsel %vm2667, %v2746, %v2742
        %v2748 = vlaneseq
        %v2749 = vshrl.u32 %v2748, 7
        %v2750 = vsub.s32 %v2559, %v2749
        %v2751 = vrot.slane %v2462, %v2750
        %v2752 = vlaneseq
        %v2753 = vshrl.u32 %v2752, 7
        %v2754 = vsub.s32 %v2564, %v2753
        %v2755 = vrot.slane %v2463, %v2754
        %v2756 = vsel %vm2569, %v2755, %v2751
        %v2757 = vlaneseq
        %v2758 = vshrl.u32 %v2757, 7
        %v2759 = vsub.s32 %v2571, %v2758
        %v2760 = vrot.slane %v2464, %v2759
        %v2761 = vsel %vm2576, %v2760, %v2756
        %v2762 = vlaneseq
        %v2763 = vshrl.u32 %v2762, 7
        %v2764 = vsub.s32 %v2578, %v2763
        %v2765 = vrot.slane %v2465, %v2764
        %v2766 = vsel %vm2583, %v2765, %v2761
        %v2767 = vlaneseq
        %v2768 = vshrl.u32 %v2767, 7
        %v2769 = vsub.s32 %v2585, %v2768
        %v2770 = vrot.slane %v2466, %v2769
        %v2771 = vsel %vm2590, %v2770, %v2766
        %v2772 = vlaneseq
        %v2773 = vshrl.u32 %v2772, 7
        %v2774 = vsub.s32 %v2592, %v2773
        %v2775 = vrot.slane %v2467, %v2774
        %v2776 = vsel %vm2597, %v2775, %v2771
        %v2777 = vlaneseq
        %v2778 = vshrl.u32 %v2777, 7
        %v2779 = vsub.s32 %v2599, %v2778
        %v2780 = vrot.slane %v2468, %v2779
        %v2781 = vsel %vm2604, %v2780, %v2776
        %v2782 = vlaneseq
        %v2783 = vshrl.u32 %v2782, 7
        %v2784 = vsub.s32 %v2606, %v2783
        %v2785 = vrot.slane %v2469, %v2784
        %v2786 = vsel %vm2611, %v2785, %v2781
        %v2787 = vlaneseq
        %v2788 = vshrl.u32 %v2787, 7
        %v2789 = vsub.s32 %v2613, %v2788
        %v2790 = vrot.slane %v2470, %v2789
        %v2791 = vsel %vm2618, %v2790, %v2786
        %v2792 = vlaneseq
        %v2793 = vshrl.u32 %v2792, 7
        %v2794 = vsub.s32 %v2620, %v2793
        %v2795 = vrot.slane %v2471, %v2794
        %v2796 = vsel %vm2625, %v2795, %v2791
        %v2797 = vlaneseq
        %v2798 = vshrl.u32 %v2797, 7
        %v2799 = vsub.s32 %v2627, %v2798
        %v2800 = vrot.slane %v2472, %v2799
        %v2801 = vsel %vm2632, %v2800, %v2796
        %v2802 = vlaneseq
        %v2803 = vshrl.u32 %v2802, 7
        %v2804 = vsub.s32 %v2634, %v2803
        %v2805 = vrot.slane %v2473, %v2804
        %v2806 = vsel %vm2639, %v2805, %v2801
        %v2807 = vlaneseq
        %v2808 = vshrl.u32 %v2807, 7
        %v2809 = vsub.s32 %v2641, %v2808
        %v2810 = vrot.slane %v2474, %v2809
        %v2811 = vsel %vm2646, %v2810, %v2806
        %v2812 = vlaneseq
        %v2813 = vshrl.u32 %v2812, 7
        %v2814 = vsub.s32 %v2648, %v2813
        %v2815 = vrot.slane %v2475, %v2814
        %v2816 = vsel %vm2653, %v2815, %v2811
        %v2817 = vlaneseq
        %v2818 = vshrl.u32 %v2817, 7
        %v2819 = vsub.s32 %v2655, %v2818
        %v2820 = vrot.slane %v2476, %v2819
        %v2821 = vsel %vm2660, %v2820, %v2816
        %v2822 = vlaneseq
        %v2823 = vshrl.u32 %v2822, 7
        %v2824 = vsub.s32 %v2662, %v2823
        %v2825 = vrot.slane %v2477, %v2824
        %v2826 = vsel %vm2667, %v2825, %v2821
        %v2827 = vlaneseq
        %v2828 = vshrl.u32 %v2827, 7
        %v2829 = vsub.s32 %v2559, %v2828
        %v2830 = vrot.slane %v2478, %v2829
        %v2831 = vlaneseq
        %v2832 = vshrl.u32 %v2831, 7
        %v2833 = vsub.s32 %v2564, %v2832
        %v2834 = vrot.slane %v2479, %v2833
        %v2835 = vsel %vm2569, %v2834, %v2830
        %v2836 = vlaneseq
        %v2837 = vshrl.u32 %v2836, 7
        %v2838 = vsub.s32 %v2571, %v2837
        %v2839 = vrot.slane %v2480, %v2838
        %v2840 = vsel %vm2576, %v2839, %v2835
        %v2841 = vlaneseq
        %v2842 = vshrl.u32 %v2841, 7
        %v2843 = vsub.s32 %v2578, %v2842
        %v2844 = vrot.slane %v2481, %v2843
        %v2845 = vsel %vm2583, %v2844, %v2840
        %v2846 = vlaneseq
        %v2847 = vshrl.u32 %v2846, 7
        %v2848 = vsub.s32 %v2585, %v2847
        %v2849 = vrot.slane %v2482, %v2848
        %v2850 = vsel %vm2590, %v2849, %v2845
        %v2851 = vlaneseq
        %v2852 = vshrl.u32 %v2851, 7
        %v2853 = vsub.s32 %v2592, %v2852
        %v2854 = vrot.slane %v2483, %v2853
        %v2855 = vsel %vm2597, %v2854, %v2850
        %v2856 = vlaneseq
        %v2857 = vshrl.u32 %v2856, 7
        %v2858 = vsub.s32 %v2599, %v2857
        %v2859 = vrot.slane %v2484, %v2858
        %v2860 = vsel %vm2604, %v2859, %v2855
        %v2861 = vlaneseq
        %v2862 = vshrl.u32 %v2861, 7
        %v2863 = vsub.s32 %v2606, %v2862
        %v2864 = vrot.slane %v2485, %v2863
        %v2865 = vsel %vm2611, %v2864, %v2860
        %v2866 = vlaneseq
        %v2867 = vshrl.u32 %v2866, 7
        %v2868 = vsub.s32 %v2613, %v2867
        %v2869 = vrot.slane %v2486, %v2868
        %v2870 = vsel %vm2618, %v2869, %v2865
        %v2871 = vlaneseq
        %v2872 = vshrl.u32 %v2871, 7
        %v2873 = vsub.s32 %v2620, %v2872
        %v2874 = vrot.slane %v2487, %v2873
        %v2875 = vsel %vm2625, %v2874, %v2870
        %v2876 = vlaneseq
        %v2877 = vshrl.u32 %v2876, 7
        %v2878 = vsub.s32 %v2627, %v2877
        %v2879 = vrot.slane %v2488, %v2878
        %v2880 = vsel %vm2632, %v2879, %v2875
        %v2881 = vlaneseq
        %v2882 = vshrl.u32 %v2881, 7
        %v2883 = vsub.s32 %v2634, %v2882
        %v2884 = vrot.slane %v2489, %v2883
        %v2885 = vsel %vm2639, %v2884, %v2880
        %v2886 = vlaneseq
        %v2887 = vshrl.u32 %v2886, 7
        %v2888 = vsub.s32 %v2641, %v2887
        %v2889 = vrot.slane %v2490, %v2888
        %v2890 = vsel %vm2646, %v2889, %v2885
        %v2891 = vlaneseq
        %v2892 = vshrl.u32 %v2891, 7
        %v2893 = vsub.s32 %v2648, %v2892
        %v2894 = vrot.slane %v2491, %v2893
        %v2895 = vsel %vm2653, %v2894, %v2890
        %v2896 = vlaneseq
        %v2897 = vshrl.u32 %v2896, 7
        %v2898 = vsub.s32 %v2655, %v2897
        %v2899 = vrot.slane %v2492, %v2898
        %v2900 = vsel %vm2660, %v2899, %v2895
        %v2901 = vlaneseq
        %v2902 = vshrl.u32 %v2901, 7
        %v2903 = vsub.s32 %v2662, %v2902
        %v2904 = vrot.slane %v2493, %v2903
        %v2905 = vsel %vm2667, %v2904, %v2900
        %vm2906 = vcmask 1042434
        %v2907 = vsel %vm2906, %v2668, %v2668
        %vm2908 = vcmask 1043459
        %v2909 = vsel %vm2908, %v2668, %v2907
        %vm2910 = vcmask 1044484
        %v2911 = vsel %vm2910, %v2668, %v2909
        %vm2912 = vcmask 1045509
        %v2913 = vsel %vm2912, %v2668, %v2911
        %vm2914 = vcmask 1046534
        %v2915 = vsel %vm2914, %v2668, %v2913
        %vm2916 = vcmask 1047559
        %v2917 = vsel %vm2916, %v2668, %v2915
        %v2918 = vsel %vm2906, %v2747, %v2747
        %v2919 = vsel %vm2908, %v2747, %v2918
        %v2920 = vsel %vm2910, %v2747, %v2919
        %v2921 = vsel %vm2912, %v2747, %v2920
        %v2922 = vsel %vm2914, %v2747, %v2921
        %v2923 = vsel %vm2916, %v2747, %v2922
        %v2924 = vsel %vm2906, %v2826, %v2826
        %v2925 = vsel %vm2908, %v2826, %v2924
        %v2926 = vsel %vm2910, %v2826, %v2925
        %v2927 = vsel %vm2912, %v2826, %v2926
        %v2928 = vsel %vm2914, %v2826, %v2927
        %v2929 = vsel %vm2916, %v2826, %v2928
        %v2930 = vsel %vm2906, %v2905, %v2905
        %v2931 = vsel %vm2908, %v2905, %v2930
        %v2932 = vsel %vm2910, %v2905, %v2931
        %v2933 = vsel %vm2912, %v2905, %v2932
        %v2934 = vsel %vm2914, %v2905, %v2933
        %v2935 = vsel %vm2916, %v2905, %v2934
        %v2940 = vmul.f32 %v2101, %v2917
        %v2941 = vmul.f32 %v2145, %v2923
        %v2942 = vmul.f32 %v2189, %v2929
        %v2943 = vmul.f32 %v2233, %v2935
        %v2944 = vld [vmem:[%s6] sm:$0xf]
        %v2945 = vld [vmem:[%s6 + $0x4] sm:$0xf]
        %v2946 = vld [vmem:[%s6 + $0x8] sm:$0xf]
        %v2947 = vld [vmem:[%s6 + $0xc] sm:$0xf]
        %v2948 = vld [vmem:[%s6 + $0x10] sm:$0xf]
        %v2949 = vld [vmem:[%s6 + $0x14] sm:$0xf]
        %v2950 = vld [vmem:[%s6 + $0x18] sm:$0xf]
        %v2951 = vld [vmem:[%s6 + $0x1c] sm:$0xf]
        %v2952 = vpack.c.bf16 %v2941, %v2940
        %v2953 = vpack.c.bf16 %v2943, %v2942
        %v2962 = vunpack.c.l.b16 %v2944
        %v2963 = vunpack.c.l.b16 %v2945
        %v2964 = vunpack.c.l.b16 %v2946
        %v2965 = vunpack.c.l.b16 %v2947
        %v2966 = vunpack.c.l.b16 %v2948
        %v2967 = vunpack.c.l.b16 %v2949
        %v2968 = vunpack.c.l.b16 %v2950
        %v2969 = vunpack.c.l.b16 %v2951
        %v2970 = vpack.c.b16 %v2963, %v2962
        %v2971 = vpack.c.b16 %v2965, %v2964
        %v2972 = vpack.c.b16 %v2967, %v2966
        %v2973 = vpack.c.b16 %v2969, %v2968
        %v2975 = vsel %vm439, %v2970, 0
        %v2978 = vsel %vm439, %v2971, 0
        %v2981 = vsel %vm439, %v2972, 0
        %v2984 = vsel %vm439, %v2973, 0
        %2986 = vmatprep.subr.bf16.mxu0 0
        %2987 = vmatpush1.bf16.msra.mxu0 %v2952
        %2988 = vmatprep.subr.bf16.mxu0 0
        %2989 = vmatpush1.bf16.msra.mxu0 %v2953
        %2990 = vmatprep.subr.bf16.mxu0 0
        %2991 = vmatpush1.bf16.msra.mxu0 0
        %2992 = vmatprep.subr.bf16.mxu0 0
        %2993 = vmatpush1.bf16.msra.mxu0 0
        %2994 = vmatprep.subr.bf16.mxu0 0
        %2995 = vmatpush1.bf16.msra.mxu0 0
        %2996 = vmatprep.subr.bf16.mxu0 0
        %2997 = vmatpush1.bf16.msra.mxu0 0
        %2998 = vmatprep.subr.bf16.mxu0 0
        %2999 = vmatpush1.bf16.msra.mxu0 0
        %3000 = vmatprep.subr.bf16.mxu0 0
        %3001 = vmatpush1.bf16.msra.mxu0 0
        %3002 = vmatprep.subr.bf16.mxu0 0
        %3003 = vmatpush1.bf16.msra.mxu0 0
        %3004 = vmatprep.subr.bf16.mxu0 0
        %3005 = vmatpush1.bf16.msra.mxu0 0
        %3006 = vmatprep.subr.bf16.mxu0 0
        %3007 = vmatpush1.bf16.msra.mxu0 0
        %3008 = vmatprep.subr.bf16.mxu0 0
        %3009 = vmatpush1.bf16.msra.mxu0 0
        %3010 = vmatprep.subr.bf16.mxu0 0
        %3011 = vmatpush1.bf16.msra.mxu0 0
        %3012 = vmatprep.subr.bf16.mxu0 0
        %3013 = vmatpush1.bf16.msra.mxu0 0
        %3014 = vmatprep.subr.bf16.mxu0 0
        %3015 = vmatpush1.bf16.msra.mxu0 0
        %3016 = vmatprep.subr.bf16.mxu0 0
        %3017 = vmatpush1.bf16.msra.mxu0 0
        %3018 = vmatprep.mubr.bf16.mxu0 0
        %3019 = vmatmul.mubr.bf16.gmra.mrb[0].mxu0 %v2975
        %v3020 = vpop.f32.mrb[0].mxu0
        %v3021 = vadd.f32 0.0, %v3020
        %v3022 = vpop.f32.mrb[0].mxu0
        %v3023 = vpop.f32.mrb[0].mxu0
        %v3024 = vadd.f32 0.0, %v3023
        %v3025 = vpop.f32.mrb[0].mxu0
        %3026 = vmatprep.mubr.bf16.mxu0 0
        %3027 = vmatmul.mubr.bf16.gmra.mrb[0].mxu0 %v2978
        %v3028 = vpop.f32.mrb[0].mxu0
        %v3029 = vadd.f32 0.0, %v3028
        %v3030 = vpop.f32.mrb[0].mxu0
        %v3031 = vpop.f32.mrb[0].mxu0
        %v3032 = vadd.f32 0.0, %v3031
        %v3033 = vpop.f32.mrb[0].mxu0
        %3034 = vmatprep.mubr.bf16.mxu0 0
        %3035 = vmatmul.mubr.bf16.gmra.mrb[0].mxu0 %v2981
        %v3036 = vpop.f32.mrb[0].mxu0
        %v3037 = vadd.f32 0.0, %v3036
        %v3038 = vpop.f32.mrb[0].mxu0
        %v3039 = vpop.f32.mrb[0].mxu0
        %v3040 = vadd.f32 0.0, %v3039
        %v3041 = vpop.f32.mrb[0].mxu0
        %3042 = vmatprep.mubr.bf16.mxu0 0
        %3043 = vmatmul.mubr.bf16.gmra.mrb[0].mxu0 %v2984
        %v3044 = vpop.f32.mrb[0].mxu0
        %v3045 = vadd.f32 0.0, %v3044
        %v3046 = vpop.f32.mrb[0].mxu0
        %v3047 = vpop.f32.mrb[0].mxu0
        %v3048 = vadd.f32 0.0, %v3047
        %v3049 = vpop.f32.mrb[0].mxu0
        %3050 = vdwg.mxu0
        %v3051 = vadd.f32 %v509, %v3021
        %v3052 = vadd.f32 %v512, %v3024
        %v3053 = vadd.f32 %v517, %v3029
        %v3054 = vadd.f32 %v520, %v3032
        %v3055 = vadd.f32 %v525, %v3037
        %v3056 = vadd.f32 %v528, %v3040
        %v3057 = vadd.f32 %v533, %v3045
        %v3058 = vadd.f32 %v536, %v3048
        %v3059 = vld [vmem:[%s7] sm:$0xff]
        %v3060 = vld [vmem:[%s7 + $0x8] sm:$0xff]
        %v3061 = vld [vmem:[%s7 + $0x10] sm:$0xff]
        %v3062 = vld [vmem:[%s7 + $0x18] sm:$0xff]
        %v3063 = vld [vmem:[%s7 + $0x20] sm:$0xff]
        %v3064 = vld [vmem:[%s7 + $0x28] sm:$0xff]
        %v3065 = vld [vmem:[%s7 + $0x30] sm:$0xff]
        %v3066 = vld [vmem:[%s7 + $0x38] sm:$0xff]
        %3068 = vset.pattern.permute.xlu0 0
        %3069 = vperm.xlu0 %3068, %v3059
        %v3070 = vpop.permute.xlu0 %3069
        %3073 = vset.pattern.permute.xlu0 0
        %3074 = vperm.xlu0 %3073, %v3060
        %v3075 = vpop.permute.xlu0 %3074
        %3078 = vset.pattern.permute.xlu0 0
        %3079 = vperm.xlu0 %3078, %v3061
        %v3080 = vpop.permute.xlu0 %3079
        %3083 = vset.pattern.permute.xlu0 0
        %3084 = vperm.xlu0 %3083, %v3062
        %v3085 = vpop.permute.xlu0 %3084
        %3088 = vset.pattern.permute.xlu0 0
        %3089 = vperm.xlu0 %3088, %v3063
        %v3090 = vpop.permute.xlu0 %3089
        %3093 = vset.pattern.permute.xlu0 0
        %3094 = vperm.xlu0 %3093, %v3064
        %v3095 = vpop.permute.xlu0 %3094
        %3098 = vset.pattern.permute.xlu0 0
        %3099 = vperm.xlu0 %3098, %v3065
        %v3100 = vpop.permute.xlu0 %3099
        %3103 = vset.pattern.permute.xlu0 0
        %3104 = vperm.xlu0 %3103, %v3066
        %v3105 = vpop.permute.xlu0 %3104
        %v3107 = vadd.f32 %v3051, %v3070
        %v3108 = vadd.f32 %v3052, %v3075
        %v3109 = vadd.f32 %v3053, %v3080
        %v3110 = vadd.f32 %v3054, %v3085
        %v3111 = vadd.f32 %v3055, %v3090
        %v3112 = vadd.f32 %v3056, %v3095
        %v3113 = vadd.f32 %v3057, %v3100
        %v3114 = vadd.f32 %v3058, %v3105
        %v3115 = vmax.f32 %v3107, 0.0
        %v3116 = vmax.f32 %v3108, 0.0
        %v3117 = vmax.f32 %v3109, 0.0
        %v3118 = vmax.f32 %v3110, 0.0
        %v3119 = vmax.f32 %v3111, 0.0
        %v3120 = vmax.f32 %v3112, 0.0
        %v3121 = vmax.f32 %v3113, 0.0
        %v3122 = vmax.f32 %v3114, 0.0
        %v3123 = vld [vmem:[%s8] sm:$0xf]
        %v3124 = vld [vmem:[%s8 + $0x4] sm:$0xf]
        %v3125 = vld [vmem:[%s8 + $0x8] sm:$0xf]
        %v3126 = vld [vmem:[%s8 + $0xc] sm:$0xf]
        %v3127 = vpack.c.bf16 %v3116, %v3115
        %v3128 = vpack.c.bf16 %v3118, %v3117
        %v3129 = vpack.c.bf16 %v3120, %v3119
        %v3130 = vpack.c.bf16 %v3122, %v3121
        %v3131 = vld [vmem:[%s9] sm:$0xff]
        %v3132 = vld [vmem:[%s9 + $0x8] sm:$0xff]
        %v3133 = vld [vmem:[%s9 + $0x10] sm:$0xff]
        %v3134 = vld [vmem:[%s9 + $0x18] sm:$0xff]
        %3136 = vset.pattern.permute.xlu0 0
        %3137 = vperm.xlu0 %3136, %v3131
        %v3138 = vpop.permute.xlu0 %3137
        %3141 = vset.pattern.permute.xlu0 0
        %3142 = vperm.xlu0 %3141, %v3132
        %v3143 = vpop.permute.xlu0 %3142
        %3146 = vset.pattern.permute.xlu0 0
        %3147 = vperm.xlu0 %3146, %v3133
        %v3148 = vpop.permute.xlu0 %3147
        %3151 = vset.pattern.permute.xlu0 0
        %3152 = vperm.xlu0 %3151, %v3134
        %v3153 = vpop.permute.xlu0 %3152
        %v3159 = vunpack.c.l.b16 %v3123
        %v3160 = vunpack.c.l.b16 %v3124
        %v3161 = vunpack.c.l.b16 %v3125
        %v3162 = vunpack.c.l.b16 %v3126
        %v3163 = vpack.c.b16 %v3160, %v3159
        %v3164 = vpack.c.b16 %v3162, %v3161
        %vm3165 = vcmask 523264
        %v3167 = vsel %vm3165, %v3163, 0
        %v3170 = vsel %vm3165, %v3164, 0
        %3172 = vmatprep.subr.bf16.mxu0 0
        %3173 = vmatpush1.bf16.msra.mxu0 %v3127
        %3174 = vmatprep.subr.bf16.mxu0 0
        %3175 = vmatpush1.bf16.msra.mxu0 %v3128
        %3176 = vmatprep.subr.bf16.mxu0 0
        %3177 = vmatpush1.bf16.msra.mxu0 %v3129
        %3178 = vmatprep.subr.bf16.mxu0 0
        %3179 = vmatpush1.bf16.msra.mxu0 %v3130
        %3180 = vmatprep.subr.bf16.mxu0 0
        %3181 = vmatpush1.bf16.msra.mxu0 0
        %3182 = vmatprep.subr.bf16.mxu0 0
        %3183 = vmatpush1.bf16.msra.mxu0 0
        %3184 = vmatprep.subr.bf16.mxu0 0
        %3185 = vmatpush1.bf16.msra.mxu0 0
        %3186 = vmatprep.subr.bf16.mxu0 0
        %3187 = vmatpush1.bf16.msra.mxu0 0
        %3188 = vmatprep.subr.bf16.mxu0 0
        %3189 = vmatpush1.bf16.msra.mxu0 0
        %3190 = vmatprep.subr.bf16.mxu0 0
        %3191 = vmatpush1.bf16.msra.mxu0 0
        %3192 = vmatprep.subr.bf16.mxu0 0
        %3193 = vmatpush1.bf16.msra.mxu0 0
        %3194 = vmatprep.subr.bf16.mxu0 0
        %3195 = vmatpush1.bf16.msra.mxu0 0
        %3196 = vmatprep.subr.bf16.mxu0 0
        %3197 = vmatpush1.bf16.msra.mxu0 0
        %3198 = vmatprep.subr.bf16.mxu0 0
        %3199 = vmatpush1.bf16.msra.mxu0 0
        %3200 = vmatprep.subr.bf16.mxu0 0
        %3201 = vmatpush1.bf16.msra.mxu0 0
        %3202 = vmatprep.subr.bf16.mxu0 0
        %3203 = vmatpush1.bf16.msra.mxu0 0
        %3204 = vmatprep.mubr.bf16.mxu0 0
        %3205 = vmatmul.mubr.bf16.gmra.mrb[0].mxu0 %v3167
        %v3206 = vpop.f32.mrb[0].mxu0
        %v3207 = vadd.f32 %v3138, %v3206
        %v3208 = vpop.f32.mrb[0].mxu0
        %v3209 = vpop.f32.mrb[0].mxu0
        %v3210 = vadd.f32 %v3143, %v3209
        %v3211 = vpop.f32.mrb[0].mxu0
        %3212 = vmatprep.mubr.bf16.mxu0 0
        %3213 = vmatmul.mubr.bf16.gmra.mrb[0].mxu0 %v3170
        %v3214 = vpop.f32.mrb[0].mxu0
        %v3215 = vadd.f32 %v3148, %v3214
        %v3216 = vpop.f32.mrb[0].mxu0
        %v3217 = vpop.f32.mrb[0].mxu0
        %v3218 = vadd.f32 %v3153, %v3217
        %v3219 = vpop.f32.mrb[0].mxu0
        %3220 = vdwg.mxu0
        %v3221 = vadd.f32 %v379, %v3207
        %v3222 = vadd.f32 %v380, %v3210
        %v3223 = vadd.f32 %v381, %v3215
        %v3224 = vadd.f32 %v382, %v3218
        %3225 = vst [vmem:[%s367] sm:$0xff] %v3221
        %3226 = vst [vmem:[%s367 + $0x8] sm:$0xff] %v3222
        %3227 = vst [vmem:[%s367 + $0x10] sm:$0xff] %v3223
        %3228 = vst [vmem:[%s367 + $0x18] sm:$0xff] %v3224
        %s3229 = sand.u32 %s252, 1
        %s3230 = scalar_lea.sflag [#allocation3], %s3229
        %s3231 = sand.u32 %s252, 1
        %s3232 = smul.addr %s3231, 32
        %s3233 = scalar_lea.vmem [#allocation2], %s3232
        // Predicated region
        $region61: #{attention_propagation.1} parent=59 // pred_check
          %p3234 = pneg %p262
        $region62: #{attention_propagation.1} parent=59 // pred_check_branch
          %3236 = sbr.rel (%p3234) target = $region64
        $region63: #{attention_propagation.1} parent=59 // pred_region
          %s3238 = ssub.s32 512, 512
          %3239 = vsyncadd %s3230, %s3238
          %s3240 = smul.addr %s24, 4
          %s3241 = smul.addr %s3240, 128
          %s3242 = scalar_lea.hbm %s10, %s3241
          %s3243 = sshll.u32 %s3233, 4
          %s3244 = int_to_ptr.vmem [resolvable:$true] %s3243
          %3249 = dma.vmem_to_hbm [thread:$0]  %s3244, 512, %s3242, %s3230, 128, 128, 8
        $region64: #{attention_propagation.1} parent=59 // pred_fallthru
          _
      $region60: #{attention_propagation.1} parent=5 // pred_fallthru
        _
      %p3250 = scmp.le.s32.totalorder 2, %s19
      // Predicated region
      $region65: #{attention_propagation.1} parent=5 // pred_check
        %p3251 = pneg %p3250
      $region66: #{attention_propagation.1} parent=5 // pred_check_branch
        %3253 = sbr.rel (%p3251) target = $region68
      $region67: #{attention_propagation.1} parent=5 // pred_region
        %s3254 = ssub.s32 %s19, 2
        // Predicated region
        $region69: #{attention_propagation.1} parent=67 // pred_check
          %p3255 = pneg %p268
        $region70: #{attention_propagation.1} parent=67 // pred_check_branch
          %3257 = sbr.rel (%p3255) target = $region72
        $region71: #{attention_propagation.1} parent=67 // pred_region
          %s3258 = sand.u32 %s253, 1
          %s3259 = scalar_lea.sflag [#allocation3], %s3258
          %s3260 = sand.u32 %s253, 1
          %s3261 = smul.addr %s3260, 32
          %s3262 = scalar_lea.vmem [#allocation2], %s3261
          %3263 = dma.done %s3259, 512
        $region72: #{attention_propagation.1} parent=67 // pred_fallthru
          _
      $region68: #{attention_propagation.1} parent=5 // pred_fallthru
        _
    $region6: #{attention_propagation.1} parent=1 // loop_footer
      %s23 = sadd.s32 1, %s19
    $region7: #{attention_propagation.1} parent=1 // loop_footer_branch
      %18 = sbr.rel target = $region3
    $region8: #{attention_propagation.1} parent=1 // loop_exit
      _
    %3264 = vsyncpa [#allocation3], 1
    %s3265 = scalar_lea.sflag [#allocation3], 1
    %3266 = vsyncpa %s3265, 1

</llo_original>
